<compile_context>
chip_gen: v7x
topology: tpu7x:2x2x1
jax: 0.10.0
libtpu: 0.0.40
codegen_flags: <defaults>
</compile_context>

<pallas_src>
import functools

import jax
import jax.numpy as jnp
from jax.experimental import pallas as pl
from jax.experimental.pallas import tpu as pltpu

_EPS = 1e-5  # PyTorch InstanceNorm2d default eps


def _in_scale_shift(mean, var, gamma, beta):
    """InstanceNorm (biased var) folded into a per-channel scale/shift."""
    scale = jax.lax.rsqrt(var + _EPS) * gamma
    shift = beta - mean * scale
    return scale, shift


def _decoder_kernel(x_ref, *refs, C, H, W, depth, maxpad, mxu_dtype):
    """Full ComplexDecoder forward for ONE batch element (grid is over batch).

    refs layout:
      [0 : 5*depth)       dense params, per layer: w, b, gamma, beta, alpha
      [5d : 5d+5)         sub-pixel params:        w, b, gamma, beta, alpha
      [5d+5 : 5d+9)       head params:             wc, bc, w_heads, b_heads
      [5d+9], [5d+10]     outputs: mu_ref, var_ref   (1, 2, 2W-1, 1)
      [5d+11]             scratch: skip buffer (H+maxpad, W+2, (depth+1)*C) f32
    """
    nd = 5 * depth
    dense_refs = refs[:nd]
    spw_ref, spb_ref, spg_ref, spbt_ref, spa_ref = refs[nd:nd + 5]
    wc_ref, bc_ref, wh_ref, bh_ref = refs[nd + 5:nd + 9]
    mu_ref, var_ref = refs[nd + 9], refs[nd + 10]
    skip_ref = refs[nd + 11]

    HW = H * W

    # ---- stage 0: NCHW block -> zero-padded NHWC skip buffer (time halo top, freq halo 1/1)
    skip_ref[...] = jnp.zeros_like(skip_ref)
    x_hwc = jnp.stack([x_ref[0, c, :, :] for c in range(C)], axis=-1)     # (H, W, C)
    skip_ref[maxpad:maxpad + H, 1:1 + W, 0:C] = x_hwc

    # ---- stage 1: DilatedDenseNet (depth layers), skip tensor kept in VMEM -------------
    cin = C
    for i in range(depth):
        dil = 2 ** i
        w_r, b_r, g_r, bt_r, a_r = dense_refs[5 * i:5 * i + 5]
        # im2col: 6 taps -> one (H*W, 6*cin) patch -> a single MXU matmul.
        taps = []
        for kh in range(2):
            r0 = maxpad - dil + kh * dil           # causal dilated time tap
            for kw in range(3):
                taps.append(skip_ref[r0:r0 + H, kw:kw + W, 0:cin].reshape(HW, cin))
        patch = jnp.concatenate(taps, axis=-1)
        acc = jnp.dot(patch.astype(mxu_dtype), w_r[...],
                      preferred_element_type=jnp.float32)                 # (H*W, C)
        acc = acc + b_r[...]
        # InstanceNorm2d(affine=True) per channel over (H, W), then per-channel PReLU.
        mean = jnp.mean(acc, axis=0, keepdims=True)
        var = jnp.mean(jnp.square(acc - mean), axis=0, keepdims=True)
        scale, shift = _in_scale_shift(mean, var, g_r[...], bt_r[...])
        y = acc * scale + shift
        y = jnp.where(y >= 0, y, a_r[...] * y)
        # dense connectivity: append this layer's output as the next channel block.
        skip_ref[maxpad:maxpad + H, 1:1 + W, cin:cin + C] = y.reshape(H, W, C)
        cin += C

    # ---- stage 2: SPConvTranspose2d(C, C, (1,3), r=2) + InstanceNorm + PReLU ------------
    base = depth * C                               # last dense layer's output block
    taps = [skip_ref[maxpad:maxpad + H, kw:kw + W, base:base + C].reshape(HW, C)
            for kw in range(3)]
    patch = jnp.concatenate(taps, axis=-1)         # (H*W, 3C)
    acc = jnp.dot(patch.astype(mxu_dtype), spw_ref[...],
                  preferred_element_type=jnp.float32)                     # (H*W, 2C), col = j*C + c
    acc = acc + spb_ref[...]
    # InstanceNorm stats of the *shuffled* map, computed on the pre-shuffle layout:
    # per output channel c, pool over (H, W) and both sub-pixel phases j (identical result).
    half0, half1 = acc[:, :C], acc[:, C:]
    mean = 0.5 * (jnp.mean(half0, axis=0, keepdims=True)
                  + jnp.mean(half1, axis=0, keepdims=True))
    var = 0.5 * (jnp.mean(jnp.square(half0 - mean), axis=0, keepdims=True)
                 + jnp.mean(jnp.square(half1 - mean), axis=0, keepdims=True))
    scale, shift = _in_scale_shift(mean, var, spg_ref[...], spbt_ref[...])
    accg = acc.reshape(HW, 2, C)                   # [hw, j, c]
    yg = accg * scale.reshape(1, 1, C) + shift.reshape(1, 1, C)
    yg = jnp.where(yg >= 0, yg, spa_ref[...].reshape(1, 1, C) * yg)
    # sub-pixel interleave out[h, 2w+j, c] = conv[h, w, j*C+c] is a pure row-major reshape:
    y = yg.reshape(H, 2 * W, C)

    # ---- stage 3: Conv2d(C, 2, (1,2)) + both Linear(H -> 1) heads (one weight matrix) ---
    Wout = 2 * W - 1
    patch = jnp.concatenate([y[:, 0:Wout, :].reshape(H * Wout, C),
                             y[:, 1:1 + Wout, :].reshape(H * Wout, C)], axis=-1)
    z = jnp.dot(patch, wc_ref[...], preferred_element_type=jnp.float32)   # (H*Wout, 2)
    z = z + bc_ref[...]
    z3 = z.reshape(H, Wout, 2)                     # [h, wout, o]
    wh = wh_ref[...]                               # (2, H): rows = [mu weights, var weights]
    bh = bh_ref[...]                               # (2, 1)
    for o in range(2):                             # the 2 conv output channels
        ho = jnp.dot(wh, z3[:, :, o], preferred_element_type=jnp.float32) + bh   # (2, Wout)
        mu_ref[:, o, :, 0] = ho[0:1, :]
        var_ref[:, o, :, 0] = ho[1:2, :]


def complex_decoder_forward(x_nchw, params, *, matmul_dtype=jnp.bfloat16):
    """x_nchw: (B, num_channel, signal_window, F) exactly like the PyTorch module.
    Returns (x_mu, x_var), each (B, 2, 2*F - 1, 1) float32."""
    B, C, H, W = x_nchw.shape
    depth = len(params["dense"])
    maxpad = 2 ** (depth - 1)
    Wout = 2 * W - 1

    flat = []
    in_specs = [pl.BlockSpec((1, C, H, W), lambda b: (b, 0, 0, 0))]

    def add(a, cast=False):
        a = a.astype(matmul_dtype) if cast else a
        flat.append(a)
        in_specs.append(pl.BlockSpec(a.shape, lambda b, n=a.ndim: (0,) * n))

    for p in params["dense"]:
        add(p["w"], cast=True); add(p["b"]); add(p["gamma"]); add(p["beta"]); add(p["alpha"])
    sp = params["subpixel"]
    add(sp["w"], cast=True); add(sp["b"]); add(sp["gamma"]); add(sp["beta"]); add(sp["alpha"])
    hd = params["head"]
    add(hd["wc"]); add(hd["bc"]); add(hd["w_heads"]); add(hd["b_heads"])

    kernel = functools.partial(_decoder_kernel, C=C, H=H, W=W, depth=depth,
                               maxpad=maxpad, mxu_dtype=matmul_dtype)
    out_spec = pl.BlockSpec((1, 2, Wout, 1), lambda b: (b, 0, 0, 0))

    x_mu, x_var = pl.pallas_call(
        kernel,
        grid=(B,),
        in_specs=in_specs,
        out_specs=(out_spec, out_spec),
        out_shape=(jax.ShapeDtypeStruct((B, 2, Wout, 1), jnp.float32),
                   jax.ShapeDtypeStruct((B, 2, Wout, 1), jnp.float32)),
        scratch_shapes=[pltpu.VMEM((H + maxpad, W + 2, (depth + 1) * C), jnp.float32)],
        compiler_params=pltpu.CompilerParams(dimension_semantics=("parallel",)),
    )(x_nchw, *flat)
    return x_mu, x_var


# ------------------------- deterministic parameter init -----------------------------
def init_params(key, C, H, depth=4):
    ks = jax.random.split(key, depth + 3)
    dense = []
    for i in range(depth):
        cin = C * (i + 1)
        dense.append(dict(
            w=jax.random.normal(ks[i], (6 * cin, C), jnp.float32) / jnp.sqrt(6 * cin),
            b=jnp.zeros((1, C), jnp.float32),
            gamma=jnp.ones((1, C), jnp.float32),
            beta=jnp.zeros((1, C), jnp.float32),
            alpha=jnp.full((1, C), 0.25, jnp.float32),     # PReLU default slope
        ))
    subpixel = dict(
        w=jax.random.normal(ks[depth], (3 * C, 2 * C), jnp.float32) / jnp.sqrt(3 * C),
        b=jnp.zeros((1, 2 * C), jnp.float32),
        gamma=jnp.ones((1, C), jnp.float32),
        beta=jnp.zeros((1, C), jnp.float32),
        alpha=jnp.full((1, C), 0.25, jnp.float32),
    )
    head = dict(
        wc=jax.random.normal(ks[depth + 1], (2 * C, 2), jnp.float32) / jnp.sqrt(2 * C),
        bc=jnp.zeros((1, 2), jnp.float32),
        w_heads=jax.random.normal(ks[depth + 2], (2, H), jnp.float32) / jnp.sqrt(H),
        b_heads=jnp.zeros((2, 1), jnp.float32),
    )
    return dict(dense=dense, subpixel=subpixel, head=head)


# TODO(synk): ComplexDecoder.sample (torch.distributions.Normal reparameterized draw) is
# not part of forward(), so it is intentionally not implemented here.

if __name__ == "__main__":
    B, C, T, F = 2, 8, 8, 4   # batch, num_channel, signal_window (time), freq bins
    key = jax.random.PRNGKey(0)
    kx, kp = jax.random.split(key)
    x = jax.random.normal(kx, (B, C, T, F), jnp.float32)   # NCHW, like PyTorch
    params = init_params(kp, C, T)

    fwd = jax.jit(complex_decoder_forward)
    x_mu, x_var = fwd(x, params)
    jax.block_until_ready((x_mu, x_var))

    assert x_mu.shape == (B, 2, 2 * F - 1, 1), x_mu.shape
    assert x_var.shape == (B, 2, 2 * F - 1, 1), x_var.shape
    assert bool(jnp.all(jnp.isfinite(x_mu))) and bool(jnp.all(jnp.isfinite(x_var)))
    print("KERNEL_OK")
</pallas_src>

<mosaic_0001>
module attributes {stable_mosaic.version = 11 : i64} {
  func.func @_decoder_kernel(%arg0: i32, %arg1: memref<1x8x8x4xf32, #tpu.memory_space<vmem>>, %arg2: memref<48x8xbf16, #tpu.memory_space<vmem>>, %arg3: memref<1x8xf32, #tpu.memory_space<vmem>>, %arg4: memref<1x8xf32, #tpu.memory_space<vmem>>, %arg5: memref<1x8xf32, #tpu.memory_space<vmem>>, %arg6: memref<1x8xf32, #tpu.memory_space<vmem>>, %arg7: memref<96x8xbf16, #tpu.memory_space<vmem>>, %arg8: memref<1x8xf32, #tpu.memory_space<vmem>>, %arg9: memref<1x8xf32, #tpu.memory_space<vmem>>, %arg10: memref<1x8xf32, #tpu.memory_space<vmem>>, %arg11: memref<1x8xf32, #tpu.memory_space<vmem>>, %arg12: memref<144x8xbf16, #tpu.memory_space<vmem>>, %arg13: memref<1x8xf32, #tpu.memory_space<vmem>>, %arg14: memref<1x8xf32, #tpu.memory_space<vmem>>, %arg15: memref<1x8xf32, #tpu.memory_space<vmem>>, %arg16: memref<1x8xf32, #tpu.memory_space<vmem>>, %arg17: memref<192x8xbf16, #tpu.memory_space<vmem>>, %arg18: memref<1x8xf32, #tpu.memory_space<vmem>>, %arg19: memref<1x8xf32, #tpu.memory_space<vmem>>, %arg20: memref<1x8xf32, #tpu.memory_space<vmem>>, %arg21: memref<1x8xf32, #tpu.memory_space<vmem>>, %arg22: memref<24x16xbf16, #tpu.memory_space<vmem>>, %arg23: memref<1x16xf32, #tpu.memory_space<vmem>>, %arg24: memref<1x8xf32, #tpu.memory_space<vmem>>, %arg25: memref<1x8xf32, #tpu.memory_space<vmem>>, %arg26: memref<1x8xf32, #tpu.memory_space<vmem>>, %arg27: memref<16x2xf32, #tpu.memory_space<vmem>>, %arg28: memref<1x2xf32, #tpu.memory_space<vmem>>, %arg29: memref<2x8xf32, #tpu.memory_space<vmem>>, %arg30: memref<2x1xf32, #tpu.memory_space<vmem>>, %arg31: memref<1x2x7x1xf32, #tpu.memory_space<vmem>>, %arg32: memref<1x2x7x1xf32, #tpu.memory_space<vmem>>, %arg33: memref<16x6x40xf32, #tpu.memory_space<vmem>>) attributes {dimension_semantics = [#tpu.dimension_semantics<parallel>], iteration_bounds = array<i64: 2>, scalar_prefetch = 0 : i64, scratch_operands = 1 : i64, tpu.core_type = #tpu.core_type<tc>, window_params = [{transform_indices = @transform_0, window_bounds = array<i64: 1, 8, 8, 4>}, {pipeline_mode = #tpu.pipeline_mode<synchronous>, transform_indices = @transform_1, window_bounds = array<i64: 48, 8>}, {pipeline_mode = #tpu.pipeline_mode<synchronous>, transform_indices = @transform_2, window_bounds = array<i64: 1, 8>}, {pipeline_mode = #tpu.pipeline_mode<synchronous>, transform_indices = @transform_3, window_bounds = array<i64: 1, 8>}, {pipeline_mode = #tpu.pipeline_mode<synchronous>, transform_indices = @transform_4, window_bounds = array<i64: 1, 8>}, {pipeline_mode = #tpu.pipeline_mode<synchronous>, transform_indices = @transform_5, window_bounds = array<i64: 1, 8>}, {pipeline_mode = #tpu.pipeline_mode<synchronous>, transform_indices = @transform_6, window_bounds = array<i64: 96, 8>}, {pipeline_mode = #tpu.pipeline_mode<synchronous>, transform_indices = @transform_7, window_bounds = array<i64: 1, 8>}, {pipeline_mode = #tpu.pipeline_mode<synchronous>, transform_indices = @transform_8, window_bounds = array<i64: 1, 8>}, {pipeline_mode = #tpu.pipeline_mode<synchronous>, transform_indices = @transform_9, window_bounds = array<i64: 1, 8>}, {pipeline_mode = #tpu.pipeline_mode<synchronous>, transform_indices = @transform_10, window_bounds = array<i64: 1, 8>}, {pipeline_mode = #tpu.pipeline_mode<synchronous>, transform_indices = @transform_11, window_bounds = array<i64: 144, 8>}, {pipeline_mode = #tpu.pipeline_mode<synchronous>, transform_indices = @transform_12, window_bounds = array<i64: 1, 8>}, {pipeline_mode = #tpu.pipeline_mode<synchronous>, transform_indices = @transform_13, window_bounds = array<i64: 1, 8>}, {pipeline_mode = #tpu.pipeline_mode<synchronous>, transform_indices = @transform_14, window_bounds = array<i64: 1, 8>}, {pipeline_mode = #tpu.pipeline_mode<synchronous>, transform_indices = @transform_15, window_bounds = array<i64: 1, 8>}, {pipeline_mode = #tpu.pipeline_mode<synchronous>, transform_indices = @transform_16, window_bounds = array<i64: 192, 8>}, {pipeline_mode = #tpu.pipeline_mode<synchronous>, transform_indices = @transform_17, window_bounds = array<i64: 1, 8>}, {pipeline_mode = #tpu.pipeline_mode<synchronous>, transform_indices = @transform_18, window_bounds = array<i64: 1, 8>}, {pipeline_mode = #tpu.pipeline_mode<synchronous>, transform_indices = @transform_19, window_bounds = array<i64: 1, 8>}, {pipeline_mode = #tpu.pipeline_mode<synchronous>, transform_indices = @transform_20, window_bounds = array<i64: 1, 8>}, {pipeline_mode = #tpu.pipeline_mode<synchronous>, transform_indices = @transform_21, window_bounds = array<i64: 24, 16>}, {pipeline_mode = #tpu.pipeline_mode<synchronous>, transform_indices = @transform_22, window_bounds = array<i64: 1, 16>}, {pipeline_mode = #tpu.pipeline_mode<synchronous>, transform_indices = @transform_23, window_bounds = array<i64: 1, 8>}, {pipeline_mode = #tpu.pipeline_mode<synchronous>, transform_indices = @transform_24, window_bounds = array<i64: 1, 8>}, {pipeline_mode = #tpu.pipeline_mode<synchronous>, transform_indices = @transform_25, window_bounds = array<i64: 1, 8>}, {pipeline_mode = #tpu.pipeline_mode<synchronous>, transform_indices = @transform_26, window_bounds = array<i64: 16, 2>}, {pipeline_mode = #tpu.pipeline_mode<synchronous>, transform_indices = @transform_27, window_bounds = array<i64: 1, 2>}, {pipeline_mode = #tpu.pipeline_mode<synchronous>, transform_indices = @transform_28, window_bounds = array<i64: 2, 8>}, {pipeline_mode = #tpu.pipeline_mode<synchronous>, transform_indices = @transform_29, window_bounds = array<i64: 2, 1>}, {transform_indices = @transform_30, window_bounds = array<i64: 1, 2, 7, 1>}, {transform_indices = @transform_31, window_bounds = array<i64: 1, 2, 7, 1>}]} {
    %cst = arith.constant 0.000000e+00 : f32
    %0 = vector.broadcast %cst : f32 to vector<16x6x40xf32>
    %c0 = arith.constant 0 : index
    %c0_0 = arith.constant 0 : index
    %c0_1 = arith.constant 0 : index
    %1 = vector.load %arg33[%c0, %c0_0, %c0_1] : memref<16x6x40xf32, #tpu.memory_space<vmem>>, vector<16x6x40xf32>
    tpu.vector_store %arg33[%c0, %c0_0, %c0_1], %0 {strides = array<i32>} : memref<16x6x40xf32, #tpu.memory_space<vmem>>, vector<16x6x40xf32>,
    %c0_2 = arith.constant 0 : index
    %c0_3 = arith.constant 0 : index
    %c0_4 = arith.constant 0 : index
    %c0_5 = arith.constant 0 : index
    %2 = vector.load %arg1[%c0_2, %c0_3, %c0_4, %c0_5] : memref<1x8x8x4xf32, #tpu.memory_space<vmem>>, vector<1x1x8x4xf32>
    %3 = vector.shape_cast %2 : vector<1x1x8x4xf32> to vector<8x4xf32>
    %c0_6 = arith.constant 0 : index
    %c1 = arith.constant 1 : index
    %c0_7 = arith.constant 0 : index
    %c0_8 = arith.constant 0 : index
    %4 = vector.load %arg1[%c0_6, %c1, %c0_7, %c0_8] : memref<1x8x8x4xf32, #tpu.memory_space<vmem>>, vector<1x1x8x4xf32>
    %5 = vector.shape_cast %4 : vector<1x1x8x4xf32> to vector<8x4xf32>
    %c0_9 = arith.constant 0 : index
    %c2 = arith.constant 2 : index
    %c0_10 = arith.constant 0 : index
    %c0_11 = arith.constant 0 : index
    %6 = vector.load %arg1[%c0_9, %c2, %c0_10, %c0_11] : memref<1x8x8x4xf32, #tpu.memory_space<vmem>>, vector<1x1x8x4xf32>
    %7 = vector.shape_cast %6 : vector<1x1x8x4xf32> to vector<8x4xf32>
    %c0_12 = arith.constant 0 : index
    %c3 = arith.constant 3 : index
    %c0_13 = arith.constant 0 : index
    %c0_14 = arith.constant 0 : index
    %8 = vector.load %arg1[%c0_12, %c3, %c0_13, %c0_14] : memref<1x8x8x4xf32, #tpu.memory_space<vmem>>, vector<1x1x8x4xf32>
    %9 = vector.shape_cast %8 : vector<1x1x8x4xf32> to vector<8x4xf32>
    %c0_15 = arith.constant 0 : index
    %c4 = arith.constant 4 : index
    %c0_16 = arith.constant 0 : index
    %c0_17 = arith.constant 0 : index
    %10 = vector.load %arg1[%c0_15, %c4, %c0_16, %c0_17] : memref<1x8x8x4xf32, #tpu.memory_space<vmem>>, vector<1x1x8x4xf32>
    %11 = vector.shape_cast %10 : vector<1x1x8x4xf32> to vector<8x4xf32>
    %c0_18 = arith.constant 0 : index
    %c5 = arith.constant 5 : index
    %c0_19 = arith.constant 0 : index
    %c0_20 = arith.constant 0 : index
    %12 = vector.load %arg1[%c0_18, %c5, %c0_19, %c0_20] : memref<1x8x8x4xf32, #tpu.memory_space<vmem>>, vector<1x1x8x4xf32>
    %13 = vector.shape_cast %12 : vector<1x1x8x4xf32> to vector<8x4xf32>
    %c0_21 = arith.constant 0 : index
    %c6 = arith.constant 6 : index
    %c0_22 = arith.constant 0 : index
    %c0_23 = arith.constant 0 : index
    %14 = vector.load %arg1[%c0_21, %c6, %c0_22, %c0_23] : memref<1x8x8x4xf32, #tpu.memory_space<vmem>>, vector<1x1x8x4xf32>
    %15 = vector.shape_cast %14 : vector<1x1x8x4xf32> to vector<8x4xf32>
    %c0_24 = arith.constant 0 : index
    %c7 = arith.constant 7 : index
    %c0_25 = arith.constant 0 : index
    %c0_26 = arith.constant 0 : index
    %16 = vector.load %arg1[%c0_24, %c7, %c0_25, %c0_26] : memref<1x8x8x4xf32, #tpu.memory_space<vmem>>, vector<1x1x8x4xf32>
    %17 = vector.shape_cast %16 : vector<1x1x8x4xf32> to vector<8x4xf32>
    %18 = vector.shape_cast %3 : vector<8x4xf32> to vector<8x4x1xf32>
    %19 = vector.shape_cast %5 : vector<8x4xf32> to vector<8x4x1xf32>
    %20 = vector.shape_cast %7 : vector<8x4xf32> to vector<8x4x1xf32>
    %21 = vector.shape_cast %9 : vector<8x4xf32> to vector<8x4x1xf32>
    %22 = vector.shape_cast %11 : vector<8x4xf32> to vector<8x4x1xf32>
    %23 = vector.shape_cast %13 : vector<8x4xf32> to vector<8x4x1xf32>
    %24 = vector.shape_cast %15 : vector<8x4xf32> to vector<8x4x1xf32>
    %25 = vector.shape_cast %17 : vector<8x4xf32> to vector<8x4x1xf32>
    %26 = tpu.concatenate %18, %19, %20, %21, %22, %23, %24, %25 in 2 : vector<8x4x1xf32>, vector<8x4x1xf32>, vector<8x4x1xf32>, vector<8x4x1xf32>, vector<8x4x1xf32>, vector<8x4x1xf32>, vector<8x4x1xf32>, vector<8x4x1xf32> -> vector<8x4x8xf32>
    %c8 = arith.constant 8 : index
    %c1_27 = arith.constant 1 : index
    %c0_28 = arith.constant 0 : index
    %27 = vector.load %arg33[%c8, %c1_27, %c0_28] : memref<16x6x40xf32, #tpu.memory_space<vmem>>, vector<8x4x8xf32>
    tpu.vector_store %arg33[%c8, %c1_27, %c0_28], %26 {strides = array<i32>} : memref<16x6x40xf32, #tpu.memory_space<vmem>>, vector<8x4x8xf32>,
    %c7_29 = arith.constant 7 : index
    %c0_30 = arith.constant 0 : index
    %c0_31 = arith.constant 0 : index
    %28 = vector.load %arg33[%c7_29, %c0_30, %c0_31] : memref<16x6x40xf32, #tpu.memory_space<vmem>>, vector<8x4x8xf32>
    %29 = vector.shape_cast %28 : vector<8x4x8xf32> to vector<32x8xf32>
    %c7_32 = arith.constant 7 : index
    %c1_33 = arith.constant 1 : index
    %c0_34 = arith.constant 0 : index
    %30 = vector.load %arg33[%c7_32, %c1_33, %c0_34] : memref<16x6x40xf32, #tpu.memory_space<vmem>>, vector<8x4x8xf32>
    %31 = vector.shape_cast %30 : vector<8x4x8xf32> to vector<32x8xf32>
    %c7_35 = arith.constant 7 : index
    %c2_36 = arith.constant 2 : index
    %c0_37 = arith.constant 0 : index
    %32 = vector.load %arg33[%c7_35, %c2_36, %c0_37] : memref<16x6x40xf32, #tpu.memory_space<vmem>>, vector<8x4x8xf32>
    %33 = vector.shape_cast %32 : vector<8x4x8xf32> to vector<32x8xf32>
    %c8_38 = arith.constant 8 : index
    %c0_39 = arith.constant 0 : index
    %c0_40 = arith.constant 0 : index
    %34 = vector.load %arg33[%c8_38, %c0_39, %c0_40] : memref<16x6x40xf32, #tpu.memory_space<vmem>>, vector<8x4x8xf32>
    %35 = vector.shape_cast %34 : vector<8x4x8xf32> to vector<32x8xf32>
    %c8_41 = arith.constant 8 : index
    %c1_42 = arith.constant 1 : index
    %c0_43 = arith.constant 0 : index
    %36 = vector.load %arg33[%c8_41, %c1_42, %c0_43] : memref<16x6x40xf32, #tpu.memory_space<vmem>>, vector<8x4x8xf32>
    %37 = vector.shape_cast %36 : vector<8x4x8xf32> to vector<32x8xf32>
    %c8_44 = arith.constant 8 : index
    %c2_45 = arith.constant 2 : index
    %c0_46 = arith.constant 0 : index
    %38 = vector.load %arg33[%c8_44, %c2_45, %c0_46] : memref<16x6x40xf32, #tpu.memory_space<vmem>>, vector<8x4x8xf32>
    %39 = vector.shape_cast %38 : vector<8x4x8xf32> to vector<32x8xf32>
    %40 = tpu.concatenate %29, %31, %33, %35, %37, %39 in 1 : vector<32x8xf32>, vector<32x8xf32>, vector<32x8xf32>, vector<32x8xf32>, vector<32x8xf32>, vector<32x8xf32> -> vector<32x48xf32>
    %41 = arith.truncf %40 : vector<32x48xf32> to vector<32x48xbf16>
    %c0_47 = arith.constant 0 : index
    %c0_48 = arith.constant 0 : index
    %42 = vector.load %arg2[%c0_47, %c0_48] : memref<48x8xbf16, #tpu.memory_space<vmem>>, vector<48x8xbf16>
    %cst_49 = arith.constant dense<0.000000e+00> : vector<32x8xf32>
    %43 = tpu.matmul %41, %42, %cst_49 {dimension_numbers = #tpu.dot_dimension_numbers<[1], [0], [0], [1], [0, 0, 1, 1], [], []>} : vector<32x48xbf16>, vector<48x8xbf16>, vector<32x8xf32> -> vector<32x8xf32>
    %c0_50 = arith.constant 0 : index
    %c0_51 = arith.constant 0 : index
    %44 = vector.load %arg3[%c0_50, %c0_51] : memref<1x8xf32, #tpu.memory_space<vmem>>, vector<1x8xf32>
    %45 = vector.broadcast %44 : vector<1x8xf32> to vector<32x8xf32>
    %46 = arith.addf %43, %45 : vector<32x8xf32>
    %cst_52 = arith.constant dense<0.000000e+00> : vector<8xf32>
    %47 = vector.multi_reduction <add>, %46, %cst_52 [0] : vector<32x8xf32> to vector<8xf32>
    %48 = vector.shape_cast %47 : vector<8xf32> to vector<1x8xf32>
    %cst_53 = arith.constant 3.200000e+01 : f32
    %49 = vector.broadcast %cst_53 : f32 to vector<1x8xf32>
    %50 = arith.divf %48, %49 : vector<1x8xf32>
    %51 = vector.broadcast %50 : vector<1x8xf32> to vector<32x8xf32>
    %52 = arith.subf %46, %51 : vector<32x8xf32>
    %53 = arith.mulf %52, %52 : vector<32x8xf32>
    %cst_54 = arith.constant dense<0.000000e+00> : vector<8xf32>
    %54 = vector.multi_reduction <add>, %53, %cst_54 [0] : vector<32x8xf32> to vector<8xf32>
    %55 = vector.shape_cast %54 : vector<8xf32> to vector<1x8xf32>
    %cst_55 = arith.constant 3.200000e+01 : f32
    %56 = vector.broadcast %cst_55 : f32 to vector<1x8xf32>
    %57 = arith.divf %55, %56 : vector<1x8xf32>
    %c0_56 = arith.constant 0 : index
    %c0_57 = arith.constant 0 : index
    %58 = vector.load %arg4[%c0_56, %c0_57] : memref<1x8xf32, #tpu.memory_space<vmem>>, vector<1x8xf32>
    %c0_58 = arith.constant 0 : index
    %c0_59 = arith.constant 0 : index
    %59 = vector.load %arg5[%c0_58, %c0_59] : memref<1x8xf32, #tpu.memory_space<vmem>>, vector<1x8xf32>
    %cst_60 = arith.constant 9.99999974E-6 : f32
    %60 = vector.broadcast %cst_60 : f32 to vector<1x8xf32>
    %61 = arith.addf %57, %60 : vector<1x8xf32>
    %62 = math.rsqrt %61 : vector<1x8xf32>
    %63 = arith.mulf %62, %58 : vector<1x8xf32>
    %64 = arith.mulf %50, %63 : vector<1x8xf32>
    %65 = arith.subf %59, %64 : vector<1x8xf32>
    %66 = vector.broadcast %63 : vector<1x8xf32> to vector<32x8xf32>
    %67 = arith.mulf %46, %66 : vector<32x8xf32>
    %68 = vector.broadcast %65 : vector<1x8xf32> to vector<32x8xf32>
    %69 = arith.addf %67, %68 : vector<32x8xf32>
    %cst_61 = arith.constant 0.000000e+00 : f32
    %70 = vector.broadcast %cst_61 : f32 to vector<32x8xf32>
    %71 = arith.cmpf oge, %69, %70 : vector<32x8xf32>
    %c0_62 = arith.constant 0 : index
    %c0_63 = arith.constant 0 : index
    %72 = vector.load %arg6[%c0_62, %c0_63] : memref<1x8xf32, #tpu.memory_space<vmem>>, vector<1x8xf32>
    %73 = vector.broadcast %72 : vector<1x8xf32> to vector<32x8xf32>
    %74 = arith.mulf %73, %69 : vector<32x8xf32>
    %75 = arith.select %71, %69, %74 : vector<32x8xi1>, vector<32x8xf32>
    %76 = vector.shape_cast %75 : vector<32x8xf32> to vector<8x4x8xf32>
    %c8_64 = arith.constant 8 : index
    %c1_65 = arith.constant 1 : index
    %c8_66 = arith.constant 8 : index
    %77 = vector.load %arg33[%c8_64, %c1_65, %c8_66] : memref<16x6x40xf32, #tpu.memory_space<vmem>>, vector<8x4x8xf32>
    tpu.vector_store %arg33[%c8_64, %c1_65, %c8_66], %76 {strides = array<i32>} : memref<16x6x40xf32, #tpu.memory_space<vmem>>, vector<8x4x8xf32>,
    %c6_67 = arith.constant 6 : index
    %c0_68 = arith.constant 0 : index
    %c0_69 = arith.constant 0 : index
    %78 = vector.load %arg33[%c6_67, %c0_68, %c0_69] : memref<16x6x40xf32, #tpu.memory_space<vmem>>, vector<8x4x16xf32>
    %79 = vector.shape_cast %78 : vector<8x4x16xf32> to vector<32x16xf32>
    %c6_70 = arith.constant 6 : index
    %c1_71 = arith.constant 1 : index
    %c0_72 = arith.constant 0 : index
    %80 = vector.load %arg33[%c6_70, %c1_71, %c0_72] : memref<16x6x40xf32, #tpu.memory_space<vmem>>, vector<8x4x16xf32>
    %81 = vector.shape_cast %80 : vector<8x4x16xf32> to vector<32x16xf32>
    %c6_73 = arith.constant 6 : index
    %c2_74 = arith.constant 2 : index
    %c0_75 = arith.constant 0 : index
    %82 = vector.load %arg33[%c6_73, %c2_74, %c0_75] : memref<16x6x40xf32, #tpu.memory_space<vmem>>, vector<8x4x16xf32>
    %83 = vector.shape_cast %82 : vector<8x4x16xf32> to vector<32x16xf32>
    %c8_76 = arith.constant 8 : index
    %c0_77 = arith.constant 0 : index
    %c0_78 = arith.constant 0 : index
    %84 = vector.load %arg33[%c8_76, %c0_77, %c0_78] : memref<16x6x40xf32, #tpu.memory_space<vmem>>, vector<8x4x16xf32>
    %85 = vector.shape_cast %84 : vector<8x4x16xf32> to vector<32x16xf32>
    %c8_79 = arith.constant 8 : index
    %c1_80 = arith.constant 1 : index
    %c0_81 = arith.constant 0 : index
    %86 = vector.load %arg33[%c8_79, %c1_80, %c0_81] : memref<16x6x40xf32, #tpu.memory_space<vmem>>, vector<8x4x16xf32>
    %87 = vector.shape_cast %86 : vector<8x4x16xf32> to vector<32x16xf32>
    %c8_82 = arith.constant 8 : index
    %c2_83 = arith.constant 2 : index
    %c0_84 = arith.constant 0 : index
    %88 = vector.load %arg33[%c8_82, %c2_83, %c0_84] : memref<16x6x40xf32, #tpu.memory_space<vmem>>, vector<8x4x16xf32>
    %89 = vector.shape_cast %88 : vector<8x4x16xf32> to vector<32x16xf32>
    %90 = tpu.concatenate %79, %81, %83, %85, %87, %89 in 1 : vector<32x16xf32>, vector<32x16xf32>, vector<32x16xf32>, vector<32x16xf32>, vector<32x16xf32>, vector<32x16xf32> -> vector<32x96xf32>
    %91 = arith.truncf %90 : vector<32x96xf32> to vector<32x96xbf16>
    %c0_85 = arith.constant 0 : index
    %c0_86 = arith.constant 0 : index
    %92 = vector.load %arg7[%c0_85, %c0_86] : memref<96x8xbf16, #tpu.memory_space<vmem>>, vector<96x8xbf16>
    %cst_87 = arith.constant dense<0.000000e+00> : vector<32x8xf32>
    %93 = tpu.matmul %91, %92, %cst_87 {dimension_numbers = #tpu.dot_dimension_numbers<[1], [0], [0], [1], [0, 0, 1, 1], [], []>} : vector<32x96xbf16>, vector<96x8xbf16>, vector<32x8xf32> -> vector<32x8xf32>
    %c0_88 = arith.constant 0 : index
    %c0_89 = arith.constant 0 : index
    %94 = vector.load %arg8[%c0_88, %c0_89] : memref<1x8xf32, #tpu.memory_space<vmem>>, vector<1x8xf32>
    %95 = vector.broadcast %94 : vector<1x8xf32> to vector<32x8xf32>
    %96 = arith.addf %93, %95 : vector<32x8xf32>
    %cst_90 = arith.constant dense<0.000000e+00> : vector<8xf32>
    %97 = vector.multi_reduction <add>, %96, %cst_90 [0] : vector<32x8xf32> to vector<8xf32>
    %98 = vector.shape_cast %97 : vector<8xf32> to vector<1x8xf32>
    %cst_91 = arith.constant 3.200000e+01 : f32
    %99 = vector.broadcast %cst_91 : f32 to vector<1x8xf32>
    %100 = arith.divf %98, %99 : vector<1x8xf32>
    %101 = vector.broadcast %100 : vector<1x8xf32> to vector<32x8xf32>
    %102 = arith.subf %96, %101 : vector<32x8xf32>
    %103 = arith.mulf %102, %102 : vector<32x8xf32>
    %cst_92 = arith.constant dense<0.000000e+00> : vector<8xf32>
    %104 = vector.multi_reduction <add>, %103, %cst_92 [0] : vector<32x8xf32> to vector<8xf32>
    %105 = vector.shape_cast %104 : vector<8xf32> to vector<1x8xf32>
    %cst_93 = arith.constant 3.200000e+01 : f32
    %106 = vector.broadcast %cst_93 : f32 to vector<1x8xf32>
    %107 = arith.divf %105, %106 : vector<1x8xf32>
    %c0_94 = arith.constant 0 : index
    %c0_95 = arith.constant 0 : index
    %108 = vector.load %arg9[%c0_94, %c0_95] : memref<1x8xf32, #tpu.memory_space<vmem>>, vector<1x8xf32>
    %c0_96 = arith.constant 0 : index
    %c0_97 = arith.constant 0 : index
    %109 = vector.load %arg10[%c0_96, %c0_97] : memref<1x8xf32, #tpu.memory_space<vmem>>, vector<1x8xf32>
    %cst_98 = arith.constant 9.99999974E-6 : f32
    %110 = vector.broadcast %cst_98 : f32 to vector<1x8xf32>
    %111 = arith.addf %107, %110 : vector<1x8xf32>
    %112 = math.rsqrt %111 : vector<1x8xf32>
    %113 = arith.mulf %112, %108 : vector<1x8xf32>
    %114 = arith.mulf %100, %113 : vector<1x8xf32>
    %115 = arith.subf %109, %114 : vector<1x8xf32>
    %116 = vector.broadcast %113 : vector<1x8xf32> to vector<32x8xf32>
    %117 = arith.mulf %96, %116 : vector<32x8xf32>
    %118 = vector.broadcast %115 : vector<1x8xf32> to vector<32x8xf32>
    %119 = arith.addf %117, %118 : vector<32x8xf32>
    %cst_99 = arith.constant 0.000000e+00 : f32
    %120 = vector.broadcast %cst_99 : f32 to vector<32x8xf32>
    %121 = arith.cmpf oge, %119, %120 : vector<32x8xf32>
    %c0_100 = arith.constant 0 : index
    %c0_101 = arith.constant 0 : index
    %122 = vector.load %arg11[%c0_100, %c0_101] : memref<1x8xf32, #tpu.memory_space<vmem>>, vector<1x8xf32>
    %123 = vector.broadcast %122 : vector<1x8xf32> to vector<32x8xf32>
    %124 = arith.mulf %123, %119 : vector<32x8xf32>
    %125 = arith.select %121, %119, %124 : vector<32x8xi1>, vector<32x8xf32>
    %126 = vector.shape_cast %125 : vector<32x8xf32> to vector<8x4x8xf32>
    %c8_102 = arith.constant 8 : index
    %c1_103 = arith.constant 1 : index
    %c16 = arith.constant 16 : index
    %127 = vector.load %arg33[%c8_102, %c1_103, %c16] : memref<16x6x40xf32, #tpu.memory_space<vmem>>, vector<8x4x8xf32>
    tpu.vector_store %arg33[%c8_102, %c1_103, %c16], %126 {strides = array<i32>} : memref<16x6x40xf32, #tpu.memory_space<vmem>>, vector<8x4x8xf32>,
    %c4_104 = arith.constant 4 : index
    %c0_105 = arith.constant 0 : index
    %c0_106 = arith.constant 0 : index
    %128 = vector.load %arg33[%c4_104, %c0_105, %c0_106] : memref<16x6x40xf32, #tpu.memory_space<vmem>>, vector<8x4x24xf32>
    %129 = vector.shape_cast %128 : vector<8x4x24xf32> to vector<32x24xf32>
    %c4_107 = arith.constant 4 : index
    %c1_108 = arith.constant 1 : index
    %c0_109 = arith.constant 0 : index
    %130 = vector.load %arg33[%c4_107, %c1_108, %c0_109] : memref<16x6x40xf32, #tpu.memory_space<vmem>>, vector<8x4x24xf32>
    %131 = vector.shape_cast %130 : vector<8x4x24xf32> to vector<32x24xf32>
    %c4_110 = arith.constant 4 : index
    %c2_111 = arith.constant 2 : index
    %c0_112 = arith.constant 0 : index
    %132 = vector.load %arg33[%c4_110, %c2_111, %c0_112] : memref<16x6x40xf32, #tpu.memory_space<vmem>>, vector<8x4x24xf32>
    %133 = vector.shape_cast %132 : vector<8x4x24xf32> to vector<32x24xf32>
    %c8_113 = arith.constant 8 : index
    %c0_114 = arith.constant 0 : index
    %c0_115 = arith.constant 0 : index
    %134 = vector.load %arg33[%c8_113, %c0_114, %c0_115] : memref<16x6x40xf32, #tpu.memory_space<vmem>>, vector<8x4x24xf32>
    %135 = vector.shape_cast %134 : vector<8x4x24xf32> to vector<32x24xf32>
    %c8_116 = arith.constant 8 : index
    %c1_117 = arith.constant 1 : index
    %c0_118 = arith.constant 0 : index
    %136 = vector.load %arg33[%c8_116, %c1_117, %c0_118] : memref<16x6x40xf32, #tpu.memory_space<vmem>>, vector<8x4x24xf32>
    %137 = vector.shape_cast %136 : vector<8x4x24xf32> to vector<32x24xf32>
    %c8_119 = arith.constant 8 : index
    %c2_120 = arith.constant 2 : index
    %c0_121 = arith.constant 0 : index
    %138 = vector.load %arg33[%c8_119, %c2_120, %c0_121] : memref<16x6x40xf32, #tpu.memory_space<vmem>>, vector<8x4x24xf32>
    %139 = vector.shape_cast %138 : vector<8x4x24xf32> to vector<32x24xf32>
    %140 = tpu.concatenate %129, %131, %133, %135, %137, %139 in 1 : vector<32x24xf32>, vector<32x24xf32>, vector<32x24xf32>, vector<32x24xf32>, vector<32x24xf32>, vector<32x24xf32> -> vector<32x144xf32>
    %141 = arith.truncf %140 : vector<32x144xf32> to vector<32x144xbf16>
    %c0_122 = arith.constant 0 : index
    %c0_123 = arith.constant 0 : index
    %142 = vector.load %arg12[%c0_122, %c0_123] : memref<144x8xbf16, #tpu.memory_space<vmem>>, vector<144x8xbf16>
    %cst_124 = arith.constant dense<0.000000e+00> : vector<32x8xf32>
    %143 = tpu.matmul %141, %142, %cst_124 {dimension_numbers = #tpu.dot_dimension_numbers<[1], [0], [0], [1], [0, 0, 1, 1], [], []>} : vector<32x144xbf16>, vector<144x8xbf16>, vector<32x8xf32> -> vector<32x8xf32>
    %c0_125 = arith.constant 0 : index
    %c0_126 = arith.constant 0 : index
    %144 = vector.load %arg13[%c0_125, %c0_126] : memref<1x8xf32, #tpu.memory_space<vmem>>, vector<1x8xf32>
    %145 = vector.broadcast %144 : vector<1x8xf32> to vector<32x8xf32>
    %146 = arith.addf %143, %145 : vector<32x8xf32>
    %cst_127 = arith.constant dense<0.000000e+00> : vector<8xf32>
    %147 = vector.multi_reduction <add>, %146, %cst_127 [0] : vector<32x8xf32> to vector<8xf32>
    %148 = vector.shape_cast %147 : vector<8xf32> to vector<1x8xf32>
    %cst_128 = arith.constant 3.200000e+01 : f32
    %149 = vector.broadcast %cst_128 : f32 to vector<1x8xf32>
    %150 = arith.divf %148, %149 : vector<1x8xf32>
    %151 = vector.broadcast %150 : vector<1x8xf32> to vector<32x8xf32>
    %152 = arith.subf %146, %151 : vector<32x8xf32>
    %153 = arith.mulf %152, %152 : vector<32x8xf32>
    %cst_129 = arith.constant dense<0.000000e+00> : vector<8xf32>
    %154 = vector.multi_reduction <add>, %153, %cst_129 [0] : vector<32x8xf32> to vector<8xf32>
    %155 = vector.shape_cast %154 : vector<8xf32> to vector<1x8xf32>
    %cst_130 = arith.constant 3.200000e+01 : f32
    %156 = vector.broadcast %cst_130 : f32 to vector<1x8xf32>
    %157 = arith.divf %155, %156 : vector<1x8xf32>
    %c0_131 = arith.constant 0 : index
    %c0_132 = arith.constant 0 : index
    %158 = vector.load %arg14[%c0_131, %c0_132] : memref<1x8xf32, #tpu.memory_space<vmem>>, vector<1x8xf32>
    %c0_133 = arith.constant 0 : index
    %c0_134 = arith.constant 0 : index
    %159 = vector.load %arg15[%c0_133, %c0_134] : memref<1x8xf32, #tpu.memory_space<vmem>>, vector<1x8xf32>
    %cst_135 = arith.constant 9.99999974E-6 : f32
    %160 = vector.broadcast %cst_135 : f32 to vector<1x8xf32>
    %161 = arith.addf %157, %160 : vector<1x8xf32>
    %162 = math.rsqrt %161 : vector<1x8xf32>
    %163 = arith.mulf %162, %158 : vector<1x8xf32>
    %164 = arith.mulf %150, %163 : vector<1x8xf32>
    %165 = arith.subf %159, %164 : vector<1x8xf32>
    %166 = vector.broadcast %163 : vector<1x8xf32> to vector<32x8xf32>
    %167 = arith.mulf %146, %166 : vector<32x8xf32>
    %168 = vector.broadcast %165 : vector<1x8xf32> to vector<32x8xf32>
    %169 = arith.addf %167, %168 : vector<32x8xf32>
    %cst_136 = arith.constant 0.000000e+00 : f32
    %170 = vector.broadcast %cst_136 : f32 to vector<32x8xf32>
    %171 = arith.cmpf oge, %169, %170 : vector<32x8xf32>
    %c0_137 = arith.constant 0 : index
    %c0_138 = arith.constant 0 : index
    %172 = vector.load %arg16[%c0_137, %c0_138] : memref<1x8xf32, #tpu.memory_space<vmem>>, vector<1x8xf32>
    %173 = vector.broadcast %172 : vector<1x8xf32> to vector<32x8xf32>
    %174 = arith.mulf %173, %169 : vector<32x8xf32>
    %175 = arith.select %171, %169, %174 : vector<32x8xi1>, vector<32x8xf32>
    %176 = vector.shape_cast %175 : vector<32x8xf32> to vector<8x4x8xf32>
    %c8_139 = arith.constant 8 : index
    %c1_140 = arith.constant 1 : index
    %c24 = arith.constant 24 : index
    %177 = vector.load %arg33[%c8_139, %c1_140, %c24] : memref<16x6x40xf32, #tpu.memory_space<vmem>>, vector<8x4x8xf32>
    tpu.vector_store %arg33[%c8_139, %c1_140, %c24], %176 {strides = array<i32>} : memref<16x6x40xf32, #tpu.memory_space<vmem>>, vector<8x4x8xf32>,
    %c0_141 = arith.constant 0 : index
    %c0_142 = arith.constant 0 : index
    %c0_143 = arith.constant 0 : index
    %178 = vector.load %arg33[%c0_141, %c0_142, %c0_143] : memref<16x6x40xf32, #tpu.memory_space<vmem>>, vector<8x4x32xf32>
    %179 = vector.shape_cast %178 : vector<8x4x32xf32> to vector<32x32xf32>
    %c0_144 = arith.constant 0 : index
    %c1_145 = arith.constant 1 : index
    %c0_146 = arith.constant 0 : index
    %180 = vector.load %arg33[%c0_144, %c1_145, %c0_146] : memref<16x6x40xf32, #tpu.memory_space<vmem>>, vector<8x4x32xf32>
    %181 = vector.shape_cast %180 : vector<8x4x32xf32> to vector<32x32xf32>
    %c0_147 = arith.constant 0 : index
    %c2_148 = arith.constant 2 : index
    %c0_149 = arith.constant 0 : index
    %182 = vector.load %arg33[%c0_147, %c2_148, %c0_149] : memref<16x6x40xf32, #tpu.memory_space<vmem>>, vector<8x4x32xf32>
    %183 = vector.shape_cast %182 : vector<8x4x32xf32> to vector<32x32xf32>
    %c8_150 = arith.constant 8 : index
    %c0_151 = arith.constant 0 : index
    %c0_152 = arith.constant 0 : index
    %184 = vector.load %arg33[%c8_150, %c0_151, %c0_152] : memref<16x6x40xf32, #tpu.memory_space<vmem>>, vector<8x4x32xf32>
    %185 = vector.shape_cast %184 : vector<8x4x32xf32> to vector<32x32xf32>
    %c8_153 = arith.constant 8 : index
    %c1_154 = arith.constant 1 : index
    %c0_155 = arith.constant 0 : index
    %186 = vector.load %arg33[%c8_153, %c1_154, %c0_155] : memref<16x6x40xf32, #tpu.memory_space<vmem>>, vector<8x4x32xf32>
    %187 = vector.shape_cast %186 : vector<8x4x32xf32> to vector<32x32xf32>
    %c8_156 = arith.constant 8 : index
    %c2_157 = arith.constant 2 : index
    %c0_158 = arith.constant 0 : index
    %188 = vector.load %arg33[%c8_156, %c2_157, %c0_158] : memref<16x6x40xf32, #tpu.memory_space<vmem>>, vector<8x4x32xf32>
    %189 = vector.shape_cast %188 : vector<8x4x32xf32> to vector<32x32xf32>
    %190 = tpu.concatenate %179, %181, %183, %185, %187, %189 in 1 : vector<32x32xf32>, vector<32x32xf32>, vector<32x32xf32>, vector<32x32xf32>, vector<32x32xf32>, vector<32x32xf32> -> vector<32x192xf32>
    %191 = arith.truncf %190 : vector<32x192xf32> to vector<32x192xbf16>
    %c0_159 = arith.constant 0 : index
    %c0_160 = arith.constant 0 : index
    %192 = vector.load %arg17[%c0_159, %c0_160] : memref<192x8xbf16, #tpu.memory_space<vmem>>, vector<192x8xbf16>
    %cst_161 = arith.constant dense<0.000000e+00> : vector<32x8xf32>
    %193 = tpu.matmul %191, %192, %cst_161 {dimension_numbers = #tpu.dot_dimension_numbers<[1], [0], [0], [1], [0, 0, 1, 1], [], []>} : vector<32x192xbf16>, vector<192x8xbf16>, vector<32x8xf32> -> vector<32x8xf32>
    %c0_162 = arith.constant 0 : index
    %c0_163 = arith.constant 0 : index
    %194 = vector.load %arg18[%c0_162, %c0_163] : memref<1x8xf32, #tpu.memory_space<vmem>>, vector<1x8xf32>
    %195 = vector.broadcast %194 : vector<1x8xf32> to vector<32x8xf32>
    %196 = arith.addf %193, %195 : vector<32x8xf32>
    %cst_164 = arith.constant dense<0.000000e+00> : vector<8xf32>
    %197 = vector.multi_reduction <add>, %196, %cst_164 [0] : vector<32x8xf32> to vector<8xf32>
    %198 = vector.shape_cast %197 : vector<8xf32> to vector<1x8xf32>
    %cst_165 = arith.constant 3.200000e+01 : f32
    %199 = vector.broadcast %cst_165 : f32 to vector<1x8xf32>
    %200 = arith.divf %198, %199 : vector<1x8xf32>
    %201 = vector.broadcast %200 : vector<1x8xf32> to vector<32x8xf32>
    %202 = arith.subf %196, %201 : vector<32x8xf32>
    %203 = arith.mulf %202, %202 : vector<32x8xf32>
    %cst_166 = arith.constant dense<0.000000e+00> : vector<8xf32>
    %204 = vector.multi_reduction <add>, %203, %cst_166 [0] : vector<32x8xf32> to vector<8xf32>
    %205 = vector.shape_cast %204 : vector<8xf32> to vector<1x8xf32>
    %cst_167 = arith.constant 3.200000e+01 : f32
    %206 = vector.broadcast %cst_167 : f32 to vector<1x8xf32>
    %207 = arith.divf %205, %206 : vector<1x8xf32>
    %c0_168 = arith.constant 0 : index
    %c0_169 = arith.constant 0 : index
    %208 = vector.load %arg19[%c0_168, %c0_169] : memref<1x8xf32, #tpu.memory_space<vmem>>, vector<1x8xf32>
    %c0_170 = arith.constant 0 : index
    %c0_171 = arith.constant 0 : index
    %209 = vector.load %arg20[%c0_170, %c0_171] : memref<1x8xf32, #tpu.memory_space<vmem>>, vector<1x8xf32>
    %cst_172 = arith.constant 9.99999974E-6 : f32
    %210 = vector.broadcast %cst_172 : f32 to vector<1x8xf32>
    %211 = arith.addf %207, %210 : vector<1x8xf32>
    %212 = math.rsqrt %211 : vector<1x8xf32>
    %213 = arith.mulf %212, %208 : vector<1x8xf32>
    %214 = arith.mulf %200, %213 : vector<1x8xf32>
    %215 = arith.subf %209, %214 : vector<1x8xf32>
    %216 = vector.broadcast %213 : vector<1x8xf32> to vector<32x8xf32>
    %217 = arith.mulf %196, %216 : vector<32x8xf32>
    %218 = vector.broadcast %215 : vector<1x8xf32> to vector<32x8xf32>
    %219 = arith.addf %217, %218 : vector<32x8xf32>
    %cst_173 = arith.constant 0.000000e+00 : f32
    %220 = vector.broadcast %cst_173 : f32 to vector<32x8xf32>
    %221 = arith.cmpf oge, %219, %220 : vector<32x8xf32>
    %c0_174 = arith.constant 0 : index
    %c0_175 = arith.constant 0 : index
    %222 = vector.load %arg21[%c0_174, %c0_175] : memref<1x8xf32, #tpu.memory_space<vmem>>, vector<1x8xf32>
    %223 = vector.broadcast %222 : vector<1x8xf32> to vector<32x8xf32>
    %224 = arith.mulf %223, %219 : vector<32x8xf32>
    %225 = arith.select %221, %219, %224 : vector<32x8xi1>, vector<32x8xf32>
    %226 = vector.shape_cast %225 : vector<32x8xf32> to vector<8x4x8xf32>
    %c8_176 = arith.constant 8 : index
    %c1_177 = arith.constant 1 : index
    %c32 = arith.constant 32 : index
    %227 = vector.load %arg33[%c8_176, %c1_177, %c32] : memref<16x6x40xf32, #tpu.memory_space<vmem>>, vector<8x4x8xf32>
    tpu.vector_store %arg33[%c8_176, %c1_177, %c32], %226 {strides = array<i32>} : memref<16x6x40xf32, #tpu.memory_space<vmem>>, vector<8x4x8xf32>,
    %c8_178 = arith.constant 8 : index
    %c0_179 = arith.constant 0 : index
    %c32_180 = arith.constant 32 : index
    %228 = vector.load %arg33[%c8_178, %c0_179, %c32_180] : memref<16x6x40xf32, #tpu.memory_space<vmem>>, vector<8x4x8xf32>
    %229 = vector.shape_cast %228 : vector<8x4x8xf32> to vector<32x8xf32>
    %c8_181 = arith.constant 8 : index
    %c1_182 = arith.constant 1 : index
    %c32_183 = arith.constant 32 : index
    %230 = vector.load %arg33[%c8_181, %c1_182, %c32_183] : memref<16x6x40xf32, #tpu.memory_space<vmem>>, vector<8x4x8xf32>
    %231 = vector.shape_cast %230 : vector<8x4x8xf32> to vector<32x8xf32>
    %c8_184 = arith.constant 8 : index
    %c2_185 = arith.constant 2 : index
    %c32_186 = arith.constant 32 : index
    %232 = vector.load %arg33[%c8_184, %c2_185, %c32_186] : memref<16x6x40xf32, #tpu.memory_space<vmem>>, vector<8x4x8xf32>
    %233 = vector.shape_cast %232 : vector<8x4x8xf32> to vector<32x8xf32>
    %234 = tpu.concatenate %229, %231, %233 in 1 : vector<32x8xf32>, vector<32x8xf32>, vector<32x8xf32> -> vector<32x24xf32>
    %235 = arith.truncf %234 : vector<32x24xf32> to vector<32x24xbf16>
    %c0_187 = arith.constant 0 : index
    %c0_188 = arith.constant 0 : index
    %236 = vector.load %arg22[%c0_187, %c0_188] : memref<24x16xbf16, #tpu.memory_space<vmem>>, vector<24x16xbf16>
    %cst_189 = arith.constant dense<0.000000e+00> : vector<32x16xf32>
    %237 = tpu.matmul %235, %236, %cst_189 {dimension_numbers = #tpu.dot_dimension_numbers<[1], [0], [0], [1], [0, 0, 1, 1], [], []>} : vector<32x24xbf16>, vector<24x16xbf16>, vector<32x16xf32> -> vector<32x16xf32>
    %c0_190 = arith.constant 0 : index
    %c0_191 = arith.constant 0 : index
    %238 = vector.load %arg23[%c0_190, %c0_191] : memref<1x16xf32, #tpu.memory_space<vmem>>, vector<1x16xf32>
    %239 = vector.broadcast %238 : vector<1x16xf32> to vector<32x16xf32>
    %240 = arith.addf %237, %239 : vector<32x16xf32>
    %241 = vector.extract_strided_slice %240 {offsets = [0, 0], sizes = [32, 8], strides = [1, 1]} : vector<32x16xf32> to vector<32x8xf32>
    %242 = vector.extract_strided_slice %240 {offsets = [0, 8], sizes = [32, 8], strides = [1, 1]} : vector<32x16xf32> to vector<32x8xf32>
    %cst_192 = arith.constant dense<0.000000e+00> : vector<8xf32>
    %243 = vector.multi_reduction <add>, %241, %cst_192 [0] : vector<32x8xf32> to vector<8xf32>
    %244 = vector.shape_cast %243 : vector<8xf32> to vector<1x8xf32>
    %cst_193 = arith.constant 3.200000e+01 : f32
    %245 = vector.broadcast %cst_193 : f32 to vector<1x8xf32>
    %246 = arith.divf %244, %245 : vector<1x8xf32>
    %cst_194 = arith.constant dense<0.000000e+00> : vector<8xf32>
    %247 = vector.multi_reduction <add>, %242, %cst_194 [0] : vector<32x8xf32> to vector<8xf32>
    %248 = vector.shape_cast %247 : vector<8xf32> to vector<1x8xf32>
    %cst_195 = arith.constant 3.200000e+01 : f32
    %249 = vector.broadcast %cst_195 : f32 to vector<1x8xf32>
    %250 = arith.divf %248, %249 : vector<1x8xf32>
    %251 = arith.addf %246, %250 : vector<1x8xf32>
    %cst_196 = arith.constant 5.000000e-01 : f32
    %252 = vector.broadcast %cst_196 : f32 to vector<1x8xf32>
    %253 = arith.mulf %252, %251 : vector<1x8xf32>
    %254 = vector.broadcast %253 : vector<1x8xf32> to vector<32x8xf32>
    %255 = arith.subf %241, %254 : vector<32x8xf32>
    %256 = arith.mulf %255, %255 : vector<32x8xf32>
    %cst_197 = arith.constant dense<0.000000e+00> : vector<8xf32>
    %257 = vector.multi_reduction <add>, %256, %cst_197 [0] : vector<32x8xf32> to vector<8xf32>
    %258 = vector.shape_cast %257 : vector<8xf32> to vector<1x8xf32>
    %cst_198 = arith.constant 3.200000e+01 : f32
    %259 = vector.broadcast %cst_198 : f32 to vector<1x8xf32>
    %260 = arith.divf %258, %259 : vector<1x8xf32>
    %261 = vector.broadcast %253 : vector<1x8xf32> to vector<32x8xf32>
    %262 = arith.subf %242, %261 : vector<32x8xf32>
    %263 = arith.mulf %262, %262 : vector<32x8xf32>
    %cst_199 = arith.constant dense<0.000000e+00> : vector<8xf32>
    %264 = vector.multi_reduction <add>, %263, %cst_199 [0] : vector<32x8xf32> to vector<8xf32>
    %265 = vector.shape_cast %264 : vector<8xf32> to vector<1x8xf32>
    %cst_200 = arith.constant 3.200000e+01 : f32
    %266 = vector.broadcast %cst_200 : f32 to vector<1x8xf32>
    %267 = arith.divf %265, %266 : vector<1x8xf32>
    %268 = arith.addf %260, %267 : vector<1x8xf32>
    %cst_201 = arith.constant 5.000000e-01 : f32
    %269 = vector.broadcast %cst_201 : f32 to vector<1x8xf32>
    %270 = arith.mulf %269, %268 : vector<1x8xf32>
    %c0_202 = arith.constant 0 : index
    %c0_203 = arith.constant 0 : index
    %271 = vector.load %arg24[%c0_202, %c0_203] : memref<1x8xf32, #tpu.memory_space<vmem>>, vector<1x8xf32>
    %c0_204 = arith.constant 0 : index
    %c0_205 = arith.constant 0 : index
    %272 = vector.load %arg25[%c0_204, %c0_205] : memref<1x8xf32, #tpu.memory_space<vmem>>, vector<1x8xf32>
    %cst_206 = arith.constant 9.99999974E-6 : f32
    %273 = vector.broadcast %cst_206 : f32 to vector<1x8xf32>
    %274 = arith.addf %270, %273 : vector<1x8xf32>
    %275 = math.rsqrt %274 : vector<1x8xf32>
    %276 = arith.mulf %275, %271 : vector<1x8xf32>
    %277 = arith.mulf %253, %276 : vector<1x8xf32>
    %278 = arith.subf %272, %277 : vector<1x8xf32>
    %279 = vector.shape_cast %240 : vector<32x16xf32> to vector<32x2x8xf32>
    %280 = vector.shape_cast %276 : vector<1x8xf32> to vector<1x1x8xf32>
    %281 = vector.broadcast %280 : vector<1x1x8xf32> to vector<32x2x8xf32>
    %282 = arith.mulf %279, %281 : vector<32x2x8xf32>
    %283 = vector.shape_cast %278 : vector<1x8xf32> to vector<1x1x8xf32>
    %284 = vector.broadcast %283 : vector<1x1x8xf32> to vector<32x2x8xf32>
    %285 = arith.addf %282, %284 : vector<32x2x8xf32>
    %cst_207 = arith.constant 0.000000e+00 : f32
    %286 = vector.broadcast %cst_207 : f32 to vector<32x2x8xf32>
    %287 = arith.cmpf oge, %285, %286 : vector<32x2x8xf32>
    %c0_208 = arith.constant 0 : index
    %c0_209 = arith.constant 0 : index
    %288 = vector.load %arg26[%c0_208, %c0_209] : memref<1x8xf32, #tpu.memory_space<vmem>>, vector<1x8xf32>
    %289 = vector.shape_cast %288 : vector<1x8xf32> to vector<1x1x8xf32>
    %290 = vector.broadcast %289 : vector<1x1x8xf32> to vector<32x2x8xf32>
    %291 = arith.mulf %290, %285 : vector<32x2x8xf32>
    %292 = arith.select %287, %285, %291 : vector<32x2x8xi1>, vector<32x2x8xf32>
    %293 = vector.shape_cast %292 : vector<32x2x8xf32> to vector<8x8x8xf32>
    %294 = vector.extract_strided_slice %293 {offsets = [0, 0, 0], sizes = [8, 7, 8], strides = [1, 1, 1]} : vector<8x8x8xf32> to vector<8x7x8xf32>
    %295 = vector.shape_cast %294 : vector<8x7x8xf32> to vector<56x8xf32>
    %296 = vector.extract_strided_slice %293 {offsets = [0, 1, 0], sizes = [8, 7, 8], strides = [1, 1, 1]} : vector<8x8x8xf32> to vector<8x7x8xf32>
    %297 = vector.shape_cast %296 : vector<8x7x8xf32> to vector<56x8xf32>
    %298 = tpu.concatenate %295, %297 in 1 : vector<56x8xf32>, vector<56x8xf32> -> vector<56x16xf32>
    %c0_210 = arith.constant 0 : index
    %c0_211 = arith.constant 0 : index
    %299 = vector.load %arg27[%c0_210, %c0_211] : memref<16x2xf32, #tpu.memory_space<vmem>>, vector<16x2xf32>
    %cst_212 = arith.constant dense<0.000000e+00> : vector<56x2xf32>
    %300 = tpu.matmul %298, %299, %cst_212 {dimension_numbers = #tpu.dot_dimension_numbers<[1], [0], [0], [1], [0, 0, 1, 1], [], []>} : vector<56x16xf32>, vector<16x2xf32>, vector<56x2xf32> -> vector<56x2xf32>
    %c0_213 = arith.constant 0 : index
    %c0_214 = arith.constant 0 : index
    %301 = vector.load %arg28[%c0_213, %c0_214] : memref<1x2xf32, #tpu.memory_space<vmem>>, vector<1x2xf32>
    %302 = vector.broadcast %301 : vector<1x2xf32> to vector<56x2xf32>
    %303 = arith.addf %300, %302 : vector<56x2xf32>
    %304 = vector.shape_cast %303 : vector<56x2xf32> to vector<8x7x2xf32>
    %c0_215 = arith.constant 0 : index
    %c0_216 = arith.constant 0 : index
    %305 = vector.load %arg29[%c0_215, %c0_216] : memref<2x8xf32, #tpu.memory_space<vmem>>, vector<2x8xf32>
    %c0_217 = arith.constant 0 : index
    %c0_218 = arith.constant 0 : index
    %306 = vector.load %arg30[%c0_217, %c0_218] : memref<2x1xf32, #tpu.memory_space<vmem>>, vector<2x1xf32>
    %307 = vector.extract_strided_slice %304 {offsets = [0, 0, 0], sizes = [8, 7, 1], strides = [1, 1, 1]} : vector<8x7x2xf32> to vector<8x7x1xf32>
    %308 = vector.shape_cast %307 : vector<8x7x1xf32> to vector<8x7xf32>
    %cst_219 = arith.constant dense<0.000000e+00> : vector<2x7xf32>
    %309 = tpu.matmul %305, %308, %cst_219 {dimension_numbers = #tpu.dot_dimension_numbers<[1], [0], [0], [1], [0, 0, 1, 1], [], []>} : vector<2x8xf32>, vector<8x7xf32>, vector<2x7xf32> -> vector<2x7xf32>
    %310 = vector.broadcast %306 : vector<2x1xf32> to vector<2x7xf32>
    %311 = arith.addf %309, %310 : vector<2x7xf32>
    %312 = vector.extract_strided_slice %311 {offsets = [0, 0], sizes = [1, 7], strides = [1, 1]} : vector<2x7xf32> to vector<1x7xf32>
    %c0_220 = arith.constant 0 : index
    %c0_221 = arith.constant 0 : index
    %c0_222 = arith.constant 0 : index
    %c0_223 = arith.constant 0 : index
    %313 = vector.load %arg31[%c0_220, %c0_221, %c0_222, %c0_223] : memref<1x2x7x1xf32, #tpu.memory_space<vmem>>, vector<1x1x7x1xf32>
    %314 = vector.shape_cast %313 : vector<1x1x7x1xf32> to vector<1x7xf32>
    %315 = vector.shape_cast %312 : vector<1x7xf32> to vector<1x1x7x1xf32>
    tpu.vector_store %arg31[%c0_220, %c0_221, %c0_222, %c0_223], %315 {strides = array<i32>} : memref<1x2x7x1xf32, #tpu.memory_space<vmem>>, vector<1x1x7x1xf32>,
    %316 = vector.extract_strided_slice %311 {offsets = [1, 0], sizes = [1, 7], strides = [1, 1]} : vector<2x7xf32> to vector<1x7xf32>
    %c0_224 = arith.constant 0 : index
    %c0_225 = arith.constant 0 : index
    %c0_226 = arith.constant 0 : index
    %c0_227 = arith.constant 0 : index
    %317 = vector.load %arg32[%c0_224, %c0_225, %c0_226, %c0_227] : memref<1x2x7x1xf32, #tpu.memory_space<vmem>>, vector<1x1x7x1xf32>
    %318 = vector.shape_cast %317 : vector<1x1x7x1xf32> to vector<1x7xf32>
    %319 = vector.shape_cast %316 : vector<1x7xf32> to vector<1x1x7x1xf32>
    tpu.vector_store %arg32[%c0_224, %c0_225, %c0_226, %c0_227], %319 {strides = array<i32>} : memref<1x2x7x1xf32, #tpu.memory_space<vmem>>, vector<1x1x7x1xf32>,
    %320 = vector.extract_strided_slice %304 {offsets = [0, 0, 1], sizes = [8, 7, 1], strides = [1, 1, 1]} : vector<8x7x2xf32> to vector<8x7x1xf32>
    %321 = vector.shape_cast %320 : vector<8x7x1xf32> to vector<8x7xf32>
    %cst_228 = arith.constant dense<0.000000e+00> : vector<2x7xf32>
    %322 = tpu.matmul %305, %321, %cst_228 {dimension_numbers = #tpu.dot_dimension_numbers<[1], [0], [0], [1], [0, 0, 1, 1], [], []>} : vector<2x8xf32>, vector<8x7xf32>, vector<2x7xf32> -> vector<2x7xf32>
    %323 = vector.broadcast %306 : vector<2x1xf32> to vector<2x7xf32>
    %324 = arith.addf %322, %323 : vector<2x7xf32>
    %325 = vector.extract_strided_slice %324 {offsets = [0, 0], sizes = [1, 7], strides = [1, 1]} : vector<2x7xf32> to vector<1x7xf32>
    %c0_229 = arith.constant 0 : index
    %c1_230 = arith.constant 1 : index
    %c0_231 = arith.constant 0 : index
    %c0_232 = arith.constant 0 : index
    %326 = vector.load %arg31[%c0_229, %c1_230, %c0_231, %c0_232] : memref<1x2x7x1xf32, #tpu.memory_space<vmem>>, vector<1x1x7x1xf32>
    %327 = vector.shape_cast %326 : vector<1x1x7x1xf32> to vector<1x7xf32>
    %328 = vector.shape_cast %325 : vector<1x7xf32> to vector<1x1x7x1xf32>
    tpu.vector_store %arg31[%c0_229, %c1_230, %c0_231, %c0_232], %328 {strides = array<i32>} : memref<1x2x7x1xf32, #tpu.memory_space<vmem>>, vector<1x1x7x1xf32>,
    %329 = vector.extract_strided_slice %324 {offsets = [1, 0], sizes = [1, 7], strides = [1, 1]} : vector<2x7xf32> to vector<1x7xf32>
    %c0_233 = arith.constant 0 : index
    %c1_234 = arith.constant 1 : index
    %c0_235 = arith.constant 0 : index
    %c0_236 = arith.constant 0 : index
    %330 = vector.load %arg32[%c0_233, %c1_234, %c0_235, %c0_236] : memref<1x2x7x1xf32, #tpu.memory_space<vmem>>, vector<1x1x7x1xf32>
    %331 = vector.shape_cast %330 : vector<1x1x7x1xf32> to vector<1x7xf32>
    %332 = vector.shape_cast %329 : vector<1x7xf32> to vector<1x1x7x1xf32>
    tpu.vector_store %arg32[%c0_233, %c1_234, %c0_235, %c0_236], %332 {strides = array<i32>} : memref<1x2x7x1xf32, #tpu.memory_space<vmem>>, vector<1x1x7x1xf32>,
    return
  }
  func.func @transform_0(%arg0: i32) -> (i32, i32, i32, i32) {
    %c0_i32 = arith.constant 0 : i32
    %c0_i32_0 = arith.constant 0 : i32
    %c0_i32_1 = arith.constant 0 : i32
    %c0_i32_2 = arith.constant 0 : i32
    return %arg0, %c0_i32, %c0_i32_0, %c0_i32_1 : i32, i32, i32, i32
  }
  func.func @transform_1(%arg0: i32) -> (i32, i32) {
    %c0_i32 = arith.constant 0 : i32
    %c0_i32_0 = arith.constant 0 : i32
    %c0_i32_1 = arith.constant 0 : i32
    return %c0_i32, %c0_i32_0 : i32, i32
  }
  func.func @transform_2(%arg0: i32) -> (i32, i32) {
    %c0_i32 = arith.constant 0 : i32
    %c0_i32_0 = arith.constant 0 : i32
    %c0_i32_1 = arith.constant 0 : i32
    return %c0_i32, %c0_i32_0 : i32, i32
  }
  func.func @transform_3(%arg0: i32) -> (i32, i32) {
    %c0_i32 = arith.constant 0 : i32
    %c0_i32_0 = arith.constant 0 : i32
    %c0_i32_1 = arith.constant 0 : i32
    return %c0_i32, %c0_i32_0 : i32, i32
  }
  func.func @transform_4(%arg0: i32) -> (i32, i32) {
    %c0_i32 = arith.constant 0 : i32
    %c0_i32_0 = arith.constant 0 : i32
    %c0_i32_1 = arith.constant 0 : i32
    return %c0_i32, %c0_i32_0 : i32, i32
  }
  func.func @transform_5(%arg0: i32) -> (i32, i32) {
    %c0_i32 = arith.constant 0 : i32
    %c0_i32_0 = arith.constant 0 : i32
    %c0_i32_1 = arith.constant 0 : i32
    return %c0_i32, %c0_i32_0 : i32, i32
  }
  func.func @transform_6(%arg0: i32) -> (i32, i32) {
    %c0_i32 = arith.constant 0 : i32
    %c0_i32_0 = arith.constant 0 : i32
    %c0_i32_1 = arith.constant 0 : i32
    return %c0_i32, %c0_i32_0 : i32, i32
  }
  func.func @transform_7(%arg0: i32) -> (i32, i32) {
    %c0_i32 = arith.constant 0 : i32
    %c0_i32_0 = arith.constant 0 : i32
    %c0_i32_1 = arith.constant 0 : i32
    return %c0_i32, %c0_i32_0 : i32, i32
  }
  func.func @transform_8(%arg0: i32) -> (i32, i32) {
    %c0_i32 = arith.constant 0 : i32
    %c0_i32_0 = arith.constant 0 : i32
    %c0_i32_1 = arith.constant 0 : i32
    return %c0_i32, %c0_i32_0 : i32, i32
  }
  func.func @transform_9(%arg0: i32) -> (i32, i32) {
    %c0_i32 = arith.constant 0 : i32
    %c0_i32_0 = arith.constant 0 : i32
    %c0_i32_1 = arith.constant 0 : i32
    return %c0_i32, %c0_i32_0 : i32, i32
  }
  func.func @transform_10(%arg0: i32) -> (i32, i32) {
    %c0_i32 = arith.constant 0 : i32
    %c0_i32_0 = arith.constant 0 : i32
    %c0_i32_1 = arith.constant 0 : i32
    return %c0_i32, %c0_i32_0 : i32, i32
  }
  func.func @transform_11(%arg0: i32) -> (i32, i32) {
    %c0_i32 = arith.constant 0 : i32
    %c0_i32_0 = arith.constant 0 : i32
    %c0_i32_1 = arith.constant 0 : i32
    return %c0_i32, %c0_i32_0 : i32, i32
  }
  func.func @transform_12(%arg0: i32) -> (i32, i32) {
    %c0_i32 = arith.constant 0 : i32
    %c0_i32_0 = arith.constant 0 : i32
    %c0_i32_1 = arith.constant 0 : i32
    return %c0_i32, %c0_i32_0 : i32, i32
  }
  func.func @transform_13(%arg0: i32) -> (i32, i32) {
    %c0_i32 = arith.constant 0 : i32
    %c0_i32_0 = arith.constant 0 : i32
    %c0_i32_1 = arith.constant 0 : i32
    return %c0_i32, %c0_i32_0 : i32, i32
  }
  func.func @transform_14(%arg0: i32) -> (i32, i32) {
    %c0_i32 = arith.constant 0 : i32
    %c0_i32_0 = arith.constant 0 : i32
    %c0_i32_1 = arith.constant 0 : i32
    return %c0_i32, %c0_i32_0 : i32, i32
  }
  func.func @transform_15(%arg0: i32) -> (i32, i32) {
    %c0_i32 = arith.constant 0 : i32
    %c0_i32_0 = arith.constant 0 : i32
    %c0_i32_1 = arith.constant 0 : i32
    return %c0_i32, %c0_i32_0 : i32, i32
  }
  func.func @transform_16(%arg0: i32) -> (i32, i32) {
    %c0_i32 = arith.constant 0 : i32
    %c0_i32_0 = arith.constant 0 : i32
    %c0_i32_1 = arith.constant 0 : i32
    return %c0_i32, %c0_i32_0 : i32, i32
  }
  func.func @transform_17(%arg0: i32) -> (i32, i32) {
    %c0_i32 = arith.constant 0 : i32
    %c0_i32_0 = arith.constant 0 : i32
    %c0_i32_1 = arith.constant 0 : i32
    return %c0_i32, %c0_i32_0 : i32, i32
  }
  func.func @transform_18(%arg0: i32) -> (i32, i32) {
    %c0_i32 = arith.constant 0 : i32
    %c0_i32_0 = arith.constant 0 : i32
    %c0_i32_1 = arith.constant 0 : i32
    return %c0_i32, %c0_i32_0 : i32, i32
  }
  func.func @transform_19(%arg0: i32) -> (i32, i32) {
    %c0_i32 = arith.constant 0 : i32
    %c0_i32_0 = arith.constant 0 : i32
    %c0_i32_1 = arith.constant 0 : i32
    return %c0_i32, %c0_i32_0 : i32, i32
  }
  func.func @transform_20(%arg0: i32) -> (i32, i32) {
    %c0_i32 = arith.constant 0 : i32
    %c0_i32_0 = arith.constant 0 : i32
    %c0_i32_1 = arith.constant 0 : i32
    return %c0_i32, %c0_i32_0 : i32, i32
  }
  func.func @transform_21(%arg0: i32) -> (i32, i32) {
    %c0_i32 = arith.constant 0 : i32
    %c0_i32_0 = arith.constant 0 : i32
    %c0_i32_1 = arith.constant 0 : i32
    return %c0_i32, %c0_i32_0 : i32, i32
  }
  func.func @transform_22(%arg0: i32) -> (i32, i32) {
    %c0_i32 = arith.constant 0 : i32
    %c0_i32_0 = arith.constant 0 : i32
    %c0_i32_1 = arith.constant 0 : i32
    return %c0_i32, %c0_i32_0 : i32, i32
  }
  func.func @transform_23(%arg0: i32) -> (i32, i32) {
    %c0_i32 = arith.constant 0 : i32
    %c0_i32_0 = arith.constant 0 : i32
    %c0_i32_1 = arith.constant 0 : i32
    return %c0_i32, %c0_i32_0 : i32, i32
  }
  func.func @transform_24(%arg0: i32) -> (i32, i32) {
    %c0_i32 = arith.constant 0 : i32
    %c0_i32_0 = arith.constant 0 : i32
    %c0_i32_1 = arith.constant 0 : i32
    return %c0_i32, %c0_i32_0 : i32, i32
  }
  func.func @transform_25(%arg0: i32) -> (i32, i32) {
    %c0_i32 = arith.constant 0 : i32
    %c0_i32_0 = arith.constant 0 : i32
    %c0_i32_1 = arith.constant 0 : i32
    return %c0_i32, %c0_i32_0 : i32, i32
  }
  func.func @transform_26(%arg0: i32) -> (i32, i32) {
    %c0_i32 = arith.constant 0 : i32
    %c0_i32_0 = arith.constant 0 : i32
    %c0_i32_1 = arith.constant 0 : i32
    return %c0_i32, %c0_i32_0 : i32, i32
  }
  func.func @transform_27(%arg0: i32) -> (i32, i32) {
    %c0_i32 = arith.constant 0 : i32
    %c0_i32_0 = arith.constant 0 : i32
    %c0_i32_1 = arith.constant 0 : i32
    return %c0_i32, %c0_i32_0 : i32, i32
  }
  func.func @transform_28(%arg0: i32) -> (i32, i32) {
    %c0_i32 = arith.constant 0 : i32
    %c0_i32_0 = arith.constant 0 : i32
    %c0_i32_1 = arith.constant 0 : i32
    return %c0_i32, %c0_i32_0 : i32, i32
  }
  func.func @transform_29(%arg0: i32) -> (i32, i32) {
    %c0_i32 = arith.constant 0 : i32
    %c0_i32_0 = arith.constant 0 : i32
    %c0_i32_1 = arith.constant 0 : i32
    return %c0_i32, %c0_i32_0 : i32, i32
  }
  func.func @transform_30(%arg0: i32) -> (i32, i32, i32, i32) {
    %c0_i32 = arith.constant 0 : i32
    %c0_i32_0 = arith.constant 0 : i32
    %c0_i32_1 = arith.constant 0 : i32
    %c0_i32_2 = arith.constant 0 : i32
    return %arg0, %c0_i32, %c0_i32_0, %c0_i32_1 : i32, i32, i32, i32
  }
  func.func @transform_31(%arg0: i32) -> (i32, i32, i32, i32) {
    %c0_i32 = arith.constant 0 : i32
    %c0_i32_0 = arith.constant 0 : i32
    %c0_i32_1 = arith.constant 0 : i32
    %c0_i32_2 = arith.constant 0 : i32
    return %arg0, %c0_i32, %c0_i32_0, %c0_i32_1 : i32, i32, i32, i32
  }
}

</mosaic_0001>

<llo_original>
// kernel: complex_decoder_forward.1
$region0: #{complex_decoder_forward.1}
  #allocation0 [shape = 'u32[]', space=smem, size = 0x4, offset = 0x4, fixed_abs, tag = 'smem constant byte address 0x4 - core index']
  #allocation1 [shape = 'u32[144,128]{1,0:T(1,128)}', space=vmem, size = 0x12000, scoped, tag = 'internal scratch']
  #allocation2 [shape = 'f32[16,6,40]{2,1,0:T(8,128)}', space=vmem, size = 0x10000, scoped, tag = 'scratch operand']
  %s0 = inlined_call_operand.smem [shape: u32[32], index: -1, kind: input, shape index: {}]
  %s1 = sld [smem:[%s0]]
  %s2 = scalar_lea.smem %s0, 1
  %s3 = sld [smem:[%s2]]
  %s4 = scalar_lea.smem %s0, 2
  %s5 = sld [smem:[%s4]]
  %s6 = scalar_lea.smem %s0, 3
  %s7 = sld [smem:[%s6]]
  %s8 = scalar_lea.smem %s0, 4
  %s9 = sld [smem:[%s8]]
  %s10 = scalar_lea.smem %s0, 5
  %s11 = sld [smem:[%s10]]
  %s12 = scalar_lea.smem %s0, 6
  %s13 = sld [smem:[%s12]]
  %s14 = scalar_lea.smem %s0, 7
  %s15 = sld [smem:[%s14]]
  %s16 = scalar_lea.smem %s0, 8
  %s17 = sld [smem:[%s16]]
  %s18 = scalar_lea.smem %s0, 9
  %s19 = sld [smem:[%s18]]
  %s20 = scalar_lea.smem %s0, 10
  %s21 = sld [smem:[%s20]]
  %s22 = scalar_lea.smem %s0, 11
  %s23 = sld [smem:[%s22]]
  %s24 = scalar_lea.smem %s0, 12
  %s25 = sld [smem:[%s24]]
  %s26 = scalar_lea.smem %s0, 13
  %s27 = sld [smem:[%s26]]
  %s28 = scalar_lea.smem %s0, 14
  %s29 = sld [smem:[%s28]]
  %s30 = scalar_lea.smem %s0, 15
  %s31 = sld [smem:[%s30]]
  %s32 = scalar_lea.smem %s0, 16
  %s33 = sld [smem:[%s32]]
  %s34 = scalar_lea.smem %s0, 17
  %s35 = sld [smem:[%s34]]
  %s36 = scalar_lea.smem %s0, 18
  %s37 = sld [smem:[%s36]]
  %s38 = scalar_lea.smem %s0, 19
  %s39 = sld [smem:[%s38]]
  %s40 = scalar_lea.smem %s0, 20
  %s41 = sld [smem:[%s40]]
  %s42 = scalar_lea.smem %s0, 21
  %s43 = sld [smem:[%s42]]
  %s44 = scalar_lea.smem %s0, 22
  %s45 = sld [smem:[%s44]]
  %s46 = scalar_lea.smem %s0, 23
  %s47 = sld [smem:[%s46]]
  %s48 = scalar_lea.smem %s0, 24
  %s49 = sld [smem:[%s48]]
  %s50 = scalar_lea.smem %s0, 25
  %s51 = sld [smem:[%s50]]
  %s52 = scalar_lea.smem %s0, 26
  %s53 = sld [smem:[%s52]]
  %s54 = scalar_lea.smem %s0, 27
  %s55 = sld [smem:[%s54]]
  %s56 = scalar_lea.smem %s0, 28
  %s57 = sld [smem:[%s56]]
  %s58 = scalar_lea.smem %s0, 29
  %s59 = sld [smem:[%s58]]
  %s60 = scalar_lea.smem %s0, 30
  %s61 = sld [smem:[%s60]]
  %s62 = scalar_lea.smem %s0, 31
  %s63 = sld [smem:[%s62]]
  %64 = xla_tuple %s61, %s63
  %s65 = sld [smem:[#allocation0]]
  $region161: #{complex_decoder_forward.1} parent=0
    _
  %s67 = ssub.s32 1, %s65
  %s68 = scalar_select 0, %s67, %s65
  loop: start=0, step=1, limit=4
  $region2: #{complex_decoder_forward.1} parent=0 // loop_pre_header
    _
  $region3: #{complex_decoder_forward.1} parent=0 // loop_header
    %s70 = sphi 0, %s74
    %p71 = scmp.ge.s32.totalorder %s70, 4
    %s80 = sphi 0, %s82
    %s83 = sphi 0, %s80
    %s84 = sphi 0, %s83
    %s100 = sphi 0, %s84
    %s104 = sphi 0, %s104
    %s106 = sphi 0, %s104
    %s107 = sphi 0, %s106
    %s121 = sphi 0, %s107
    %s125 = sphi 0, %s125
    %s127 = sphi 0, %s125
    %s128 = sphi 0, %s127
    %s142 = sphi 0, %s128
    %s146 = sphi 0, %s146
    %s148 = sphi 0, %s146
    %s149 = sphi 0, %s148
    %s163 = sphi 0, %s149
    %s167 = sphi 0, %s167
    %s169 = sphi 0, %s167
    %s170 = sphi 0, %s169
    %s184 = sphi 0, %s170
    %s188 = sphi 0, %s188
    %s190 = sphi 0, %s188
    %s191 = sphi 0, %s190
    %s205 = sphi 0, %s191
    %s209 = sphi 0, %s209
    %s211 = sphi 0, %s209
    %s212 = sphi 0, %s211
    %s226 = sphi 0, %s212
    %s230 = sphi 0, %s230
    %s232 = sphi 0, %s230
    %s233 = sphi 0, %s232
    %s247 = sphi 0, %s233
    %s251 = sphi 0, %s251
    %s253 = sphi 0, %s251
    %s254 = sphi 0, %s253
    %s268 = sphi 0, %s254
    %s272 = sphi 0, %s272
    %s274 = sphi 0, %s272
    %s275 = sphi 0, %s274
    %s289 = sphi 0, %s275
    %s293 = sphi 0, %s293
    %s295 = sphi 0, %s293
    %s296 = sphi 0, %s295
    %s310 = sphi 0, %s296
    %s314 = sphi 0, %s314
    %s316 = sphi 0, %s314
    %s317 = sphi 0, %s316
    %s331 = sphi 0, %s317
    %s335 = sphi 0, %s335
    %s337 = sphi 0, %s335
    %s338 = sphi 0, %s337
    %s352 = sphi 0, %s338
    %s356 = sphi 0, %s356
    %s358 = sphi 0, %s356
    %s359 = sphi 0, %s358
    %s373 = sphi 0, %s359
    %s377 = sphi 0, %s377
    %s379 = sphi 0, %s377
    %s380 = sphi 0, %s379
    %s394 = sphi 0, %s380
    %s398 = sphi 0, %s398
    %s400 = sphi 0, %s398
    %s401 = sphi 0, %s400
    %s415 = sphi 0, %s401
    %s419 = sphi 0, %s419
    %s421 = sphi 0, %s419
    %s422 = sphi 0, %s421
    %s436 = sphi 0, %s422
    %s440 = sphi 0, %s440
    %s442 = sphi 0, %s440
    %s443 = sphi 0, %s442
    %s457 = sphi 0, %s443
    %s461 = sphi 0, %s461
    %s463 = sphi 0, %s461
    %s464 = sphi 0, %s463
    %s478 = sphi 0, %s464
    %s482 = sphi 0, %s482
    %s484 = sphi 0, %s482
    %s485 = sphi 0, %s484
    %s499 = sphi 0, %s485
    %s503 = sphi 0, %s503
    %s505 = sphi 0, %s503
    %s506 = sphi 0, %s505
    %s520 = sphi 0, %s506
    %s524 = sphi 0, %s524
    %s526 = sphi 0, %s524
    %s527 = sphi 0, %s526
    %s541 = sphi 0, %s527
    %s545 = sphi 0, %s545
    %s547 = sphi 0, %s545
    %s548 = sphi 0, %s547
    %s562 = sphi 0, %s548
    %s566 = sphi 0, %s566
    %s568 = sphi 0, %s566
    %s569 = sphi 0, %s568
    %s583 = sphi 0, %s569
    %s587 = sphi 0, %s587
    %s589 = sphi 0, %s587
    %s590 = sphi 0, %s589
    %s604 = sphi 0, %s590
    %s608 = sphi 0, %s608
    %s610 = sphi 0, %s608
    %s611 = sphi 0, %s610
    %s625 = sphi 0, %s611
    %s629 = sphi 0, %s629
    %s631 = sphi 0, %s629
    %s632 = sphi 0, %s631
    %s646 = sphi 0, %s632
    %s650 = sphi 0, %s650
    %s652 = sphi 0, %s650
    %s653 = sphi 0, %s652
    %s667 = sphi 0, %s653
    %s671 = sphi 0, %s671
    %s673 = sphi 0, %s671
    %s674 = sphi 0, %s673
    %s688 = sphi 0, %s674
    %s692 = sphi 0, %s692
    %s694 = sphi 0, %s692
    %s695 = sphi 0, %s694
    %s709 = sphi 0, %s695
    %s715 = sphi 0, %s717
    %s718 = sphi 0, %s715
    %s719 = sphi 0, %s718
    %s735 = sphi 0, %s719
    %s741 = sphi 0, %s743
    %s744 = sphi 0, %s741
    %s745 = sphi 0, %s744
    %s761 = sphi 0, %s745
  $region4: #{complex_decoder_forward.1} parent=0 // loop_header_branch
    %73 = sbr.rel (%p71) target = $region8
  $region5: #{complex_decoder_forward.1} parent=0 // loop_body
    %s75 = ssub.s32 %s70, 1
    %s76 = ssub.s32 %s70, 2
    %s77 = sadd.s32 %s70, 1
    %s78 = ssub.s32 %s70, %s77
    %p79 = scmp.eq.s32.totalorder %s78, 0
    %s81 = sadd.s32 %s80, 1
    %s82 = scalar_select %p79, %s80, %s81
    %p85 = pneg %p79
    %p86 = scmp.eq.s32.totalorder %s70, 1
    %p87 = por %p85, %p86
    %p88 = scmp.ne.s32.totalorder %s80, %s83
    %p89 = scmp.eq.s32.totalorder %s70, 0
    %p90 = por %p88, %p89
    %p91 = scmp.ne.s32.totalorder %s80, %s83
    %p92 = scmp.eq.s32.totalorder %s75, 1
    %p93 = por %p91, %p92
    %p94 = scmp.ne.s32.totalorder %s83, %s84
    %p95 = scmp.eq.s32.totalorder %s75, 0
    %p96 = por %p94, %p95
    %p97 = scmp.ne.s32.totalorder %s83, %s84
    %p98 = scmp.eq.s32.totalorder %s76, 1
    %p99 = por %p97, %p98
    %p101 = scmp.ne.s32.totalorder %s84, %s100
    %p102 = scmp.eq.s32.totalorder %s76, 0
    %p103 = por %p101, %p102
    %s105 = sadd.s32 %s104, 1
    %p108 = scmp.eq.s32.totalorder %s70, 1
    %p109 = scmp.ne.s32.totalorder %s104, %s106
    %p110 = scmp.eq.s32.totalorder %s70, 0
    %p111 = por %p109, %p110
    %p112 = scmp.ne.s32.totalorder %s104, %s106
    %p113 = scmp.eq.s32.totalorder %s75, 1
    %p114 = por %p112, %p113
    %p115 = scmp.ne.s32.totalorder %s106, %s107
    %p116 = scmp.eq.s32.totalorder %s75, 0
    %p117 = por %p115, %p116
    %p118 = scmp.ne.s32.totalorder %s106, %s107
    %p119 = scmp.eq.s32.totalorder %s76, 1
    %p120 = por %p118, %p119
    %p122 = scmp.ne.s32.totalorder %s107, %s121
    %p123 = scmp.eq.s32.totalorder %s76, 0
    %p124 = por %p122, %p123
    %s126 = sadd.s32 %s125, 1
    %p129 = scmp.eq.s32.totalorder %s70, 1
    %p130 = scmp.ne.s32.totalorder %s125, %s127
    %p131 = scmp.eq.s32.totalorder %s70, 0
    %p132 = por %p130, %p131
    %p133 = scmp.ne.s32.totalorder %s125, %s127
    %p134 = scmp.eq.s32.totalorder %s75, 1
    %p135 = por %p133, %p134
    %p136 = scmp.ne.s32.totalorder %s127, %s128
    %p137 = scmp.eq.s32.totalorder %s75, 0
    %p138 = por %p136, %p137
    %p139 = scmp.ne.s32.totalorder %s127, %s128
    %p140 = scmp.eq.s32.totalorder %s76, 1
    %p141 = por %p139, %p140
    %p143 = scmp.ne.s32.totalorder %s128, %s142
    %p144 = scmp.eq.s32.totalorder %s76, 0
    %p145 = por %p143, %p144
    %s147 = sadd.s32 %s146, 1
    %p150 = scmp.eq.s32.totalorder %s70, 1
    %p151 = scmp.ne.s32.totalorder %s146, %s148
    %p152 = scmp.eq.s32.totalorder %s70, 0
    %p153 = por %p151, %p152
    %p154 = scmp.ne.s32.totalorder %s146, %s148
    %p155 = scmp.eq.s32.totalorder %s75, 1
    %p156 = por %p154, %p155
    %p157 = scmp.ne.s32.totalorder %s148, %s149
    %p158 = scmp.eq.s32.totalorder %s75, 0
    %p159 = por %p157, %p158
    %p160 = scmp.ne.s32.totalorder %s148, %s149
    %p161 = scmp.eq.s32.totalorder %s76, 1
    %p162 = por %p160, %p161
    %p164 = scmp.ne.s32.totalorder %s149, %s163
    %p165 = scmp.eq.s32.totalorder %s76, 0
    %p166 = por %p164, %p165
    %s168 = sadd.s32 %s167, 1
    %p171 = scmp.eq.s32.totalorder %s70, 1
    %p172 = scmp.ne.s32.totalorder %s167, %s169
    %p173 = scmp.eq.s32.totalorder %s70, 0
    %p174 = por %p172, %p173
    %p175 = scmp.ne.s32.totalorder %s167, %s169
    %p176 = scmp.eq.s32.totalorder %s75, 1
    %p177 = por %p175, %p176
    %p178 = scmp.ne.s32.totalorder %s169, %s170
    %p179 = scmp.eq.s32.totalorder %s75, 0
    %p180 = por %p178, %p179
    %p181 = scmp.ne.s32.totalorder %s169, %s170
    %p182 = scmp.eq.s32.totalorder %s76, 1
    %p183 = por %p181, %p182
    %p185 = scmp.ne.s32.totalorder %s170, %s184
    %p186 = scmp.eq.s32.totalorder %s76, 0
    %p187 = por %p185, %p186
    %s189 = sadd.s32 %s188, 1
    %p192 = scmp.eq.s32.totalorder %s70, 1
    %p193 = scmp.ne.s32.totalorder %s188, %s190
    %p194 = scmp.eq.s32.totalorder %s70, 0
    %p195 = por %p193, %p194
    %p196 = scmp.ne.s32.totalorder %s188, %s190
    %p197 = scmp.eq.s32.totalorder %s75, 1
    %p198 = por %p196, %p197
    %p199 = scmp.ne.s32.totalorder %s190, %s191
    %p200 = scmp.eq.s32.totalorder %s75, 0
    %p201 = por %p199, %p200
    %p202 = scmp.ne.s32.totalorder %s190, %s191
    %p203 = scmp.eq.s32.totalorder %s76, 1
    %p204 = por %p202, %p203
    %p206 = scmp.ne.s32.totalorder %s191, %s205
    %p207 = scmp.eq.s32.totalorder %s76, 0
    %p208 = por %p206, %p207
    %s210 = sadd.s32 %s209, 1
    %p213 = scmp.eq.s32.totalorder %s70, 1
    %p214 = scmp.ne.s32.totalorder %s209, %s211
    %p215 = scmp.eq.s32.totalorder %s70, 0
    %p216 = por %p214, %p215
    %p217 = scmp.ne.s32.totalorder %s209, %s211
    %p218 = scmp.eq.s32.totalorder %s75, 1
    %p219 = por %p217, %p218
    %p220 = scmp.ne.s32.totalorder %s211, %s212
    %p221 = scmp.eq.s32.totalorder %s75, 0
    %p222 = por %p220, %p221
    %p223 = scmp.ne.s32.totalorder %s211, %s212
    %p224 = scmp.eq.s32.totalorder %s76, 1
    %p225 = por %p223, %p224
    %p227 = scmp.ne.s32.totalorder %s212, %s226
    %p228 = scmp.eq.s32.totalorder %s76, 0
    %p229 = por %p227, %p228
    %s231 = sadd.s32 %s230, 1
    %p234 = scmp.eq.s32.totalorder %s70, 1
    %p235 = scmp.ne.s32.totalorder %s230, %s232
    %p236 = scmp.eq.s32.totalorder %s70, 0
    %p237 = por %p235, %p236
    %p238 = scmp.ne.s32.totalorder %s230, %s232
    %p239 = scmp.eq.s32.totalorder %s75, 1
    %p240 = por %p238, %p239
    %p241 = scmp.ne.s32.totalorder %s232, %s233
    %p242 = scmp.eq.s32.totalorder %s75, 0
    %p243 = por %p241, %p242
    %p244 = scmp.ne.s32.totalorder %s232, %s233
    %p245 = scmp.eq.s32.totalorder %s76, 1
    %p246 = por %p244, %p245
    %p248 = scmp.ne.s32.totalorder %s233, %s247
    %p249 = scmp.eq.s32.totalorder %s76, 0
    %p250 = por %p248, %p249
    %s252 = sadd.s32 %s251, 1
    %p255 = scmp.eq.s32.totalorder %s70, 1
    %p256 = scmp.ne.s32.totalorder %s251, %s253
    %p257 = scmp.eq.s32.totalorder %s70, 0
    %p258 = por %p256, %p257
    %p259 = scmp.ne.s32.totalorder %s251, %s253
    %p260 = scmp.eq.s32.totalorder %s75, 1
    %p261 = por %p259, %p260
    %p262 = scmp.ne.s32.totalorder %s253, %s254
    %p263 = scmp.eq.s32.totalorder %s75, 0
    %p264 = por %p262, %p263
    %p265 = scmp.ne.s32.totalorder %s253, %s254
    %p266 = scmp.eq.s32.totalorder %s76, 1
    %p267 = por %p265, %p266
    %p269 = scmp.ne.s32.totalorder %s254, %s268
    %p270 = scmp.eq.s32.totalorder %s76, 0
    %p271 = por %p269, %p270
    %s273 = sadd.s32 %s272, 1
    %p276 = scmp.eq.s32.totalorder %s70, 1
    %p277 = scmp.ne.s32.totalorder %s272, %s274
    %p278 = scmp.eq.s32.totalorder %s70, 0
    %p279 = por %p277, %p278
    %p280 = scmp.ne.s32.totalorder %s272, %s274
    %p281 = scmp.eq.s32.totalorder %s75, 1
    %p282 = por %p280, %p281
    %p283 = scmp.ne.s32.totalorder %s274, %s275
    %p284 = scmp.eq.s32.totalorder %s75, 0
    %p285 = por %p283, %p284
    %p286 = scmp.ne.s32.totalorder %s274, %s275
    %p287 = scmp.eq.s32.totalorder %s76, 1
    %p288 = por %p286, %p287
    %p290 = scmp.ne.s32.totalorder %s275, %s289
    %p291 = scmp.eq.s32.totalorder %s76, 0
    %p292 = por %p290, %p291
    %s294 = sadd.s32 %s293, 1
    %p297 = scmp.eq.s32.totalorder %s70, 1
    %p298 = scmp.ne.s32.totalorder %s293, %s295
    %p299 = scmp.eq.s32.totalorder %s70, 0
    %p300 = por %p298, %p299
    %p301 = scmp.ne.s32.totalorder %s293, %s295
    %p302 = scmp.eq.s32.totalorder %s75, 1
    %p303 = por %p301, %p302
    %p304 = scmp.ne.s32.totalorder %s295, %s296
    %p305 = scmp.eq.s32.totalorder %s75, 0
    %p306 = por %p304, %p305
    %p307 = scmp.ne.s32.totalorder %s295, %s296
    %p308 = scmp.eq.s32.totalorder %s76, 1
    %p309 = por %p307, %p308
    %p311 = scmp.ne.s32.totalorder %s296, %s310
    %p312 = scmp.eq.s32.totalorder %s76, 0
    %p313 = por %p311, %p312
    %s315 = sadd.s32 %s314, 1
    %p318 = scmp.eq.s32.totalorder %s70, 1
    %p319 = scmp.ne.s32.totalorder %s314, %s316
    %p320 = scmp.eq.s32.totalorder %s70, 0
    %p321 = por %p319, %p320
    %p322 = scmp.ne.s32.totalorder %s314, %s316
    %p323 = scmp.eq.s32.totalorder %s75, 1
    %p324 = por %p322, %p323
    %p325 = scmp.ne.s32.totalorder %s316, %s317
    %p326 = scmp.eq.s32.totalorder %s75, 0
    %p327 = por %p325, %p326
    %p328 = scmp.ne.s32.totalorder %s316, %s317
    %p329 = scmp.eq.s32.totalorder %s76, 1
    %p330 = por %p328, %p329
    %p332 = scmp.ne.s32.totalorder %s317, %s331
    %p333 = scmp.eq.s32.totalorder %s76, 0
    %p334 = por %p332, %p333
    %s336 = sadd.s32 %s335, 1
    %p339 = scmp.eq.s32.totalorder %s70, 1
    %p340 = scmp.ne.s32.totalorder %s335, %s337
    %p341 = scmp.eq.s32.totalorder %s70, 0
    %p342 = por %p340, %p341
    %p343 = scmp.ne.s32.totalorder %s335, %s337
    %p344 = scmp.eq.s32.totalorder %s75, 1
    %p345 = por %p343, %p344
    %p346 = scmp.ne.s32.totalorder %s337, %s338
    %p347 = scmp.eq.s32.totalorder %s75, 0
    %p348 = por %p346, %p347
    %p349 = scmp.ne.s32.totalorder %s337, %s338
    %p350 = scmp.eq.s32.totalorder %s76, 1
    %p351 = por %p349, %p350
    %p353 = scmp.ne.s32.totalorder %s338, %s352
    %p354 = scmp.eq.s32.totalorder %s76, 0
    %p355 = por %p353, %p354
    %s357 = sadd.s32 %s356, 1
    %p360 = scmp.eq.s32.totalorder %s70, 1
    %p361 = scmp.ne.s32.totalorder %s356, %s358
    %p362 = scmp.eq.s32.totalorder %s70, 0
    %p363 = por %p361, %p362
    %p364 = scmp.ne.s32.totalorder %s356, %s358
    %p365 = scmp.eq.s32.totalorder %s75, 1
    %p366 = por %p364, %p365
    %p367 = scmp.ne.s32.totalorder %s358, %s359
    %p368 = scmp.eq.s32.totalorder %s75, 0
    %p369 = por %p367, %p368
    %p370 = scmp.ne.s32.totalorder %s358, %s359
    %p371 = scmp.eq.s32.totalorder %s76, 1
    %p372 = por %p370, %p371
    %p374 = scmp.ne.s32.totalorder %s359, %s373
    %p375 = scmp.eq.s32.totalorder %s76, 0
    %p376 = por %p374, %p375
    %s378 = sadd.s32 %s377, 1
    %p381 = scmp.eq.s32.totalorder %s70, 1
    %p382 = scmp.ne.s32.totalorder %s377, %s379
    %p383 = scmp.eq.s32.totalorder %s70, 0
    %p384 = por %p382, %p383
    %p385 = scmp.ne.s32.totalorder %s377, %s379
    %p386 = scmp.eq.s32.totalorder %s75, 1
    %p387 = por %p385, %p386
    %p388 = scmp.ne.s32.totalorder %s379, %s380
    %p389 = scmp.eq.s32.totalorder %s75, 0
    %p390 = por %p388, %p389
    %p391 = scmp.ne.s32.totalorder %s379, %s380
    %p392 = scmp.eq.s32.totalorder %s76, 1
    %p393 = por %p391, %p392
    %p395 = scmp.ne.s32.totalorder %s380, %s394
    %p396 = scmp.eq.s32.totalorder %s76, 0
    %p397 = por %p395, %p396
    %s399 = sadd.s32 %s398, 1
    %p402 = scmp.eq.s32.totalorder %s70, 1
    %p403 = scmp.ne.s32.totalorder %s398, %s400
    %p404 = scmp.eq.s32.totalorder %s70, 0
    %p405 = por %p403, %p404
    %p406 = scmp.ne.s32.totalorder %s398, %s400
    %p407 = scmp.eq.s32.totalorder %s75, 1
    %p408 = por %p406, %p407
    %p409 = scmp.ne.s32.totalorder %s400, %s401
    %p410 = scmp.eq.s32.totalorder %s75, 0
    %p411 = por %p409, %p410
    %p412 = scmp.ne.s32.totalorder %s400, %s401
    %p413 = scmp.eq.s32.totalorder %s76, 1
    %p414 = por %p412, %p413
    %p416 = scmp.ne.s32.totalorder %s401, %s415
    %p417 = scmp.eq.s32.totalorder %s76, 0
    %p418 = por %p416, %p417
    %s420 = sadd.s32 %s419, 1
    %p423 = scmp.eq.s32.totalorder %s70, 1
    %p424 = scmp.ne.s32.totalorder %s419, %s421
    %p425 = scmp.eq.s32.totalorder %s70, 0
    %p426 = por %p424, %p425
    %p427 = scmp.ne.s32.totalorder %s419, %s421
    %p428 = scmp.eq.s32.totalorder %s75, 1
    %p429 = por %p427, %p428
    %p430 = scmp.ne.s32.totalorder %s421, %s422
    %p431 = scmp.eq.s32.totalorder %s75, 0
    %p432 = por %p430, %p431
    %p433 = scmp.ne.s32.totalorder %s421, %s422
    %p434 = scmp.eq.s32.totalorder %s76, 1
    %p435 = por %p433, %p434
    %p437 = scmp.ne.s32.totalorder %s422, %s436
    %p438 = scmp.eq.s32.totalorder %s76, 0
    %p439 = por %p437, %p438
    %s441 = sadd.s32 %s440, 1
    %p444 = scmp.eq.s32.totalorder %s70, 1
    %p445 = scmp.ne.s32.totalorder %s440, %s442
    %p446 = scmp.eq.s32.totalorder %s70, 0
    %p447 = por %p445, %p446
    %p448 = scmp.ne.s32.totalorder %s440, %s442
    %p449 = scmp.eq.s32.totalorder %s75, 1
    %p450 = por %p448, %p449
    %p451 = scmp.ne.s32.totalorder %s442, %s443
    %p452 = scmp.eq.s32.totalorder %s75, 0
    %p453 = por %p451, %p452
    %p454 = scmp.ne.s32.totalorder %s442, %s443
    %p455 = scmp.eq.s32.totalorder %s76, 1
    %p456 = por %p454, %p455
    %p458 = scmp.ne.s32.totalorder %s443, %s457
    %p459 = scmp.eq.s32.totalorder %s76, 0
    %p460 = por %p458, %p459
    %s462 = sadd.s32 %s461, 1
    %p465 = scmp.eq.s32.totalorder %s70, 1
    %p466 = scmp.ne.s32.totalorder %s461, %s463
    %p467 = scmp.eq.s32.totalorder %s70, 0
    %p468 = por %p466, %p467
    %p469 = scmp.ne.s32.totalorder %s461, %s463
    %p470 = scmp.eq.s32.totalorder %s75, 1
    %p471 = por %p469, %p470
    %p472 = scmp.ne.s32.totalorder %s463, %s464
    %p473 = scmp.eq.s32.totalorder %s75, 0
    %p474 = por %p472, %p473
    %p475 = scmp.ne.s32.totalorder %s463, %s464
    %p476 = scmp.eq.s32.totalorder %s76, 1
    %p477 = por %p475, %p476
    %p479 = scmp.ne.s32.totalorder %s464, %s478
    %p480 = scmp.eq.s32.totalorder %s76, 0
    %p481 = por %p479, %p480
    %s483 = sadd.s32 %s482, 1
    %p486 = scmp.eq.s32.totalorder %s70, 1
    %p487 = scmp.ne.s32.totalorder %s482, %s484
    %p488 = scmp.eq.s32.totalorder %s70, 0
    %p489 = por %p487, %p488
    %p490 = scmp.ne.s32.totalorder %s482, %s484
    %p491 = scmp.eq.s32.totalorder %s75, 1
    %p492 = por %p490, %p491
    %p493 = scmp.ne.s32.totalorder %s484, %s485
    %p494 = scmp.eq.s32.totalorder %s75, 0
    %p495 = por %p493, %p494
    %p496 = scmp.ne.s32.totalorder %s484, %s485
    %p497 = scmp.eq.s32.totalorder %s76, 1
    %p498 = por %p496, %p497
    %p500 = scmp.ne.s32.totalorder %s485, %s499
    %p501 = scmp.eq.s32.totalorder %s76, 0
    %p502 = por %p500, %p501
    %s504 = sadd.s32 %s503, 1
    %p507 = scmp.eq.s32.totalorder %s70, 1
    %p508 = scmp.ne.s32.totalorder %s503, %s505
    %p509 = scmp.eq.s32.totalorder %s70, 0
    %p510 = por %p508, %p509
    %p511 = scmp.ne.s32.totalorder %s503, %s505
    %p512 = scmp.eq.s32.totalorder %s75, 1
    %p513 = por %p511, %p512
    %p514 = scmp.ne.s32.totalorder %s505, %s506
    %p515 = scmp.eq.s32.totalorder %s75, 0
    %p516 = por %p514, %p515
    %p517 = scmp.ne.s32.totalorder %s505, %s506
    %p518 = scmp.eq.s32.totalorder %s76, 1
    %p519 = por %p517, %p518
    %p521 = scmp.ne.s32.totalorder %s506, %s520
    %p522 = scmp.eq.s32.totalorder %s76, 0
    %p523 = por %p521, %p522
    %s525 = sadd.s32 %s524, 1
    %p528 = scmp.eq.s32.totalorder %s70, 1
    %p529 = scmp.ne.s32.totalorder %s524, %s526
    %p530 = scmp.eq.s32.totalorder %s70, 0
    %p531 = por %p529, %p530
    %p532 = scmp.ne.s32.totalorder %s524, %s526
    %p533 = scmp.eq.s32.totalorder %s75, 1
    %p534 = por %p532, %p533
    %p535 = scmp.ne.s32.totalorder %s526, %s527
    %p536 = scmp.eq.s32.totalorder %s75, 0
    %p537 = por %p535, %p536
    %p538 = scmp.ne.s32.totalorder %s526, %s527
    %p539 = scmp.eq.s32.totalorder %s76, 1
    %p540 = por %p538, %p539
    %p542 = scmp.ne.s32.totalorder %s527, %s541
    %p543 = scmp.eq.s32.totalorder %s76, 0
    %p544 = por %p542, %p543
    %s546 = sadd.s32 %s545, 1
    %p549 = scmp.eq.s32.totalorder %s70, 1
    %p550 = scmp.ne.s32.totalorder %s545, %s547
    %p551 = scmp.eq.s32.totalorder %s70, 0
    %p552 = por %p550, %p551
    %p553 = scmp.ne.s32.totalorder %s545, %s547
    %p554 = scmp.eq.s32.totalorder %s75, 1
    %p555 = por %p553, %p554
    %p556 = scmp.ne.s32.totalorder %s547, %s548
    %p557 = scmp.eq.s32.totalorder %s75, 0
    %p558 = por %p556, %p557
    %p559 = scmp.ne.s32.totalorder %s547, %s548
    %p560 = scmp.eq.s32.totalorder %s76, 1
    %p561 = por %p559, %p560
    %p563 = scmp.ne.s32.totalorder %s548, %s562
    %p564 = scmp.eq.s32.totalorder %s76, 0
    %p565 = por %p563, %p564
    %s567 = sadd.s32 %s566, 1
    %p570 = scmp.eq.s32.totalorder %s70, 1
    %p571 = scmp.ne.s32.totalorder %s566, %s568
    %p572 = scmp.eq.s32.totalorder %s70, 0
    %p573 = por %p571, %p572
    %p574 = scmp.ne.s32.totalorder %s566, %s568
    %p575 = scmp.eq.s32.totalorder %s75, 1
    %p576 = por %p574, %p575
    %p577 = scmp.ne.s32.totalorder %s568, %s569
    %p578 = scmp.eq.s32.totalorder %s75, 0
    %p579 = por %p577, %p578
    %p580 = scmp.ne.s32.totalorder %s568, %s569
    %p581 = scmp.eq.s32.totalorder %s76, 1
    %p582 = por %p580, %p581
    %p584 = scmp.ne.s32.totalorder %s569, %s583
    %p585 = scmp.eq.s32.totalorder %s76, 0
    %p586 = por %p584, %p585
    %s588 = sadd.s32 %s587, 1
    %p591 = scmp.eq.s32.totalorder %s70, 1
    %p592 = scmp.ne.s32.totalorder %s587, %s589
    %p593 = scmp.eq.s32.totalorder %s70, 0
    %p594 = por %p592, %p593
    %p595 = scmp.ne.s32.totalorder %s587, %s589
    %p596 = scmp.eq.s32.totalorder %s75, 1
    %p597 = por %p595, %p596
    %p598 = scmp.ne.s32.totalorder %s589, %s590
    %p599 = scmp.eq.s32.totalorder %s75, 0
    %p600 = por %p598, %p599
    %p601 = scmp.ne.s32.totalorder %s589, %s590
    %p602 = scmp.eq.s32.totalorder %s76, 1
    %p603 = por %p601, %p602
    %p605 = scmp.ne.s32.totalorder %s590, %s604
    %p606 = scmp.eq.s32.totalorder %s76, 0
    %p607 = por %p605, %p606
    %s609 = sadd.s32 %s608, 1
    %p612 = scmp.eq.s32.totalorder %s70, 1
    %p613 = scmp.ne.s32.totalorder %s608, %s610
    %p614 = scmp.eq.s32.totalorder %s70, 0
    %p615 = por %p613, %p614
    %p616 = scmp.ne.s32.totalorder %s608, %s610
    %p617 = scmp.eq.s32.totalorder %s75, 1
    %p618 = por %p616, %p617
    %p619 = scmp.ne.s32.totalorder %s610, %s611
    %p620 = scmp.eq.s32.totalorder %s75, 0
    %p621 = por %p619, %p620
    %p622 = scmp.ne.s32.totalorder %s610, %s611
    %p623 = scmp.eq.s32.totalorder %s76, 1
    %p624 = por %p622, %p623
    %p626 = scmp.ne.s32.totalorder %s611, %s625
    %p627 = scmp.eq.s32.totalorder %s76, 0
    %p628 = por %p626, %p627
    %s630 = sadd.s32 %s629, 1
    %p633 = scmp.eq.s32.totalorder %s70, 1
    %p634 = scmp.ne.s32.totalorder %s629, %s631
    %p635 = scmp.eq.s32.totalorder %s70, 0
    %p636 = por %p634, %p635
    %p637 = scmp.ne.s32.totalorder %s629, %s631
    %p638 = scmp.eq.s32.totalorder %s75, 1
    %p639 = por %p637, %p638
    %p640 = scmp.ne.s32.totalorder %s631, %s632
    %p641 = scmp.eq.s32.totalorder %s75, 0
    %p642 = por %p640, %p641
    %p643 = scmp.ne.s32.totalorder %s631, %s632
    %p644 = scmp.eq.s32.totalorder %s76, 1
    %p645 = por %p643, %p644
    %p647 = scmp.ne.s32.totalorder %s632, %s646
    %p648 = scmp.eq.s32.totalorder %s76, 0
    %p649 = por %p647, %p648
    %s651 = sadd.s32 %s650, 1
    %p654 = scmp.eq.s32.totalorder %s70, 1
    %p655 = scmp.ne.s32.totalorder %s650, %s652
    %p656 = scmp.eq.s32.totalorder %s70, 0
    %p657 = por %p655, %p656
    %p658 = scmp.ne.s32.totalorder %s650, %s652
    %p659 = scmp.eq.s32.totalorder %s75, 1
    %p660 = por %p658, %p659
    %p661 = scmp.ne.s32.totalorder %s652, %s653
    %p662 = scmp.eq.s32.totalorder %s75, 0
    %p663 = por %p661, %p662
    %p664 = scmp.ne.s32.totalorder %s652, %s653
    %p665 = scmp.eq.s32.totalorder %s76, 1
    %p666 = por %p664, %p665
    %p668 = scmp.ne.s32.totalorder %s653, %s667
    %p669 = scmp.eq.s32.totalorder %s76, 0
    %p670 = por %p668, %p669
    %s672 = sadd.s32 %s671, 1
    %p675 = scmp.eq.s32.totalorder %s70, 1
    %p676 = scmp.ne.s32.totalorder %s671, %s673
    %p677 = scmp.eq.s32.totalorder %s70, 0
    %p678 = por %p676, %p677
    %p679 = scmp.ne.s32.totalorder %s671, %s673
    %p680 = scmp.eq.s32.totalorder %s75, 1
    %p681 = por %p679, %p680
    %p682 = scmp.ne.s32.totalorder %s673, %s674
    %p683 = scmp.eq.s32.totalorder %s75, 0
    %p684 = por %p682, %p683
    %p685 = scmp.ne.s32.totalorder %s673, %s674
    %p686 = scmp.eq.s32.totalorder %s76, 1
    %p687 = por %p685, %p686
    %p689 = scmp.ne.s32.totalorder %s674, %s688
    %p690 = scmp.eq.s32.totalorder %s76, 0
    %p691 = por %p689, %p690
    %s693 = sadd.s32 %s692, 1
    %p696 = scmp.eq.s32.totalorder %s70, 1
    %p697 = scmp.ne.s32.totalorder %s692, %s694
    %p698 = scmp.eq.s32.totalorder %s70, 0
    %p699 = por %p697, %p698
    %p700 = scmp.ne.s32.totalorder %s692, %s694
    %p701 = scmp.eq.s32.totalorder %s75, 1
    %p702 = por %p700, %p701
    %p703 = scmp.ne.s32.totalorder %s694, %s695
    %p704 = scmp.eq.s32.totalorder %s75, 0
    %p705 = por %p703, %p704
    %p706 = scmp.ne.s32.totalorder %s694, %s695
    %p707 = scmp.eq.s32.totalorder %s76, 1
    %p708 = por %p706, %p707
    %p710 = scmp.ne.s32.totalorder %s695, %s709
    %p711 = scmp.eq.s32.totalorder %s76, 0
    %p712 = por %p710, %p711
    %s713 = ssub.s32 %s70, %s77
    %p714 = scmp.eq.s32.totalorder %s713, 0
    %s716 = sadd.s32 %s715, 1
    %s717 = scalar_select %p714, %s715, %s716
    %p720 = pneg %p714
    %p721 = scmp.eq.s32.totalorder %s70, 1
    %p722 = por %p720, %p721
    %p723 = scmp.ne.s32.totalorder %s715, %s718
    %p724 = scmp.eq.s32.totalorder %s70, 0
    %p725 = por %p723, %p724
    %p726 = scmp.ne.s32.totalorder %s715, %s718
    %p727 = scmp.eq.s32.totalorder %s75, 1
    %p728 = por %p726, %p727
    %p729 = scmp.ne.s32.totalorder %s718, %s719
    %p730 = scmp.eq.s32.totalorder %s75, 0
    %p731 = por %p729, %p730
    %p732 = scmp.ne.s32.totalorder %s718, %s719
    %p733 = scmp.eq.s32.totalorder %s76, 1
    %p734 = por %p732, %p733
    %p736 = scmp.ne.s32.totalorder %s719, %s735
    %p737 = scmp.eq.s32.totalorder %s76, 0
    %p738 = por %p736, %p737
    %s739 = ssub.s32 %s70, %s77
    %p740 = scmp.eq.s32.totalorder %s739, 0
    %s742 = sadd.s32 %s741, 1
    %s743 = scalar_select %p740, %s741, %s742
    %p746 = pneg %p740
    %p747 = scmp.eq.s32.totalorder %s70, 1
    %p748 = por %p746, %p747
    %p749 = scmp.ne.s32.totalorder %s741, %s744
    %p750 = scmp.eq.s32.totalorder %s70, 0
    %p751 = por %p749, %p750
    %p752 = scmp.ne.s32.totalorder %s741, %s744
    %p753 = scmp.eq.s32.totalorder %s75, 1
    %p754 = por %p752, %p753
    %p755 = scmp.ne.s32.totalorder %s744, %s745
    %p756 = scmp.eq.s32.totalorder %s75, 0
    %p757 = por %p755, %p756
    %p758 = scmp.ne.s32.totalorder %s744, %s745
    %p759 = scmp.eq.s32.totalorder %s76, 1
    %p760 = por %p758, %p759
    %p762 = scmp.ne.s32.totalorder %s745, %s761
    %p763 = scmp.eq.s32.totalorder %s76, 0
    %p764 = por %p762, %p763
    %p765 = scmp.le.s32.totalorder 1, %s70
    %p766 = scmp.lt.s32.totalorder %s70, 3
    %p767 = pnand %p765, %p766
    %p768 = pneg %p767
    // Predicated region
    $region9: #{complex_decoder_forward.1} parent=5 // pred_check
      _
    $region10: #{complex_decoder_forward.1} parent=5 // pred_check_branch
      %770 = sbr.rel (%p767) target = $region12
    $region11: #{complex_decoder_forward.1} parent=5 // pred_region
      %s771 = ssub.s32 %s70, 1
      // Predicated region
      $region13: #{complex_decoder_forward.1} parent=11 // pred_check
        %p772 = pneg %p117
      $region14: #{complex_decoder_forward.1} parent=11 // pred_check_branch
        %774 = sbr.rel (%p772) target = $region16
      $region15: #{complex_decoder_forward.1} parent=11 // pred_region
        _
      $region16: #{complex_decoder_forward.1} parent=11 // pred_fallthru
        _
      // Predicated region
      $region17: #{complex_decoder_forward.1} parent=11 // pred_check
        %p775 = pneg %p138
      $region18: #{complex_decoder_forward.1} parent=11 // pred_check_branch
        %777 = sbr.rel (%p775) target = $region20
      $region19: #{complex_decoder_forward.1} parent=11 // pred_region
        _
      $region20: #{complex_decoder_forward.1} parent=11 // pred_fallthru
        _
      // Predicated region
      $region21: #{complex_decoder_forward.1} parent=11 // pred_check
        %p778 = pneg %p159
      $region22: #{complex_decoder_forward.1} parent=11 // pred_check_branch
        %780 = sbr.rel (%p778) target = $region24
      $region23: #{complex_decoder_forward.1} parent=11 // pred_region
        _
      $region24: #{complex_decoder_forward.1} parent=11 // pred_fallthru
        _
      // Predicated region
      $region25: #{complex_decoder_forward.1} parent=11 // pred_check
        %p781 = pneg %p180
      $region26: #{complex_decoder_forward.1} parent=11 // pred_check_branch
        %783 = sbr.rel (%p781) target = $region28
      $region27: #{complex_decoder_forward.1} parent=11 // pred_region
        _
      $region28: #{complex_decoder_forward.1} parent=11 // pred_fallthru
        _
      // Predicated region
      $region29: #{complex_decoder_forward.1} parent=11 // pred_check
        %p784 = pneg %p201
      $region30: #{complex_decoder_forward.1} parent=11 // pred_check_branch
        %786 = sbr.rel (%p784) target = $region32
      $region31: #{complex_decoder_forward.1} parent=11 // pred_region
        _
      $region32: #{complex_decoder_forward.1} parent=11 // pred_fallthru
        _
      // Predicated region
      $region33: #{complex_decoder_forward.1} parent=11 // pred_check
        %p787 = pneg %p222
      $region34: #{complex_decoder_forward.1} parent=11 // pred_check_branch
        %789 = sbr.rel (%p787) target = $region36
      $region35: #{complex_decoder_forward.1} parent=11 // pred_region
        _
      $region36: #{complex_decoder_forward.1} parent=11 // pred_fallthru
        _
      // Predicated region
      $region37: #{complex_decoder_forward.1} parent=11 // pred_check
        %p790 = pneg %p243
      $region38: #{complex_decoder_forward.1} parent=11 // pred_check_branch
        %792 = sbr.rel (%p790) target = $region40
      $region39: #{complex_decoder_forward.1} parent=11 // pred_region
        _
      $region40: #{complex_decoder_forward.1} parent=11 // pred_fallthru
        _
      // Predicated region
      $region41: #{complex_decoder_forward.1} parent=11 // pred_check
        %p793 = pneg %p264
      $region42: #{complex_decoder_forward.1} parent=11 // pred_check_branch
        %795 = sbr.rel (%p793) target = $region44
      $region43: #{complex_decoder_forward.1} parent=11 // pred_region
        _
      $region44: #{complex_decoder_forward.1} parent=11 // pred_fallthru
        _
      // Predicated region
      $region45: #{complex_decoder_forward.1} parent=11 // pred_check
        %p796 = pneg %p285
      $region46: #{complex_decoder_forward.1} parent=11 // pred_check_branch
        %798 = sbr.rel (%p796) target = $region48
      $region47: #{complex_decoder_forward.1} parent=11 // pred_region
        _
      $region48: #{complex_decoder_forward.1} parent=11 // pred_fallthru
        _
      // Predicated region
      $region49: #{complex_decoder_forward.1} parent=11 // pred_check
        %p799 = pneg %p306
      $region50: #{complex_decoder_forward.1} parent=11 // pred_check_branch
        %801 = sbr.rel (%p799) target = $region52
      $region51: #{complex_decoder_forward.1} parent=11 // pred_region
        _
      $region52: #{complex_decoder_forward.1} parent=11 // pred_fallthru
        _
      // Predicated region
      $region53: #{complex_decoder_forward.1} parent=11 // pred_check
        %p802 = pneg %p327
      $region54: #{complex_decoder_forward.1} parent=11 // pred_check_branch
        %804 = sbr.rel (%p802) target = $region56
      $region55: #{complex_decoder_forward.1} parent=11 // pred_region
        _
      $region56: #{complex_decoder_forward.1} parent=11 // pred_fallthru
        _
      // Predicated region
      $region57: #{complex_decoder_forward.1} parent=11 // pred_check
        %p805 = pneg %p348
      $region58: #{complex_decoder_forward.1} parent=11 // pred_check_branch
        %807 = sbr.rel (%p805) target = $region60
      $region59: #{complex_decoder_forward.1} parent=11 // pred_region
        _
      $region60: #{complex_decoder_forward.1} parent=11 // pred_fallthru
        _
      // Predicated region
      $region61: #{complex_decoder_forward.1} parent=11 // pred_check
        %p808 = pneg %p369
      $region62: #{complex_decoder_forward.1} parent=11 // pred_check_branch
        %810 = sbr.rel (%p808) target = $region64
      $region63: #{complex_decoder_forward.1} parent=11 // pred_region
        _
      $region64: #{complex_decoder_forward.1} parent=11 // pred_fallthru
        _
      // Predicated region
      $region65: #{complex_decoder_forward.1} parent=11 // pred_check
        %p811 = pneg %p390
      $region66: #{complex_decoder_forward.1} parent=11 // pred_check_branch
        %813 = sbr.rel (%p811) target = $region68
      $region67: #{complex_decoder_forward.1} parent=11 // pred_region
        _
      $region68: #{complex_decoder_forward.1} parent=11 // pred_fallthru
        _
      // Predicated region
      $region69: #{complex_decoder_forward.1} parent=11 // pred_check
        %p814 = pneg %p411
      $region70: #{complex_decoder_forward.1} parent=11 // pred_check_branch
        %816 = sbr.rel (%p814) target = $region72
      $region71: #{complex_decoder_forward.1} parent=11 // pred_region
        _
      $region72: #{complex_decoder_forward.1} parent=11 // pred_fallthru
        _
      // Predicated region
      $region73: #{complex_decoder_forward.1} parent=11 // pred_check
        %p817 = pneg %p432
      $region74: #{complex_decoder_forward.1} parent=11 // pred_check_branch
        %819 = sbr.rel (%p817) target = $region76
      $region75: #{complex_decoder_forward.1} parent=11 // pred_region
        _
      $region76: #{complex_decoder_forward.1} parent=11 // pred_fallthru
        _
      // Predicated region
      $region77: #{complex_decoder_forward.1} parent=11 // pred_check
        %p820 = pneg %p453
      $region78: #{complex_decoder_forward.1} parent=11 // pred_check_branch
        %822 = sbr.rel (%p820) target = $region80
      $region79: #{complex_decoder_forward.1} parent=11 // pred_region
        _
      $region80: #{complex_decoder_forward.1} parent=11 // pred_fallthru
        _
      // Predicated region
      $region81: #{complex_decoder_forward.1} parent=11 // pred_check
        %p823 = pneg %p474
      $region82: #{complex_decoder_forward.1} parent=11 // pred_check_branch
        %825 = sbr.rel (%p823) target = $region84
      $region83: #{complex_decoder_forward.1} parent=11 // pred_region
        _
      $region84: #{complex_decoder_forward.1} parent=11 // pred_fallthru
        _
      // Predicated region
      $region85: #{complex_decoder_forward.1} parent=11 // pred_check
        %p826 = pneg %p495
      $region86: #{complex_decoder_forward.1} parent=11 // pred_check_branch
        %828 = sbr.rel (%p826) target = $region88
      $region87: #{complex_decoder_forward.1} parent=11 // pred_region
        _
      $region88: #{complex_decoder_forward.1} parent=11 // pred_fallthru
        _
      // Predicated region
      $region89: #{complex_decoder_forward.1} parent=11 // pred_check
        %p829 = pneg %p516
      $region90: #{complex_decoder_forward.1} parent=11 // pred_check_branch
        %831 = sbr.rel (%p829) target = $region92
      $region91: #{complex_decoder_forward.1} parent=11 // pred_region
        _
      $region92: #{complex_decoder_forward.1} parent=11 // pred_fallthru
        _
      // Predicated region
      $region93: #{complex_decoder_forward.1} parent=11 // pred_check
        %p832 = pneg %p537
      $region94: #{complex_decoder_forward.1} parent=11 // pred_check_branch
        %834 = sbr.rel (%p832) target = $region96
      $region95: #{complex_decoder_forward.1} parent=11 // pred_region
        _
      $region96: #{complex_decoder_forward.1} parent=11 // pred_fallthru
        _
      // Predicated region
      $region97: #{complex_decoder_forward.1} parent=11 // pred_check
        %p835 = pneg %p558
      $region98: #{complex_decoder_forward.1} parent=11 // pred_check_branch
        %837 = sbr.rel (%p835) target = $region100
      $region99: #{complex_decoder_forward.1} parent=11 // pred_region
        _
      $region100: #{complex_decoder_forward.1} parent=11 // pred_fallthru
        _
      // Predicated region
      $region101: #{complex_decoder_forward.1} parent=11 // pred_check
        %p838 = pneg %p579
      $region102: #{complex_decoder_forward.1} parent=11 // pred_check_branch
        %840 = sbr.rel (%p838) target = $region104
      $region103: #{complex_decoder_forward.1} parent=11 // pred_region
        _
      $region104: #{complex_decoder_forward.1} parent=11 // pred_fallthru
        _
      // Predicated region
      $region105: #{complex_decoder_forward.1} parent=11 // pred_check
        %p841 = pneg %p600
      $region106: #{complex_decoder_forward.1} parent=11 // pred_check_branch
        %843 = sbr.rel (%p841) target = $region108
      $region107: #{complex_decoder_forward.1} parent=11 // pred_region
        _
      $region108: #{complex_decoder_forward.1} parent=11 // pred_fallthru
        _
      // Predicated region
      $region109: #{complex_decoder_forward.1} parent=11 // pred_check
        %p844 = pneg %p621
      $region110: #{complex_decoder_forward.1} parent=11 // pred_check_branch
        %846 = sbr.rel (%p844) target = $region112
      $region111: #{complex_decoder_forward.1} parent=11 // pred_region
        _
      $region112: #{complex_decoder_forward.1} parent=11 // pred_fallthru
        _
      // Predicated region
      $region113: #{complex_decoder_forward.1} parent=11 // pred_check
        %p847 = pneg %p642
      $region114: #{complex_decoder_forward.1} parent=11 // pred_check_branch
        %849 = sbr.rel (%p847) target = $region116
      $region115: #{complex_decoder_forward.1} parent=11 // pred_region
        _
      $region116: #{complex_decoder_forward.1} parent=11 // pred_fallthru
        _
      // Predicated region
      $region117: #{complex_decoder_forward.1} parent=11 // pred_check
        %p850 = pneg %p663
      $region118: #{complex_decoder_forward.1} parent=11 // pred_check_branch
        %852 = sbr.rel (%p850) target = $region120
      $region119: #{complex_decoder_forward.1} parent=11 // pred_region
        _
      $region120: #{complex_decoder_forward.1} parent=11 // pred_fallthru
        _
      // Predicated region
      $region121: #{complex_decoder_forward.1} parent=11 // pred_check
        %p853 = pneg %p684
      $region122: #{complex_decoder_forward.1} parent=11 // pred_check_branch
        %855 = sbr.rel (%p853) target = $region124
      $region123: #{complex_decoder_forward.1} parent=11 // pred_region
        _
      $region124: #{complex_decoder_forward.1} parent=11 // pred_fallthru
        _
      // Predicated region
      $region125: #{complex_decoder_forward.1} parent=11 // pred_check
        %p856 = pneg %p705
      $region126: #{complex_decoder_forward.1} parent=11 // pred_check_branch
        %858 = sbr.rel (%p856) target = $region128
      $region127: #{complex_decoder_forward.1} parent=11 // pred_region
        _
      $region128: #{complex_decoder_forward.1} parent=11 // pred_fallthru
        _
    $region12: #{complex_decoder_forward.1} parent=5 // pred_fallthru
      _
    %p859 = scmp.lt.s32.totalorder %s70, 2
    // Predicated region
    $region129: #{complex_decoder_forward.1} parent=5 // pred_check
      %p860 = pneg %p859
    $region130: #{complex_decoder_forward.1} parent=5 // pred_check_branch
      %862 = sbr.rel (%p860) target = $region132
    $region131: #{complex_decoder_forward.1} parent=5 // pred_region
      // Predicated region
      $region133: #{complex_decoder_forward.1} parent=131 // pred_check
        %p863 = pneg %p90
      $region134: #{complex_decoder_forward.1} parent=131 // pred_check_branch
        %865 = sbr.rel (%p863) target = $region136
      $region135: #{complex_decoder_forward.1} parent=131 // pred_region
        %p866 = scmp.lt.s32.totalorder %s70, 1
        %s867 = scalar_select %p866, %s70, 1
        %s868 = smul.addr %s867, 8
        %s869 = smul.addr %s868, 8
        %s870 = scalar_lea.vmem %s1, %s869
      $region136: #{complex_decoder_forward.1} parent=131 // pred_fallthru
        _
    $region132: #{complex_decoder_forward.1} parent=5 // pred_fallthru
      _
    %p871 = scmp.le.s32.totalorder 1, %s70
    %p872 = scmp.lt.s32.totalorder %s70, 3
    %p873 = pnand %p871, %p872
    %p874 = pneg %p873
    // Predicated region
    $region137: #{complex_decoder_forward.1} parent=5 // pred_check
      _
    $region138: #{complex_decoder_forward.1} parent=5 // pred_check_branch
      %876 = sbr.rel (%p873) target = $region140
    $region139: #{complex_decoder_forward.1} parent=5 // pred_region
      %s877 = ssub.s32 %s70, 1
      %p878 = scmp.lt.s32.totalorder %s75, 1
      %s879 = scalar_select %p878, %s75, 1
      %s880 = smul.addr %s879, 8
      %s881 = smul.addr %s880, 8
      %s882 = scalar_lea.vmem %s1, %s881
      %p883 = pneg %p96
      %p884 = pneg %p93
      %p885 = pneg %p117
      %p886 = pneg %p114
      %p887 = pneg %p138
      %p888 = pneg %p135
      %p889 = pneg %p159
      %p890 = pneg %p156
      %p891 = pneg %p180
      %p892 = pneg %p177
      %p893 = pneg %p201
      %p894 = pneg %p198
      %p895 = pneg %p222
      %p896 = pneg %p219
      %p897 = pneg %p243
      %p898 = pneg %p240
      %p899 = pneg %p264
      %p900 = pneg %p261
      %p901 = pneg %p285
      %p902 = pneg %p282
      %p903 = pneg %p306
      %p904 = pneg %p303
      %p905 = pneg %p327
      %p906 = pneg %p324
      %p907 = pneg %p348
      %p908 = pneg %p345
      %p909 = pneg %p369
      %p910 = pneg %p366
      %p911 = pneg %p390
      %p912 = pneg %p387
      %p913 = pneg %p411
      %p914 = pneg %p408
      %p915 = pneg %p432
      %p916 = pneg %p429
      %p917 = pneg %p453
      %p918 = pneg %p450
      %p919 = pneg %p474
      %p920 = pneg %p471
      %p921 = pneg %p495
      %p922 = pneg %p492
      %p923 = pneg %p516
      %p924 = pneg %p513
      %p925 = pneg %p537
      %p926 = pneg %p534
      %p927 = pneg %p558
      %p928 = pneg %p555
      %p929 = pneg %p579
      %p930 = pneg %p576
      %p931 = pneg %p600
      %p932 = pneg %p597
      %p933 = pneg %p621
      %p934 = pneg %p618
      %p935 = pneg %p642
      %p936 = pneg %p639
      %p937 = pneg %p663
      %p938 = pneg %p660
      %p939 = pneg %p684
      %p940 = pneg %p681
      %p941 = pneg %p705
      %p942 = pneg %p702
      %p943 = pneg %p731
      %p944 = pneg %p728
      %p945 = scmp.lt.s32.totalorder %s75, 1
      %s946 = scalar_select %p945, %s75, 1
      %s947 = smul.addr %s946, 2
      %s948 = smul.addr %s947, 8
      %s949 = scalar_lea.vmem %s61, %s948
      %p950 = pneg %p757
      %p951 = pneg %p754
      %p952 = scmp.lt.s32.totalorder %s75, 1
      %s953 = scalar_select %p952, %s75, 1
      %s954 = smul.addr %s953, 2
      %s955 = smul.addr %s954, 8
      %s956 = scalar_lea.vmem %s63, %s955
      %p957 = scmp.lt.s32.totalorder %s75, 1
      %s958 = scalar_select %p957, %s75, 1
      %s959 = smul.addr %s958, 8
      %s960 = smul.addr %s959, 8
      %s961 = scalar_lea.vmem %s1, %s960
      %p962 = scmp.lt.s32.totalorder %s75, 1
      %s963 = scalar_select %p962, %s75, 1
      %s964 = smul.addr %s963, 2
      %s965 = smul.addr %s964, 8
      %s966 = scalar_lea.vmem %s61, %s965
      %p967 = scmp.lt.s32.totalorder %s75, 1
      %s968 = scalar_select %p967, %s75, 1
      %s969 = smul.addr %s968, 2
      %s970 = smul.addr %s969, 8
      %s971 = scalar_lea.vmem %s63, %s970
      %vm973 = vcmask 324608
      %974 = vst.msk [vmem:[#allocation2] sm:$0x3f] %vm973, 0.0
      %975 = vst.msk [vmem:[#allocation2 + $0x8] sm:$0x3f] %vm973, 0.0
      %976 = vst.msk [vmem:[#allocation2 + $0x10] sm:$0x3f] %vm973, 0.0
      %977 = vst.msk [vmem:[#allocation2 + $0x18] sm:$0x3f] %vm973, 0.0
      %978 = vst.msk [vmem:[#allocation2 + $0x20] sm:$0x3f] %vm973, 0.0
      %979 = vst.msk [vmem:[#allocation2 + $0x28] sm:$0x3f] %vm973, 0.0
      %980 = vst.msk [vmem:[#allocation2 + $0x30] sm:$0x3f] %vm973, 0.0
      %981 = vst.msk [vmem:[#allocation2 + $0x38] sm:$0x3f] %vm973, 0.0
      %982 = vst.msk [vmem:[#allocation2 + $0x40] sm:$0x3f] %vm973, 0.0
      %983 = vst.msk [vmem:[#allocation2 + $0x48] sm:$0x3f] %vm973, 0.0
      %984 = vst.msk [vmem:[#allocation2 + $0x50] sm:$0x3f] %vm973, 0.0
      %985 = vst.msk [vmem:[#allocation2 + $0x58] sm:$0x3f] %vm973, 0.0
      %986 = vst.msk [vmem:[#allocation2 + $0x60] sm:$0x3f] %vm973, 0.0
      %987 = vst.msk [vmem:[#allocation2 + $0x68] sm:$0x3f] %vm973, 0.0
      %988 = vst.msk [vmem:[#allocation2 + $0x70] sm:$0x3f] %vm973, 0.0
      %989 = vst.msk [vmem:[#allocation2 + $0x78] sm:$0x3f] %vm973, 0.0
      %v990 = vld [vmem:[%s961] sm:$0xff]
      %s991 = scalar_lea.vmem %s961, 8
      %v992 = vld [vmem:[%s991] sm:$0xff]
      %s993 = scalar_lea.vmem %s961, 16
      %v994 = vld [vmem:[%s993] sm:$0xff]
      %s995 = scalar_lea.vmem %s961, 24
      %v996 = vld [vmem:[%s995] sm:$0xff]
      %s997 = scalar_lea.vmem %s961, 32
      %v998 = vld [vmem:[%s997] sm:$0xff]
      %s999 = scalar_lea.vmem %s961, 40
      %v1000 = vld [vmem:[%s999] sm:$0xff]
      %s1001 = scalar_lea.vmem %s961, 48
      %v1002 = vld [vmem:[%s1001] sm:$0xff]
      %s1003 = scalar_lea.vmem %s961, 56
      %v1004 = vld [vmem:[%s1003] sm:$0xff]
      %v1005 = vlaneseq
      %v1006 = vshrl.u32 %v1005, 7
      %v1007 = vsub.s32 0, %v1006
      %v1008 = vrot.slane %v990, %v1007
      %1010 = vbcast.lane.b32.xlu0 %v1008, 256
      %v1011 = vpop.permute.xlu0 %1010
      %v1012 = vlaneseq
      %v1013 = vshrl.u32 %v1012, 7
      %v1014 = vsub.s32 1, %v1013
      %v1015 = vrot.slane %v990, %v1014
      %1017 = vbcast.lane.b32.xlu0 %v1015, 256
      %v1018 = vpop.permute.xlu0 %1017
      %v1019 = vlaneseq
      %v1020 = vshrl.u32 %v1019, 7
      %v1021 = vsub.s32 2, %v1020
      %v1022 = vrot.slane %v990, %v1021
      %1024 = vbcast.lane.b32.xlu0 %v1022, 256
      %v1025 = vpop.permute.xlu0 %1024
      %v1026 = vlaneseq
      %v1027 = vshrl.u32 %v1026, 7
      %v1028 = vsub.s32 3, %v1027
      %v1029 = vrot.slane %v990, %v1028
      %1031 = vbcast.lane.b32.xlu0 %v1029, 256
      %v1032 = vpop.permute.xlu0 %1031
      %v1033 = vlaneseq
      %v1034 = vshrl.u32 %v1033, 7
      %v1035 = vsub.s32 4, %v1034
      %v1036 = vrot.slane %v990, %v1035
      %1038 = vbcast.lane.b32.xlu0 %v1036, 256
      %v1039 = vpop.permute.xlu0 %1038
      %v1040 = vlaneseq
      %v1041 = vshrl.u32 %v1040, 7
      %v1042 = vsub.s32 5, %v1041
      %v1043 = vrot.slane %v990, %v1042
      %1045 = vbcast.lane.b32.xlu0 %v1043, 256
      %v1046 = vpop.permute.xlu0 %1045
      %v1047 = vlaneseq
      %v1048 = vshrl.u32 %v1047, 7
      %v1049 = vsub.s32 6, %v1048
      %v1050 = vrot.slane %v990, %v1049
      %1052 = vbcast.lane.b32.xlu0 %v1050, 256
      %v1053 = vpop.permute.xlu0 %1052
      %v1054 = vlaneseq
      %v1055 = vshrl.u32 %v1054, 7
      %v1056 = vsub.s32 7, %v1055
      %v1057 = vrot.slane %v990, %v1056
      %1059 = vbcast.lane.b32.xlu0 %v1057, 256
      %v1060 = vpop.permute.xlu0 %1059
      %v1061 = vlaneseq
      %v1062 = vshrl.u32 %v1061, 7
      %v1063 = vsub.s32 0, %v1062
      %v1064 = vrot.slane %v992, %v1063
      %1066 = vbcast.lane.b32.xlu0 %v1064, 256
      %v1067 = vpop.permute.xlu0 %1066
      %v1068 = vlaneseq
      %v1069 = vshrl.u32 %v1068, 7
      %v1070 = vsub.s32 1, %v1069
      %v1071 = vrot.slane %v992, %v1070
      %1073 = vbcast.lane.b32.xlu0 %v1071, 256
      %v1074 = vpop.permute.xlu0 %1073
      %v1075 = vlaneseq
      %v1076 = vshrl.u32 %v1075, 7
      %v1077 = vsub.s32 2, %v1076
      %v1078 = vrot.slane %v992, %v1077
      %1080 = vbcast.lane.b32.xlu0 %v1078, 256
      %v1081 = vpop.permute.xlu0 %1080
      %v1082 = vlaneseq
      %v1083 = vshrl.u32 %v1082, 7
      %v1084 = vsub.s32 3, %v1083
      %v1085 = vrot.slane %v992, %v1084
      %1087 = vbcast.lane.b32.xlu0 %v1085, 256
      %v1088 = vpop.permute.xlu0 %1087
      %v1089 = vlaneseq
      %v1090 = vshrl.u32 %v1089, 7
      %v1091 = vsub.s32 4, %v1090
      %v1092 = vrot.slane %v992, %v1091
      %1094 = vbcast.lane.b32.xlu0 %v1092, 256
      %v1095 = vpop.permute.xlu0 %1094
      %v1096 = vlaneseq
      %v1097 = vshrl.u32 %v1096, 7
      %v1098 = vsub.s32 5, %v1097
      %v1099 = vrot.slane %v992, %v1098
      %1101 = vbcast.lane.b32.xlu0 %v1099, 256
      %v1102 = vpop.permute.xlu0 %1101
      %v1103 = vlaneseq
      %v1104 = vshrl.u32 %v1103, 7
      %v1105 = vsub.s32 6, %v1104
      %v1106 = vrot.slane %v992, %v1105
      %1108 = vbcast.lane.b32.xlu0 %v1106, 256
      %v1109 = vpop.permute.xlu0 %1108
      %v1110 = vlaneseq
      %v1111 = vshrl.u32 %v1110, 7
      %v1112 = vsub.s32 7, %v1111
      %v1113 = vrot.slane %v992, %v1112
      %1115 = vbcast.lane.b32.xlu0 %v1113, 256
      %v1116 = vpop.permute.xlu0 %1115
      %v1117 = vlaneseq
      %v1118 = vshrl.u32 %v1117, 7
      %v1119 = vsub.s32 0, %v1118
      %v1120 = vrot.slane %v994, %v1119
      %1122 = vbcast.lane.b32.xlu0 %v1120, 256
      %v1123 = vpop.permute.xlu0 %1122
      %v1124 = vlaneseq
      %v1125 = vshrl.u32 %v1124, 7
      %v1126 = vsub.s32 1, %v1125
      %v1127 = vrot.slane %v994, %v1126
      %1129 = vbcast.lane.b32.xlu0 %v1127, 256
      %v1130 = vpop.permute.xlu0 %1129
      %v1131 = vlaneseq
      %v1132 = vshrl.u32 %v1131, 7
      %v1133 = vsub.s32 2, %v1132
      %v1134 = vrot.slane %v994, %v1133
      %1136 = vbcast.lane.b32.xlu0 %v1134, 256
      %v1137 = vpop.permute.xlu0 %1136
      %v1138 = vlaneseq
      %v1139 = vshrl.u32 %v1138, 7
      %v1140 = vsub.s32 3, %v1139
      %v1141 = vrot.slane %v994, %v1140
      %1143 = vbcast.lane.b32.xlu0 %v1141, 256
      %v1144 = vpop.permute.xlu0 %1143
      %v1145 = vlaneseq
      %v1146 = vshrl.u32 %v1145, 7
      %v1147 = vsub.s32 4, %v1146
      %v1148 = vrot.slane %v994, %v1147
      %1150 = vbcast.lane.b32.xlu0 %v1148, 256
      %v1151 = vpop.permute.xlu0 %1150
      %v1152 = vlaneseq
      %v1153 = vshrl.u32 %v1152, 7
      %v1154 = vsub.s32 5, %v1153
      %v1155 = vrot.slane %v994, %v1154
      %1157 = vbcast.lane.b32.xlu0 %v1155, 256
      %v1158 = vpop.permute.xlu0 %1157
      %v1159 = vlaneseq
      %v1160 = vshrl.u32 %v1159, 7
      %v1161 = vsub.s32 6, %v1160
      %v1162 = vrot.slane %v994, %v1161
      %1164 = vbcast.lane.b32.xlu0 %v1162, 256
      %v1165 = vpop.permute.xlu0 %1164
      %v1166 = vlaneseq
      %v1167 = vshrl.u32 %v1166, 7
      %v1168 = vsub.s32 7, %v1167
      %v1169 = vrot.slane %v994, %v1168
      %1171 = vbcast.lane.b32.xlu0 %v1169, 256
      %v1172 = vpop.permute.xlu0 %1171
      %v1173 = vlaneseq
      %v1174 = vshrl.u32 %v1173, 7
      %v1175 = vsub.s32 0, %v1174
      %v1176 = vrot.slane %v996, %v1175
      %1178 = vbcast.lane.b32.xlu0 %v1176, 256
      %v1179 = vpop.permute.xlu0 %1178
      %v1180 = vlaneseq
      %v1181 = vshrl.u32 %v1180, 7
      %v1182 = vsub.s32 1, %v1181
      %v1183 = vrot.slane %v996, %v1182
      %1185 = vbcast.lane.b32.xlu0 %v1183, 256
      %v1186 = vpop.permute.xlu0 %1185
      %v1187 = vlaneseq
      %v1188 = vshrl.u32 %v1187, 7
      %v1189 = vsub.s32 2, %v1188
      %v1190 = vrot.slane %v996, %v1189
      %1192 = vbcast.lane.b32.xlu0 %v1190, 256
      %v1193 = vpop.permute.xlu0 %1192
      %v1194 = vlaneseq
      %v1195 = vshrl.u32 %v1194, 7
      %v1196 = vsub.s32 3, %v1195
      %v1197 = vrot.slane %v996, %v1196
      %1199 = vbcast.lane.b32.xlu0 %v1197, 256
      %v1200 = vpop.permute.xlu0 %1199
      %v1201 = vlaneseq
      %v1202 = vshrl.u32 %v1201, 7
      %v1203 = vsub.s32 4, %v1202
      %v1204 = vrot.slane %v996, %v1203
      %1206 = vbcast.lane.b32.xlu0 %v1204, 256
      %v1207 = vpop.permute.xlu0 %1206
      %v1208 = vlaneseq
      %v1209 = vshrl.u32 %v1208, 7
      %v1210 = vsub.s32 5, %v1209
      %v1211 = vrot.slane %v996, %v1210
      %1213 = vbcast.lane.b32.xlu0 %v1211, 256
      %v1214 = vpop.permute.xlu0 %1213
      %v1215 = vlaneseq
      %v1216 = vshrl.u32 %v1215, 7
      %v1217 = vsub.s32 6, %v1216
      %v1218 = vrot.slane %v996, %v1217
      %1220 = vbcast.lane.b32.xlu0 %v1218, 256
      %v1221 = vpop.permute.xlu0 %1220
      %v1222 = vlaneseq
      %v1223 = vshrl.u32 %v1222, 7
      %v1224 = vsub.s32 7, %v1223
      %v1225 = vrot.slane %v996, %v1224
      %1227 = vbcast.lane.b32.xlu0 %v1225, 256
      %v1228 = vpop.permute.xlu0 %1227
      %v1229 = vlaneseq
      %v1230 = vshrl.u32 %v1229, 7
      %v1231 = vsub.s32 0, %v1230
      %v1232 = vrot.slane %v998, %v1231
      %1234 = vbcast.lane.b32.xlu0 %v1232, 256
      %v1235 = vpop.permute.xlu0 %1234
      %v1236 = vlaneseq
      %v1237 = vshrl.u32 %v1236, 7
      %v1238 = vsub.s32 1, %v1237
      %v1239 = vrot.slane %v998, %v1238
      %1241 = vbcast.lane.b32.xlu0 %v1239, 256
      %v1242 = vpop.permute.xlu0 %1241
      %v1243 = vlaneseq
      %v1244 = vshrl.u32 %v1243, 7
      %v1245 = vsub.s32 2, %v1244
      %v1246 = vrot.slane %v998, %v1245
      %1248 = vbcast.lane.b32.xlu0 %v1246, 256
      %v1249 = vpop.permute.xlu0 %1248
      %v1250 = vlaneseq
      %v1251 = vshrl.u32 %v1250, 7
      %v1252 = vsub.s32 3, %v1251
      %v1253 = vrot.slane %v998, %v1252
      %1255 = vbcast.lane.b32.xlu0 %v1253, 256
      %v1256 = vpop.permute.xlu0 %1255
      %v1257 = vlaneseq
      %v1258 = vshrl.u32 %v1257, 7
      %v1259 = vsub.s32 4, %v1258
      %v1260 = vrot.slane %v998, %v1259
      %1262 = vbcast.lane.b32.xlu0 %v1260, 256
      %v1263 = vpop.permute.xlu0 %1262
      %v1264 = vlaneseq
      %v1265 = vshrl.u32 %v1264, 7
      %v1266 = vsub.s32 5, %v1265
      %v1267 = vrot.slane %v998, %v1266
      %1269 = vbcast.lane.b32.xlu0 %v1267, 256
      %v1270 = vpop.permute.xlu0 %1269
      %v1271 = vlaneseq
      %v1272 = vshrl.u32 %v1271, 7
      %v1273 = vsub.s32 6, %v1272
      %v1274 = vrot.slane %v998, %v1273
      %1276 = vbcast.lane.b32.xlu0 %v1274, 256
      %v1277 = vpop.permute.xlu0 %1276
      %v1278 = vlaneseq
      %v1279 = vshrl.u32 %v1278, 7
      %v1280 = vsub.s32 7, %v1279
      %v1281 = vrot.slane %v998, %v1280
      %1283 = vbcast.lane.b32.xlu0 %v1281, 256
      %v1284 = vpop.permute.xlu0 %1283
      %v1285 = vlaneseq
      %v1286 = vshrl.u32 %v1285, 7
      %v1287 = vsub.s32 0, %v1286
      %v1288 = vrot.slane %v1000, %v1287
      %1290 = vbcast.lane.b32.xlu0 %v1288, 256
      %v1291 = vpop.permute.xlu0 %1290
      %v1292 = vlaneseq
      %v1293 = vshrl.u32 %v1292, 7
      %v1294 = vsub.s32 1, %v1293
      %v1295 = vrot.slane %v1000, %v1294
      %1297 = vbcast.lane.b32.xlu0 %v1295, 256
      %v1298 = vpop.permute.xlu0 %1297
      %v1299 = vlaneseq
      %v1300 = vshrl.u32 %v1299, 7
      %v1301 = vsub.s32 2, %v1300
      %v1302 = vrot.slane %v1000, %v1301
      %1304 = vbcast.lane.b32.xlu0 %v1302, 256
      %v1305 = vpop.permute.xlu0 %1304
      %v1306 = vlaneseq
      %v1307 = vshrl.u32 %v1306, 7
      %v1308 = vsub.s32 3, %v1307
      %v1309 = vrot.slane %v1000, %v1308
      %1311 = vbcast.lane.b32.xlu0 %v1309, 256
      %v1312 = vpop.permute.xlu0 %1311
      %v1313 = vlaneseq
      %v1314 = vshrl.u32 %v1313, 7
      %v1315 = vsub.s32 4, %v1314
      %v1316 = vrot.slane %v1000, %v1315
      %1318 = vbcast.lane.b32.xlu0 %v1316, 256
      %v1319 = vpop.permute.xlu0 %1318
      %v1320 = vlaneseq
      %v1321 = vshrl.u32 %v1320, 7
      %v1322 = vsub.s32 5, %v1321
      %v1323 = vrot.slane %v1000, %v1322
      %1325 = vbcast.lane.b32.xlu0 %v1323, 256
      %v1326 = vpop.permute.xlu0 %1325
      %v1327 = vlaneseq
      %v1328 = vshrl.u32 %v1327, 7
      %v1329 = vsub.s32 6, %v1328
      %v1330 = vrot.slane %v1000, %v1329
      %1332 = vbcast.lane.b32.xlu0 %v1330, 256
      %v1333 = vpop.permute.xlu0 %1332
      %v1334 = vlaneseq
      %v1335 = vshrl.u32 %v1334, 7
      %v1336 = vsub.s32 7, %v1335
      %v1337 = vrot.slane %v1000, %v1336
      %1339 = vbcast.lane.b32.xlu0 %v1337, 256
      %v1340 = vpop.permute.xlu0 %1339
      %v1341 = vlaneseq
      %v1342 = vshrl.u32 %v1341, 7
      %v1343 = vsub.s32 0, %v1342
      %v1344 = vrot.slane %v1002, %v1343
      %1346 = vbcast.lane.b32.xlu0 %v1344, 256
      %v1347 = vpop.permute.xlu0 %1346
      %v1348 = vlaneseq
      %v1349 = vshrl.u32 %v1348, 7
      %v1350 = vsub.s32 1, %v1349
      %v1351 = vrot.slane %v1002, %v1350
      %1353 = vbcast.lane.b32.xlu0 %v1351, 256
      %v1354 = vpop.permute.xlu0 %1353
      %v1355 = vlaneseq
      %v1356 = vshrl.u32 %v1355, 7
      %v1357 = vsub.s32 2, %v1356
      %v1358 = vrot.slane %v1002, %v1357
      %1360 = vbcast.lane.b32.xlu0 %v1358, 256
      %v1361 = vpop.permute.xlu0 %1360
      %v1362 = vlaneseq
      %v1363 = vshrl.u32 %v1362, 7
      %v1364 = vsub.s32 3, %v1363
      %v1365 = vrot.slane %v1002, %v1364
      %1367 = vbcast.lane.b32.xlu0 %v1365, 256
      %v1368 = vpop.permute.xlu0 %1367
      %v1369 = vlaneseq
      %v1370 = vshrl.u32 %v1369, 7
      %v1371 = vsub.s32 4, %v1370
      %v1372 = vrot.slane %v1002, %v1371
      %1374 = vbcast.lane.b32.xlu0 %v1372, 256
      %v1375 = vpop.permute.xlu0 %1374
      %v1376 = vlaneseq
      %v1377 = vshrl.u32 %v1376, 7
      %v1378 = vsub.s32 5, %v1377
      %v1379 = vrot.slane %v1002, %v1378
      %1381 = vbcast.lane.b32.xlu0 %v1379, 256
      %v1382 = vpop.permute.xlu0 %1381
      %v1383 = vlaneseq
      %v1384 = vshrl.u32 %v1383, 7
      %v1385 = vsub.s32 6, %v1384
      %v1386 = vrot.slane %v1002, %v1385
      %1388 = vbcast.lane.b32.xlu0 %v1386, 256
      %v1389 = vpop.permute.xlu0 %1388
      %v1390 = vlaneseq
      %v1391 = vshrl.u32 %v1390, 7
      %v1392 = vsub.s32 7, %v1391
      %v1393 = vrot.slane %v1002, %v1392
      %1395 = vbcast.lane.b32.xlu0 %v1393, 256
      %v1396 = vpop.permute.xlu0 %1395
      %v1397 = vlaneseq
      %v1398 = vshrl.u32 %v1397, 7
      %v1399 = vsub.s32 0, %v1398
      %v1400 = vrot.slane %v1004, %v1399
      %1402 = vbcast.lane.b32.xlu0 %v1400, 256
      %v1403 = vpop.permute.xlu0 %1402
      %v1404 = vlaneseq
      %v1405 = vshrl.u32 %v1404, 7
      %v1406 = vsub.s32 1, %v1405
      %v1407 = vrot.slane %v1004, %v1406
      %1409 = vbcast.lane.b32.xlu0 %v1407, 256
      %v1410 = vpop.permute.xlu0 %1409
      %v1411 = vlaneseq
      %v1412 = vshrl.u32 %v1411, 7
      %v1413 = vsub.s32 2, %v1412
      %v1414 = vrot.slane %v1004, %v1413
      %1416 = vbcast.lane.b32.xlu0 %v1414, 256
      %v1417 = vpop.permute.xlu0 %1416
      %v1418 = vlaneseq
      %v1419 = vshrl.u32 %v1418, 7
      %v1420 = vsub.s32 3, %v1419
      %v1421 = vrot.slane %v1004, %v1420
      %1423 = vbcast.lane.b32.xlu0 %v1421, 256
      %v1424 = vpop.permute.xlu0 %1423
      %v1425 = vlaneseq
      %v1426 = vshrl.u32 %v1425, 7
      %v1427 = vsub.s32 4, %v1426
      %v1428 = vrot.slane %v1004, %v1427
      %1430 = vbcast.lane.b32.xlu0 %v1428, 256
      %v1431 = vpop.permute.xlu0 %1430
      %v1432 = vlaneseq
      %v1433 = vshrl.u32 %v1432, 7
      %v1434 = vsub.s32 5, %v1433
      %v1435 = vrot.slane %v1004, %v1434
      %1437 = vbcast.lane.b32.xlu0 %v1435, 256
      %v1438 = vpop.permute.xlu0 %1437
      %v1439 = vlaneseq
      %v1440 = vshrl.u32 %v1439, 7
      %v1441 = vsub.s32 6, %v1440
      %v1442 = vrot.slane %v1004, %v1441
      %1444 = vbcast.lane.b32.xlu0 %v1442, 256
      %v1445 = vpop.permute.xlu0 %1444
      %v1446 = vlaneseq
      %v1447 = vshrl.u32 %v1446, 7
      %v1448 = vsub.s32 7, %v1447
      %v1449 = vrot.slane %v1004, %v1448
      %1451 = vbcast.lane.b32.xlu0 %v1449, 256
      %v1452 = vpop.permute.xlu0 %1451
      %vm1453 = vcmask 7168
      %v1454 = vsel %vm1453, %v1011, %v1067
      %v1455 = vsel %vm1453, %v1018, %v1074
      %v1456 = vsel %vm1453, %v1025, %v1081
      %v1457 = vsel %vm1453, %v1032, %v1088
      %v1458 = vsel %vm1453, %v1039, %v1095
      %v1459 = vsel %vm1453, %v1046, %v1102
      %v1460 = vsel %vm1453, %v1053, %v1109
      %v1461 = vsel %vm1453, %v1060, %v1116
      %vm1462 = vcmask 15360
      %v1463 = vsel %vm1462, %v1454, %v1123
      %v1464 = vsel %vm1462, %v1455, %v1130
      %v1465 = vsel %vm1462, %v1456, %v1137
      %v1466 = vsel %vm1462, %v1457, %v1144
      %v1467 = vsel %vm1462, %v1458, %v1151
      %v1468 = vsel %vm1462, %v1459, %v1158
      %v1469 = vsel %vm1462, %v1460, %v1165
      %v1470 = vsel %vm1462, %v1461, %v1172
      %vm1471 = vcmask 23552
      %v1472 = vsel %vm1471, %v1463, %v1179
      %v1473 = vsel %vm1471, %v1464, %v1186
      %v1474 = vsel %vm1471, %v1465, %v1193
      %v1475 = vsel %vm1471, %v1466, %v1200
      %v1476 = vsel %vm1471, %v1467, %v1207
      %v1477 = vsel %vm1471, %v1468, %v1214
      %v1478 = vsel %vm1471, %v1469, %v1221
      %v1479 = vsel %vm1471, %v1470, %v1228
      %vm1480 = vcmask 31744
      %v1481 = vsel %vm1480, %v1472, %v1235
      %v1482 = vsel %vm1480, %v1473, %v1242
      %v1483 = vsel %vm1480, %v1474, %v1249
      %v1484 = vsel %vm1480, %v1475, %v1256
      %v1485 = vsel %vm1480, %v1476, %v1263
      %v1486 = vsel %vm1480, %v1477, %v1270
      %v1487 = vsel %vm1480, %v1478, %v1277
      %v1488 = vsel %vm1480, %v1479, %v1284
      %vm1489 = vcmask 39936
      %v1490 = vsel %vm1489, %v1481, %v1291
      %v1491 = vsel %vm1489, %v1482, %v1298
      %v1492 = vsel %vm1489, %v1483, %v1305
      %v1493 = vsel %vm1489, %v1484, %v1312
      %v1494 = vsel %vm1489, %v1485, %v1319
      %v1495 = vsel %vm1489, %v1486, %v1326
      %v1496 = vsel %vm1489, %v1487, %v1333
      %v1497 = vsel %vm1489, %v1488, %v1340
      %vm1498 = vcmask 48128
      %v1499 = vsel %vm1498, %v1490, %v1347
      %v1500 = vsel %vm1498, %v1491, %v1354
      %v1501 = vsel %vm1498, %v1492, %v1361
      %v1502 = vsel %vm1498, %v1493, %v1368
      %v1503 = vsel %vm1498, %v1494, %v1375
      %v1504 = vsel %vm1498, %v1495, %v1382
      %v1505 = vsel %vm1498, %v1496, %v1389
      %v1506 = vsel %vm1498, %v1497, %v1396
      %vm1507 = vcmask 56320
      %v1508 = vsel %vm1507, %v1499, %v1403
      %v1509 = vsel %vm1507, %v1500, %v1410
      %v1510 = vsel %vm1507, %v1501, %v1417
      %v1511 = vsel %vm1507, %v1502, %v1424
      %v1512 = vsel %vm1507, %v1503, %v1431
      %v1513 = vsel %vm1507, %v1504, %v1438
      %v1514 = vsel %vm1507, %v1505, %v1445
      %v1515 = vsel %vm1507, %v1506, %v1452
      %s1516 = scalar_lea.vmem [#allocation2], 64
      %vm1517 = vcmask 60416
      %1518 = vst.msk [vmem:[%s1516 + $0x1] sm:$0xf] %vm1517, %v1508
      %1519 = vst.msk [vmem:[%s1516 + $0x9] sm:$0xf] %vm1517, %v1509
      %1520 = vst.msk [vmem:[%s1516 + $0x11] sm:$0xf] %vm1517, %v1510
      %1521 = vst.msk [vmem:[%s1516 + $0x19] sm:$0xf] %vm1517, %v1511
      %1522 = vst.msk [vmem:[%s1516 + $0x21] sm:$0xf] %vm1517, %v1512
      %1523 = vst.msk [vmem:[%s1516 + $0x29] sm:$0xf] %vm1517, %v1513
      %1524 = vst.msk [vmem:[%s1516 + $0x31] sm:$0xf] %vm1517, %v1514
      %1525 = vst.msk [vmem:[%s1516 + $0x39] sm:$0xf] %vm1517, %v1515
      %s1526 = scalar_lea.vmem [#allocation2], 56
      %v1527 = vld [vmem:[%s1526] sm:$0xf]
      %v1528 = vld [vmem:[%s1526 + $0x8] sm:$0xf]
      %v1529 = vld [vmem:[%s1526 + $0x10] sm:$0xf]
      %v1530 = vld [vmem:[%s1526 + $0x18] sm:$0xf]
      %v1531 = vld [vmem:[%s1526 + $0x20] sm:$0xf]
      %v1532 = vld [vmem:[%s1526 + $0x28] sm:$0xf]
      %v1533 = vld [vmem:[%s1526 + $0x30] sm:$0xf]
      %v1534 = vld [vmem:[%s1526 + $0x38] sm:$0xf]
      %v1535 = vld [vmem:[%s1526 + $0x1] sm:$0xf]
      %v1536 = vld [vmem:[%s1526 + $0x9] sm:$0xf]
      %v1537 = vld [vmem:[%s1526 + $0x11] sm:$0xf]
      %v1538 = vld [vmem:[%s1526 + $0x19] sm:$0xf]
      %v1539 = vld [vmem:[%s1526 + $0x21] sm:$0xf]
      %v1540 = vld [vmem:[%s1526 + $0x29] sm:$0xf]
      %v1541 = vld [vmem:[%s1526 + $0x31] sm:$0xf]
      %v1542 = vld [vmem:[%s1526 + $0x39] sm:$0xf]
      %v1543 = vld [vmem:[%s1526 + $0x2] sm:$0xf]
      %v1544 = vld [vmem:[%s1526 + $0xa] sm:$0xf]
      %v1545 = vld [vmem:[%s1526 + $0x12] sm:$0xf]
      %v1546 = vld [vmem:[%s1526 + $0x1a] sm:$0xf]
      %v1547 = vld [vmem:[%s1526 + $0x22] sm:$0xf]
      %v1548 = vld [vmem:[%s1526 + $0x2a] sm:$0xf]
      %v1549 = vld [vmem:[%s1526 + $0x32] sm:$0xf]
      %v1550 = vld [vmem:[%s1526 + $0x3a] sm:$0xf]
      %v1551 = vld [vmem:[%s1516] sm:$0xf]
      %v1552 = vld [vmem:[%s1516 + $0x8] sm:$0xf]
      %v1553 = vld [vmem:[%s1516 + $0x10] sm:$0xf]
      %v1554 = vld [vmem:[%s1516 + $0x18] sm:$0xf]
      %v1555 = vld [vmem:[%s1516 + $0x20] sm:$0xf]
      %v1556 = vld [vmem:[%s1516 + $0x28] sm:$0xf]
      %v1557 = vld [vmem:[%s1516 + $0x30] sm:$0xf]
      %v1558 = vld [vmem:[%s1516 + $0x38] sm:$0xf]
      %v1559 = vld [vmem:[%s1516 + $0x1] sm:$0xf]
      %v1560 = vld [vmem:[%s1516 + $0x9] sm:$0xf]
      %v1561 = vld [vmem:[%s1516 + $0x11] sm:$0xf]
      %v1562 = vld [vmem:[%s1516 + $0x19] sm:$0xf]
      %v1563 = vld [vmem:[%s1516 + $0x21] sm:$0xf]
      %v1564 = vld [vmem:[%s1516 + $0x29] sm:$0xf]
      %v1565 = vld [vmem:[%s1516 + $0x31] sm:$0xf]
      %v1566 = vld [vmem:[%s1516 + $0x39] sm:$0xf]
      %v1567 = vld [vmem:[%s1516 + $0x2] sm:$0xf]
      %v1568 = vld [vmem:[%s1516 + $0xa] sm:$0xf]
      %v1569 = vld [vmem:[%s1516 + $0x12] sm:$0xf]
      %v1570 = vld [vmem:[%s1516 + $0x1a] sm:$0xf]
      %v1571 = vld [vmem:[%s1516 + $0x22] sm:$0xf]
      %v1572 = vld [vmem:[%s1516 + $0x2a] sm:$0xf]
      %v1573 = vld [vmem:[%s1516 + $0x32] sm:$0xf]
      %v1574 = vld [vmem:[%s1516 + $0x3a] sm:$0xf]
      %v1583 = vcombine.low %v1527, %v1528
      %v1584 = vcombine.low %v1529, %v1530
      %v1585 = vcombine.low %v1531, %v1532
      %v1586 = vcombine.low %v1533, %v1534
      %v1599 = vcombine.low %v1535, %v1536
      %v1600 = vcombine.low %v1537, %v1538
      %v1601 = vcombine.low %v1539, %v1540
      %v1602 = vcombine.low %v1541, %v1542
      %1603 = vrot.lane.b32.xlu0 %v1599, 8
      %v1604 = vpop.permute.xlu0 %1603
      %1605 = vrot.lane.b32.xlu0 %v1600, 8
      %v1606 = vpop.permute.xlu0 %1605
      %1607 = vrot.lane.b32.xlu0 %v1601, 8
      %v1608 = vpop.permute.xlu0 %1607
      %1609 = vrot.lane.b32.xlu0 %v1602, 8
      %v1610 = vpop.permute.xlu0 %1609
      %v1623 = vcombine.low %v1543, %v1544
      %v1624 = vcombine.low %v1545, %v1546
      %v1625 = vcombine.low %v1547, %v1548
      %v1626 = vcombine.low %v1549, %v1550
      %1627 = vrot.lane.b32.xlu0 %v1623, 16
      %v1628 = vpop.permute.xlu0 %1627
      %1629 = vrot.lane.b32.xlu0 %v1624, 16
      %v1630 = vpop.permute.xlu0 %1629
      %1631 = vrot.lane.b32.xlu0 %v1625, 16
      %v1632 = vpop.permute.xlu0 %1631
      %1633 = vrot.lane.b32.xlu0 %v1626, 16
      %v1634 = vpop.permute.xlu0 %1633
      %v1647 = vcombine.low %v1551, %v1552
      %v1648 = vcombine.low %v1553, %v1554
      %v1649 = vcombine.low %v1555, %v1556
      %v1650 = vcombine.low %v1557, %v1558
      %1651 = vrot.lane.b32.xlu0 %v1647, 24
      %v1652 = vpop.permute.xlu0 %1651
      %1653 = vrot.lane.b32.xlu0 %v1648, 24
      %v1654 = vpop.permute.xlu0 %1653
      %1655 = vrot.lane.b32.xlu0 %v1649, 24
      %v1656 = vpop.permute.xlu0 %1655
      %1657 = vrot.lane.b32.xlu0 %v1650, 24
      %v1658 = vpop.permute.xlu0 %1657
      %v1671 = vcombine.low %v1559, %v1560
      %v1672 = vcombine.low %v1561, %v1562
      %v1673 = vcombine.low %v1563, %v1564
      %v1674 = vcombine.low %v1565, %v1566
      %1675 = vrot.lane.b32.xlu0 %v1671, 32
      %v1676 = vpop.permute.xlu0 %1675
      %1677 = vrot.lane.b32.xlu0 %v1672, 32
      %v1678 = vpop.permute.xlu0 %1677
      %1679 = vrot.lane.b32.xlu0 %v1673, 32
      %v1680 = vpop.permute.xlu0 %1679
      %1681 = vrot.lane.b32.xlu0 %v1674, 32
      %v1682 = vpop.permute.xlu0 %1681
      %v1695 = vcombine.low %v1567, %v1568
      %v1696 = vcombine.low %v1569, %v1570
      %v1697 = vcombine.low %v1571, %v1572
      %v1698 = vcombine.low %v1573, %v1574
      %1699 = vrot.lane.b32.xlu0 %v1695, 40
      %v1700 = vpop.permute.xlu0 %1699
      %1701 = vrot.lane.b32.xlu0 %v1696, 40
      %v1702 = vpop.permute.xlu0 %1701
      %1703 = vrot.lane.b32.xlu0 %v1697, 40
      %v1704 = vpop.permute.xlu0 %1703
      %1705 = vrot.lane.b32.xlu0 %v1698, 40
      %v1706 = vpop.permute.xlu0 %1705
      %vm1711 = vcmask 64512
      %v1712 = vsel %vm1711, %v1583, %v1604
      %v1713 = vsel %vm1711, %v1584, %v1606
      %v1714 = vsel %vm1711, %v1585, %v1608
      %v1715 = vsel %vm1711, %v1586, %v1610
      %vm1716 = vcmask 130048
      %v1717 = vsel %vm1716, %v1712, %v1628
      %v1718 = vsel %vm1716, %v1713, %v1630
      %v1719 = vsel %vm1716, %v1714, %v1632
      %v1720 = vsel %vm1716, %v1715, %v1634
      %vm1721 = vcmask 195584
      %v1722 = vsel %vm1721, %v1717, %v1652
      %v1723 = vsel %vm1721, %v1718, %v1654
      %v1724 = vsel %vm1721, %v1719, %v1656
      %v1725 = vsel %vm1721, %v1720, %v1658
      %vm1726 = vcmask 261120
      %v1727 = vsel %vm1726, %v1722, %v1676
      %v1728 = vsel %vm1726, %v1723, %v1678
      %v1729 = vsel %vm1726, %v1724, %v1680
      %v1730 = vsel %vm1726, %v1725, %v1682
      %vm1731 = vcmask 326656
      %v1732 = vsel %vm1731, %v1727, %v1700
      %v1733 = vsel %vm1731, %v1728, %v1702
      %v1734 = vsel %vm1731, %v1729, %v1704
      %v1735 = vsel %vm1731, %v1730, %v1706
      %v1736 = vpack.c.bf16 %v1733, %v1732
      %v1737 = vpack.c.bf16 %v1735, %v1734
      %v1738 = vld [vmem:[%s3] sm:$0xf]
      %v1739 = vld [vmem:[%s3 + $0x4] sm:$0xf]
      %v1740 = vld [vmem:[%s3 + $0x8] sm:$0xf]
      %v1741 = vld [vmem:[%s3 + $0xc] sm:$0xf]
      %v1742 = vld [vmem:[%s3 + $0x10] sm:$0xf]
      %v1743 = vld [vmem:[%s3 + $0x14] sm:$0xf]
      %v1744 = vld [vmem:[%s5] sm:$0x1]
      %v1746 = vlaneseq
      %v1747 = vshrl.u32 %v1746, 7
      %v1748 = vsub.s32 0, %v1747
      %v1749 = vrot.slane %v1744, %v1748
      %v1757 = vunpack.c.l.b16 %v1738
      %v1758 = vunpack.c.l.b16 %v1739
      %v1759 = vunpack.c.l.b16 %v1740
      %v1760 = vunpack.c.l.b16 %v1741
      %v1761 = vunpack.c.l.b16 %v1742
      %v1762 = vunpack.c.l.b16 %v1743
      %v1763 = vpack.c.b16 %v1758, %v1757
      %v1764 = vpack.c.b16 %v1760, %v1759
      %v1765 = vpack.c.b16 %v1762, %v1761
      %vm1769 = vcmask 392192
      %v1771 = vsel %vm1769, %v1736, 0
      %v1774 = vsel %vm1769, %v1737, 0
      %1776 = vmatprep.subr.bf16.mxu0 0
      %1777 = vmatpush1.bf16.msra.mxu0 %v1763
      %1778 = vmatprep.subr.bf16.mxu0 0
      %1779 = vmatpush1.bf16.msra.mxu0 %v1764
      %1780 = vmatprep.subr.bf16.mxu0 0
      %1781 = vmatpush1.bf16.msra.mxu0 %v1765
      %1782 = vmatprep.subr.bf16.mxu0 0
      %1783 = vmatpush1.bf16.msra.mxu0 0
      %1784 = vmatprep.subr.bf16.mxu0 0
      %1785 = vmatpush1.bf16.msra.mxu0 0
      %1786 = vmatprep.subr.bf16.mxu0 0
      %1787 = vmatpush1.bf16.msra.mxu0 0
      %1788 = vmatprep.subr.bf16.mxu0 0
      %1789 = vmatpush1.bf16.msra.mxu0 0
      %1790 = vmatprep.subr.bf16.mxu0 0
      %1791 = vmatpush1.bf16.msra.mxu0 0
      %1792 = vmatprep.subr.bf16.mxu0 0
      %1793 = vmatpush1.bf16.msra.mxu0 0
      %1794 = vmatprep.subr.bf16.mxu0 0
      %1795 = vmatpush1.bf16.msra.mxu0 0
      %1796 = vmatprep.subr.bf16.mxu0 0
      %1797 = vmatpush1.bf16.msra.mxu0 0
      %1798 = vmatprep.subr.bf16.mxu0 0
      %1799 = vmatpush1.bf16.msra.mxu0 0
      %1800 = vmatprep.subr.bf16.mxu0 0
      %1801 = vmatpush1.bf16.msra.mxu0 0
      %1802 = vmatprep.subr.bf16.mxu0 0
      %1803 = vmatpush1.bf16.msra.mxu0 0
      %1804 = vmatprep.subr.bf16.mxu0 0
      %1805 = vmatpush1.bf16.msra.mxu0 0
      %1806 = vmatprep.subr.bf16.mxu0 0
      %1807 = vmatpush1.bf16.msra.mxu0 0
      %1808 = vmatprep.mubr.bf16.mxu0 0
      %1809 = vmatmul.mubr.bf16.gmra.mrb[0].mxu0 %v1771
      %v1810 = vpop.f32.mrb[0].mxu0
      %v1811 = vadd.f32 %v1749, %v1810
      %v1812 = vpop.f32.mrb[0].mxu0
      %v1813 = vpop.f32.mrb[0].mxu0
      %v1814 = vadd.f32 %v1749, %v1813
      %v1815 = vpop.f32.mrb[0].mxu0
      %1816 = vmatprep.mubr.bf16.mxu0 0
      %1817 = vmatmul.mubr.bf16.gmra.mrb[0].mxu0 %v1774
      %v1818 = vpop.f32.mrb[0].mxu0
      %v1819 = vadd.f32 %v1749, %v1818
      %v1820 = vpop.f32.mrb[0].mxu0
      %v1821 = vpop.f32.mrb[0].mxu0
      %v1822 = vadd.f32 %v1749, %v1821
      %v1823 = vpop.f32.mrb[0].mxu0
      %1824 = vdwg.mxu0
      %v1825 = vsel %vm1711, %v1811, 0.0
      %v1826 = vsel %vm1711, %v1814, 0.0
      %v1827 = vadd.f32 %v1825, %v1826
      %v1828 = vsel %vm1711, %v1819, 0.0
      %v1829 = vadd.f32 %v1827, %v1828
      %v1830 = vsel %vm1711, %v1822, 0.0
      %v1831 = vadd.f32 %v1829, %v1830
      %v1832 = vrot.slane %v1831, 4
      %v1833 = vadd.f32 %v1831, %v1832
      %v1834 = vrot.slane %v1833, 2
      %v1835 = vadd.f32 %v1833, %v1834
      %v1836 = vrot.slane %v1835, 1
      %v1837 = vadd.f32 %v1835, %v1836
      %v1838 = vrcp.pop 32.0
      %v1839 = vmul.f32 %v1837, %v1838
      %v1840 = vsub.f32 %v1811, %v1839
      %v1841 = vsub.f32 %v1814, %v1839
      %v1842 = vsub.f32 %v1819, %v1839
      %v1843 = vsub.f32 %v1822, %v1839
      %v1844 = vmul.f32 %v1840, %v1840
      %v1845 = vmul.f32 %v1841, %v1841
      %v1846 = vmul.f32 %v1842, %v1842
      %v1847 = vmul.f32 %v1843, %v1843
      %v1848 = vsel %vm1711, %v1844, 0.0
      %v1849 = vsel %vm1711, %v1845, 0.0
      %v1850 = vadd.f32 %v1848, %v1849
      %v1851 = vsel %vm1711, %v1846, 0.0
      %v1852 = vadd.f32 %v1850, %v1851
      %v1853 = vsel %vm1711, %v1847, 0.0
      %v1854 = vadd.f32 %v1852, %v1853
      %v1855 = vrot.slane %v1854, 4
      %v1856 = vadd.f32 %v1854, %v1855
      %v1857 = vrot.slane %v1856, 2
      %v1858 = vadd.f32 %v1856, %v1857
      %v1859 = vrot.slane %v1858, 1
      %v1860 = vadd.f32 %v1858, %v1859
      %v1861 = vmul.f32 %v1860, %v1838
      %v1862 = vld [vmem:[%s7] sm:$0x1]
      %v1863 = vld [vmem:[%s9] sm:$0x1]
      %v1864 = vadd.f32 %v1861, 1e-05
      %v1865 = vrsqrt.pop %v1864
      %v1866 = vmul.f32 %v1865, %v1862
      %v1867 = vmul.f32 %v1839, %v1866
      %v1868 = vsub.f32 %v1863, %v1867
      %v1869 = vlaneseq
      %v1870 = vshrl.u32 %v1869, 7
      %v1871 = vsub.s32 0, %v1870
      %v1872 = vrot.slane %v1866, %v1871
      %v1873 = vmul.f32 %v1811, %v1872
      %v1874 = vmul.f32 %v1814, %v1872
      %v1875 = vmul.f32 %v1819, %v1872
      %v1876 = vmul.f32 %v1822, %v1872
      %v1878 = vlaneseq
      %v1879 = vshrl.u32 %v1878, 7
      %v1880 = vsub.s32 0, %v1879
      %v1881 = vrot.slane %v1868, %v1880
      %v1883 = vadd.f32 %v1873, %v1881
      %v1884 = vadd.f32 %v1874, %v1881
      %v1885 = vadd.f32 %v1875, %v1881
      %v1886 = vadd.f32 %v1876, %v1881
      %vm1887 = vcmp.ge.f32.partialorder %v1883, 0.0
      %vm1888 = vcmp.ge.f32.partialorder %v1884, 0.0
      %vm1889 = vcmp.ge.f32.partialorder %v1885, 0.0
      %vm1890 = vcmp.ge.f32.partialorder %v1886, 0.0
      %v1891 = vld [vmem:[%s11] sm:$0x1]
      %v1893 = vlaneseq
      %v1894 = vshrl.u32 %v1893, 7
      %v1895 = vsub.s32 0, %v1894
      %v1896 = vrot.slane %v1891, %v1895
      %v1898 = vmul.f32 %v1896, %v1883
      %v1899 = vmul.f32 %v1896, %v1884
      %v1900 = vmul.f32 %v1896, %v1885
      %v1901 = vmul.f32 %v1896, %v1886
      %v1902 = vsel %vm1887, %v1883, %v1898
      %v1903 = vsel %vm1888, %v1884, %v1899
      %v1904 = vsel %vm1889, %v1885, %v1900
      %v1905 = vsel %vm1890, %v1886, %v1901
      %v1910 = vcombine.high %v1902, %v1902
      %v1911 = vcombine.high %v1903, %v1903
      %v1912 = vcombine.high %v1904, %v1904
      %v1913 = vcombine.high %v1905, %v1905
      %1914 = vrot.lane.b32.xlu0 %v1902, 8
      %v1915 = vpop.permute.xlu0 %1914
      %1916 = vrot.lane.b32.xlu0 %v1910, 8
      %v1917 = vpop.permute.xlu0 %1916
      %1918 = vrot.lane.b32.xlu0 %v1903, 8
      %v1919 = vpop.permute.xlu0 %1918
      %1920 = vrot.lane.b32.xlu0 %v1911, 8
      %v1921 = vpop.permute.xlu0 %1920
      %1922 = vrot.lane.b32.xlu0 %v1904, 8
      %v1923 = vpop.permute.xlu0 %1922
      %1924 = vrot.lane.b32.xlu0 %v1912, 8
      %v1925 = vpop.permute.xlu0 %1924
      %1926 = vrot.lane.b32.xlu0 %v1905, 8
      %v1927 = vpop.permute.xlu0 %1926
      %1928 = vrot.lane.b32.xlu0 %v1913, 8
      %v1929 = vpop.permute.xlu0 %1928
      %vm1938 = vcmask 126016
      %1939 = vst.msk [vmem:[%s1516 + $0x1] sm:$0xf] %vm1938, %v1915
      %1940 = vst.msk [vmem:[%s1516 + $0x9] sm:$0xf] %vm1938, %v1917
      %1941 = vst.msk [vmem:[%s1516 + $0x11] sm:$0xf] %vm1938, %v1919
      %1942 = vst.msk [vmem:[%s1516 + $0x19] sm:$0xf] %vm1938, %v1921
      %1943 = vst.msk [vmem:[%s1516 + $0x21] sm:$0xf] %vm1938, %v1923
      %1944 = vst.msk [vmem:[%s1516 + $0x29] sm:$0xf] %vm1938, %v1925
      %1945 = vst.msk [vmem:[%s1516 + $0x31] sm:$0xf] %vm1938, %v1927
      %1946 = vst.msk [vmem:[%s1516 + $0x39] sm:$0xf] %vm1938, %v1929
      %s1947 = scalar_lea.vmem [#allocation2], 48
      %v1948 = vld [vmem:[%s1947] sm:$0xf]
      %v1949 = vld [vmem:[%s1947 + $0x8] sm:$0xf]
      %v1950 = vld [vmem:[%s1947 + $0x10] sm:$0xf]
      %v1951 = vld [vmem:[%s1947 + $0x18] sm:$0xf]
      %v1952 = vld [vmem:[%s1947 + $0x20] sm:$0xf]
      %v1953 = vld [vmem:[%s1947 + $0x28] sm:$0xf]
      %v1954 = vld [vmem:[%s1947 + $0x30] sm:$0xf]
      %v1955 = vld [vmem:[%s1947 + $0x38] sm:$0xf]
      %v1956 = vld [vmem:[%s1947 + $0x1] sm:$0xf]
      %v1957 = vld [vmem:[%s1947 + $0x9] sm:$0xf]
      %v1958 = vld [vmem:[%s1947 + $0x11] sm:$0xf]
      %v1959 = vld [vmem:[%s1947 + $0x19] sm:$0xf]
      %v1960 = vld [vmem:[%s1947 + $0x21] sm:$0xf]
      %v1961 = vld [vmem:[%s1947 + $0x29] sm:$0xf]
      %v1962 = vld [vmem:[%s1947 + $0x31] sm:$0xf]
      %v1963 = vld [vmem:[%s1947 + $0x39] sm:$0xf]
      %v1964 = vld [vmem:[%s1947 + $0x2] sm:$0xf]
      %v1965 = vld [vmem:[%s1947 + $0xa] sm:$0xf]
      %v1966 = vld [vmem:[%s1947 + $0x12] sm:$0xf]
      %v1967 = vld [vmem:[%s1947 + $0x1a] sm:$0xf]
      %v1968 = vld [vmem:[%s1947 + $0x22] sm:$0xf]
      %v1969 = vld [vmem:[%s1947 + $0x2a] sm:$0xf]
      %v1970 = vld [vmem:[%s1947 + $0x32] sm:$0xf]
      %v1971 = vld [vmem:[%s1947 + $0x3a] sm:$0xf]
      %v1972 = vld [vmem:[%s1516] sm:$0xf]
      %v1973 = vld [vmem:[%s1516 + $0x8] sm:$0xf]
      %v1974 = vld [vmem:[%s1516 + $0x10] sm:$0xf]
      %v1975 = vld [vmem:[%s1516 + $0x18] sm:$0xf]
      %v1976 = vld [vmem:[%s1516 + $0x20] sm:$0xf]
      %v1977 = vld [vmem:[%s1516 + $0x28] sm:$0xf]
      %v1978 = vld [vmem:[%s1516 + $0x30] sm:$0xf]
      %v1979 = vld [vmem:[%s1516 + $0x38] sm:$0xf]
      %v1980 = vld [vmem:[%s1516 + $0x1] sm:$0xf]
      %v1981 = vld [vmem:[%s1516 + $0x9] sm:$0xf]
      %v1982 = vld [vmem:[%s1516 + $0x11] sm:$0xf]
      %v1983 = vld [vmem:[%s1516 + $0x19] sm:$0xf]
      %v1984 = vld [vmem:[%s1516 + $0x21] sm:$0xf]
      %v1985 = vld [vmem:[%s1516 + $0x29] sm:$0xf]
      %v1986 = vld [vmem:[%s1516 + $0x31] sm:$0xf]
      %v1987 = vld [vmem:[%s1516 + $0x39] sm:$0xf]
      %v1988 = vld [vmem:[%s1516 + $0x2] sm:$0xf]
      %v1989 = vld [vmem:[%s1516 + $0xa] sm:$0xf]
      %v1990 = vld [vmem:[%s1516 + $0x12] sm:$0xf]
      %v1991 = vld [vmem:[%s1516 + $0x1a] sm:$0xf]
      %v1992 = vld [vmem:[%s1516 + $0x22] sm:$0xf]
      %v1993 = vld [vmem:[%s1516 + $0x2a] sm:$0xf]
      %v1994 = vld [vmem:[%s1516 + $0x32] sm:$0xf]
      %v1995 = vld [vmem:[%s1516 + $0x3a] sm:$0xf]
      %v2004 = vcombine.low %v1948, %v1949
      %v2005 = vcombine.low %v1950, %v1951
      %v2006 = vcombine.low %v1952, %v1953
      %v2007 = vcombine.low %v1954, %v1955
      %v2020 = vcombine.low %v1956, %v1957
      %v2021 = vcombine.low %v1958, %v1959
      %v2022 = vcombine.low %v1960, %v1961
      %v2023 = vcombine.low %v1962, %v1963
      %2024 = vrot.lane.b32.xlu0 %v2020, 16
      %v2025 = vpop.permute.xlu0 %2024
      %2026 = vrot.lane.b32.xlu0 %v2021, 16
      %v2027 = vpop.permute.xlu0 %2026
      %2028 = vrot.lane.b32.xlu0 %v2022, 16
      %v2029 = vpop.permute.xlu0 %2028
      %2030 = vrot.lane.b32.xlu0 %v2023, 16
      %v2031 = vpop.permute.xlu0 %2030
      %v2044 = vcombine.low %v1964, %v1965
      %v2045 = vcombine.low %v1966, %v1967
      %v2046 = vcombine.low %v1968, %v1969
      %v2047 = vcombine.low %v1970, %v1971
      %2048 = vrot.lane.b32.xlu0 %v2044, 32
      %v2049 = vpop.permute.xlu0 %2048
      %2050 = vrot.lane.b32.xlu0 %v2045, 32
      %v2051 = vpop.permute.xlu0 %2050
      %2052 = vrot.lane.b32.xlu0 %v2046, 32
      %v2053 = vpop.permute.xlu0 %2052
      %2054 = vrot.lane.b32.xlu0 %v2047, 32
      %v2055 = vpop.permute.xlu0 %2054
      %v2068 = vcombine.low %v1972, %v1973
      %v2069 = vcombine.low %v1974, %v1975
      %v2070 = vcombine.low %v1976, %v1977
      %v2071 = vcombine.low %v1978, %v1979
      %2072 = vrot.lane.b32.xlu0 %v2068, 48
      %v2073 = vpop.permute.xlu0 %2072
      %2074 = vrot.lane.b32.xlu0 %v2069, 48
      %v2075 = vpop.permute.xlu0 %2074
      %2076 = vrot.lane.b32.xlu0 %v2070, 48
      %v2077 = vpop.permute.xlu0 %2076
      %2078 = vrot.lane.b32.xlu0 %v2071, 48
      %v2079 = vpop.permute.xlu0 %2078
      %v2092 = vcombine.low %v1980, %v1981
      %v2093 = vcombine.low %v1982, %v1983
      %v2094 = vcombine.low %v1984, %v1985
      %v2095 = vcombine.low %v1986, %v1987
      %2096 = vrot.lane.b32.xlu0 %v2092, 64
      %v2097 = vpop.permute.xlu0 %2096
      %2098 = vrot.lane.b32.xlu0 %v2093, 64
      %v2099 = vpop.permute.xlu0 %2098
      %2100 = vrot.lane.b32.xlu0 %v2094, 64
      %v2101 = vpop.permute.xlu0 %2100
      %2102 = vrot.lane.b32.xlu0 %v2095, 64
      %v2103 = vpop.permute.xlu0 %2102
      %v2116 = vcombine.low %v1988, %v1989
      %v2117 = vcombine.low %v1990, %v1991
      %v2118 = vcombine.low %v1992, %v1993
      %v2119 = vcombine.low %v1994, %v1995
      %2120 = vrot.lane.b32.xlu0 %v2116, 80
      %v2121 = vpop.permute.xlu0 %2120
      %2122 = vrot.lane.b32.xlu0 %v2117, 80
      %v2123 = vpop.permute.xlu0 %2122
      %2124 = vrot.lane.b32.xlu0 %v2118, 80
      %v2125 = vpop.permute.xlu0 %2124
      %2126 = vrot.lane.b32.xlu0 %v2119, 80
      %v2127 = vpop.permute.xlu0 %2126
      %v2132 = vsel %vm1716, %v2004, %v2025
      %v2133 = vsel %vm1716, %v2005, %v2027
      %v2134 = vsel %vm1716, %v2006, %v2029
      %v2135 = vsel %vm1716, %v2007, %v2031
      %v2136 = vsel %vm1726, %v2132, %v2049
      %v2137 = vsel %vm1726, %v2133, %v2051
      %v2138 = vsel %vm1726, %v2134, %v2053
      %v2139 = vsel %vm1726, %v2135, %v2055
      %v2140 = vsel %vm1769, %v2136, %v2073
      %v2141 = vsel %vm1769, %v2137, %v2075
      %v2142 = vsel %vm1769, %v2138, %v2077
      %v2143 = vsel %vm1769, %v2139, %v2079
      %vm2144 = vcmask 523264
      %v2145 = vsel %vm2144, %v2140, %v2097
      %v2146 = vsel %vm2144, %v2141, %v2099
      %v2147 = vsel %vm2144, %v2142, %v2101
      %v2148 = vsel %vm2144, %v2143, %v2103
      %vm2149 = vcmask 654336
      %v2150 = vsel %vm2149, %v2145, %v2121
      %v2151 = vsel %vm2149, %v2146, %v2123
      %v2152 = vsel %vm2149, %v2147, %v2125
      %v2153 = vsel %vm2149, %v2148, %v2127
      %v2154 = vpack.c.bf16 %v2151, %v2150
      %v2155 = vpack.c.bf16 %v2153, %v2152
      %v2156 = vld [vmem:[%s13] sm:$0xf]
      %v2157 = vld [vmem:[%s13 + $0x4] sm:$0xf]
      %v2158 = vld [vmem:[%s13 + $0x8] sm:$0xf]
      %v2159 = vld [vmem:[%s13 + $0xc] sm:$0xf]
      %v2160 = vld [vmem:[%s13 + $0x10] sm:$0xf]
      %v2161 = vld [vmem:[%s13 + $0x14] sm:$0xf]
      %v2162 = vld [vmem:[%s13 + $0x18] sm:$0xf]
      %v2163 = vld [vmem:[%s13 + $0x1c] sm:$0xf]
      %v2164 = vld [vmem:[%s13 + $0x20] sm:$0xf]
      %v2165 = vld [vmem:[%s13 + $0x24] sm:$0xf]
      %v2166 = vld [vmem:[%s13 + $0x28] sm:$0xf]
      %v2167 = vld [vmem:[%s13 + $0x2c] sm:$0xf]
      %v2168 = vld [vmem:[%s15] sm:$0x1]
      %v2170 = vlaneseq
      %v2171 = vshrl.u32 %v2170, 7
      %v2172 = vsub.s32 0, %v2171
      %v2173 = vrot.slane %v2168, %v2172
      %v2187 = vunpack.c.l.b16 %v2156
      %v2188 = vunpack.c.l.b16 %v2157
      %v2189 = vunpack.c.l.b16 %v2158
      %v2190 = vunpack.c.l.b16 %v2159
      %v2191 = vunpack.c.l.b16 %v2160
      %v2192 = vunpack.c.l.b16 %v2161
      %v2193 = vunpack.c.l.b16 %v2162
      %v2194 = vunpack.c.l.b16 %v2163
      %v2195 = vunpack.c.l.b16 %v2164
      %v2196 = vunpack.c.l.b16 %v2165
      %v2197 = vunpack.c.l.b16 %v2166
      %v2198 = vunpack.c.l.b16 %v2167
      %v2199 = vpack.c.b16 %v2188, %v2187
      %v2200 = vpack.c.b16 %v2190, %v2189
      %v2201 = vpack.c.b16 %v2192, %v2191
      %v2202 = vpack.c.b16 %v2194, %v2193
      %v2203 = vpack.c.b16 %v2196, %v2195
      %v2204 = vpack.c.b16 %v2198, %v2197
      %vm2211 = vcmask 785408
      %v2213 = vsel %vm2211, %v2154, 0
      %v2216 = vsel %vm2211, %v2155, 0
      %2218 = vmatprep.subr.bf16.mxu0 0
      %2219 = vmatpush1.bf16.msra.mxu0 %v2199
      %2220 = vmatprep.subr.bf16.mxu0 0
      %2221 = vmatpush1.bf16.msra.mxu0 %v2200
      %2222 = vmatprep.subr.bf16.mxu0 0
      %2223 = vmatpush1.bf16.msra.mxu0 %v2201
      %2224 = vmatprep.subr.bf16.mxu0 0
      %2225 = vmatpush1.bf16.msra.mxu0 %v2202
      %2226 = vmatprep.subr.bf16.mxu0 0
      %2227 = vmatpush1.bf16.msra.mxu0 %v2203
      %2228 = vmatprep.subr.bf16.mxu0 0
      %2229 = vmatpush1.bf16.msra.mxu0 %v2204
      %2230 = vmatprep.subr.bf16.mxu0 0
      %2231 = vmatpush1.bf16.msra.mxu0 0
      %2232 = vmatprep.subr.bf16.mxu0 0
      %2233 = vmatpush1.bf16.msra.mxu0 0
      %2234 = vmatprep.subr.bf16.mxu0 0
      %2235 = vmatpush1.bf16.msra.mxu0 0
      %2236 = vmatprep.subr.bf16.mxu0 0
      %2237 = vmatpush1.bf16.msra.mxu0 0
      %2238 = vmatprep.subr.bf16.mxu0 0
      %2239 = vmatpush1.bf16.msra.mxu0 0
      %2240 = vmatprep.subr.bf16.mxu0 0
      %2241 = vmatpush1.bf16.msra.mxu0 0
      %2242 = vmatprep.subr.bf16.mxu0 0
      %2243 = vmatpush1.bf16.msra.mxu0 0
      %2244 = vmatprep.subr.bf16.mxu0 0
      %2245 = vmatpush1.bf16.msra.mxu0 0
      %2246 = vmatprep.subr.bf16.mxu0 0
      %2247 = vmatpush1.bf16.msra.mxu0 0
      %2248 = vmatprep.subr.bf16.mxu0 0
      %2249 = vmatpush1.bf16.msra.mxu0 0
      %2250 = vmatprep.mubr.bf16.mxu0 0
      %2251 = vmatmul.mubr.bf16.gmra.mrb[0].mxu0 %v2213
      %v2252 = vpop.f32.mrb[0].mxu0
      %v2253 = vadd.f32 %v2173, %v2252
      %v2254 = vpop.f32.mrb[0].mxu0
      %v2255 = vpop.f32.mrb[0].mxu0
      %v2256 = vadd.f32 %v2173, %v2255
      %v2257 = vpop.f32.mrb[0].mxu0
      %2258 = vmatprep.mubr.bf16.mxu0 0
      %2259 = vmatmul.mubr.bf16.gmra.mrb[0].mxu0 %v2216
      %v2260 = vpop.f32.mrb[0].mxu0
      %v2261 = vadd.f32 %v2173, %v2260
      %v2262 = vpop.f32.mrb[0].mxu0
      %v2263 = vpop.f32.mrb[0].mxu0
      %v2264 = vadd.f32 %v2173, %v2263
      %v2265 = vpop.f32.mrb[0].mxu0
      %2266 = vdwg.mxu0
      %v2267 = vsel %vm1711, %v2253, 0.0
      %v2268 = vsel %vm1711, %v2256, 0.0
      %v2269 = vadd.f32 %v2267, %v2268
      %v2270 = vsel %vm1711, %v2261, 0.0
      %v2271 = vadd.f32 %v2269, %v2270
      %v2272 = vsel %vm1711, %v2264, 0.0
      %v2273 = vadd.f32 %v2271, %v2272
      %v2274 = vrot.slane %v2273, 4
      %v2275 = vadd.f32 %v2273, %v2274
      %v2276 = vrot.slane %v2275, 2
      %v2277 = vadd.f32 %v2275, %v2276
      %v2278 = vrot.slane %v2277, 1
      %v2279 = vadd.f32 %v2277, %v2278
      %v2280 = vmul.f32 %v2279, %v1838
      %v2281 = vsub.f32 %v2253, %v2280
      %v2282 = vsub.f32 %v2256, %v2280
      %v2283 = vsub.f32 %v2261, %v2280
      %v2284 = vsub.f32 %v2264, %v2280
      %v2285 = vmul.f32 %v2281, %v2281
      %v2286 = vmul.f32 %v2282, %v2282
      %v2287 = vmul.f32 %v2283, %v2283
      %v2288 = vmul.f32 %v2284, %v2284
      %v2289 = vsel %vm1711, %v2285, 0.0
      %v2290 = vsel %vm1711, %v2286, 0.0
      %v2291 = vadd.f32 %v2289, %v2290
      %v2292 = vsel %vm1711, %v2287, 0.0
      %v2293 = vadd.f32 %v2291, %v2292
      %v2294 = vsel %vm1711, %v2288, 0.0
      %v2295 = vadd.f32 %v2293, %v2294
      %v2296 = vrot.slane %v2295, 4
      %v2297 = vadd.f32 %v2295, %v2296
      %v2298 = vrot.slane %v2297, 2
      %v2299 = vadd.f32 %v2297, %v2298
      %v2300 = vrot.slane %v2299, 1
      %v2301 = vadd.f32 %v2299, %v2300
      %v2302 = vmul.f32 %v2301, %v1838
      %v2303 = vld [vmem:[%s17] sm:$0x1]
      %v2304 = vld [vmem:[%s19] sm:$0x1]
      %v2305 = vadd.f32 %v2302, 1e-05
      %v2306 = vrsqrt.pop %v2305
      %v2307 = vmul.f32 %v2306, %v2303
      %v2308 = vmul.f32 %v2280, %v2307
      %v2309 = vsub.f32 %v2304, %v2308
      %v2310 = vlaneseq
      %v2311 = vshrl.u32 %v2310, 7
      %v2312 = vsub.s32 0, %v2311
      %v2313 = vrot.slane %v2307, %v2312
      %v2314 = vmul.f32 %v2253, %v2313
      %v2315 = vmul.f32 %v2256, %v2313
      %v2316 = vmul.f32 %v2261, %v2313
      %v2317 = vmul.f32 %v2264, %v2313
      %v2319 = vlaneseq
      %v2320 = vshrl.u32 %v2319, 7
      %v2321 = vsub.s32 0, %v2320
      %v2322 = vrot.slane %v2309, %v2321
      %v2324 = vadd.f32 %v2314, %v2322
      %v2325 = vadd.f32 %v2315, %v2322
      %v2326 = vadd.f32 %v2316, %v2322
      %v2327 = vadd.f32 %v2317, %v2322
      %vm2328 = vcmp.ge.f32.partialorder %v2324, 0.0
      %vm2329 = vcmp.ge.f32.partialorder %v2325, 0.0
      %vm2330 = vcmp.ge.f32.partialorder %v2326, 0.0
      %vm2331 = vcmp.ge.f32.partialorder %v2327, 0.0
      %v2332 = vld [vmem:[%s21] sm:$0x1]
      %v2334 = vlaneseq
      %v2335 = vshrl.u32 %v2334, 7
      %v2336 = vsub.s32 0, %v2335
      %v2337 = vrot.slane %v2332, %v2336
      %v2339 = vmul.f32 %v2337, %v2324
      %v2340 = vmul.f32 %v2337, %v2325
      %v2341 = vmul.f32 %v2337, %v2326
      %v2342 = vmul.f32 %v2337, %v2327
      %v2343 = vsel %vm2328, %v2324, %v2339
      %v2344 = vsel %vm2329, %v2325, %v2340
      %v2345 = vsel %vm2330, %v2326, %v2341
      %v2346 = vsel %vm2331, %v2327, %v2342
      %v2351 = vcombine.high %v2343, %v2343
      %v2352 = vcombine.high %v2344, %v2344
      %v2353 = vcombine.high %v2345, %v2345
      %v2354 = vcombine.high %v2346, %v2346
      %2355 = vrot.lane.b32.xlu0 %v2343, 16
      %v2356 = vpop.permute.xlu0 %2355
      %2357 = vrot.lane.b32.xlu0 %v2351, 16
      %v2358 = vpop.permute.xlu0 %2357
      %2359 = vrot.lane.b32.xlu0 %v2344, 16
      %v2360 = vpop.permute.xlu0 %2359
      %2361 = vrot.lane.b32.xlu0 %v2352, 16
      %v2362 = vpop.permute.xlu0 %2361
      %2363 = vrot.lane.b32.xlu0 %v2345, 16
      %v2364 = vpop.permute.xlu0 %2363
      %2365 = vrot.lane.b32.xlu0 %v2353, 16
      %v2366 = vpop.permute.xlu0 %2365
      %2367 = vrot.lane.b32.xlu0 %v2346, 16
      %v2368 = vpop.permute.xlu0 %2367
      %2369 = vrot.lane.b32.xlu0 %v2354, 16
      %v2370 = vpop.permute.xlu0 %2369
      %vm2379 = vcmask 191616
      %2380 = vst.msk [vmem:[%s1516 + $0x1] sm:$0xf] %vm2379, %v2356
      %2381 = vst.msk [vmem:[%s1516 + $0x9] sm:$0xf] %vm2379, %v2358
      %2382 = vst.msk [vmem:[%s1516 + $0x11] sm:$0xf] %vm2379, %v2360
      %2383 = vst.msk [vmem:[%s1516 + $0x19] sm:$0xf] %vm2379, %v2362
      %2384 = vst.msk [vmem:[%s1516 + $0x21] sm:$0xf] %vm2379, %v2364
      %2385 = vst.msk [vmem:[%s1516 + $0x29] sm:$0xf] %vm2379, %v2366
      %2386 = vst.msk [vmem:[%s1516 + $0x31] sm:$0xf] %vm2379, %v2368
      %2387 = vst.msk [vmem:[%s1516 + $0x39] sm:$0xf] %vm2379, %v2370
      %s2388 = scalar_lea.vmem [#allocation2], 32
      %v2389 = vld [vmem:[%s2388] sm:$0xf]
      %v2390 = vld [vmem:[%s2388 + $0x8] sm:$0xf]
      %v2391 = vld [vmem:[%s2388 + $0x10] sm:$0xf]
      %v2392 = vld [vmem:[%s2388 + $0x18] sm:$0xf]
      %v2393 = vld [vmem:[%s2388 + $0x20] sm:$0xf]
      %v2394 = vld [vmem:[%s2388 + $0x28] sm:$0xf]
      %v2395 = vld [vmem:[%s2388 + $0x30] sm:$0xf]
      %v2396 = vld [vmem:[%s2388 + $0x38] sm:$0xf]
      %v2397 = vld [vmem:[%s2388 + $0x1] sm:$0xf]
      %v2398 = vld [vmem:[%s2388 + $0x9] sm:$0xf]
      %v2399 = vld [vmem:[%s2388 + $0x11] sm:$0xf]
      %v2400 = vld [vmem:[%s2388 + $0x19] sm:$0xf]
      %v2401 = vld [vmem:[%s2388 + $0x21] sm:$0xf]
      %v2402 = vld [vmem:[%s2388 + $0x29] sm:$0xf]
      %v2403 = vld [vmem:[%s2388 + $0x31] sm:$0xf]
      %v2404 = vld [vmem:[%s2388 + $0x39] sm:$0xf]
      %v2405 = vld [vmem:[%s2388 + $0x2] sm:$0xf]
      %v2406 = vld [vmem:[%s2388 + $0xa] sm:$0xf]
      %v2407 = vld [vmem:[%s2388 + $0x12] sm:$0xf]
      %v2408 = vld [vmem:[%s2388 + $0x1a] sm:$0xf]
      %v2409 = vld [vmem:[%s2388 + $0x22] sm:$0xf]
      %v2410 = vld [vmem:[%s2388 + $0x2a] sm:$0xf]
      %v2411 = vld [vmem:[%s2388 + $0x32] sm:$0xf]
      %v2412 = vld [vmem:[%s2388 + $0x3a] sm:$0xf]
      %v2413 = vld [vmem:[%s1516] sm:$0xf]
      %v2414 = vld [vmem:[%s1516 + $0x8] sm:$0xf]
      %v2415 = vld [vmem:[%s1516 + $0x10] sm:$0xf]
      %v2416 = vld [vmem:[%s1516 + $0x18] sm:$0xf]
      %v2417 = vld [vmem:[%s1516 + $0x20] sm:$0xf]
      %v2418 = vld [vmem:[%s1516 + $0x28] sm:$0xf]
      %v2419 = vld [vmem:[%s1516 + $0x30] sm:$0xf]
      %v2420 = vld [vmem:[%s1516 + $0x38] sm:$0xf]
      %v2421 = vld [vmem:[%s1516 + $0x1] sm:$0xf]
      %v2422 = vld [vmem:[%s1516 + $0x9] sm:$0xf]
      %v2423 = vld [vmem:[%s1516 + $0x11] sm:$0xf]
      %v2424 = vld [vmem:[%s1516 + $0x19] sm:$0xf]
      %v2425 = vld [vmem:[%s1516 + $0x21] sm:$0xf]
      %v2426 = vld [vmem:[%s1516 + $0x29] sm:$0xf]
      %v2427 = vld [vmem:[%s1516 + $0x31] sm:$0xf]
      %v2428 = vld [vmem:[%s1516 + $0x39] sm:$0xf]
      %v2429 = vld [vmem:[%s1516 + $0x2] sm:$0xf]
      %v2430 = vld [vmem:[%s1516 + $0xa] sm:$0xf]
      %v2431 = vld [vmem:[%s1516 + $0x12] sm:$0xf]
      %v2432 = vld [vmem:[%s1516 + $0x1a] sm:$0xf]
      %v2433 = vld [vmem:[%s1516 + $0x22] sm:$0xf]
      %v2434 = vld [vmem:[%s1516 + $0x2a] sm:$0xf]
      %v2435 = vld [vmem:[%s1516 + $0x32] sm:$0xf]
      %v2436 = vld [vmem:[%s1516 + $0x3a] sm:$0xf]
      %v2445 = vcombine.low %v2389, %v2390
      %v2446 = vcombine.low %v2391, %v2392
      %v2447 = vcombine.low %v2393, %v2394
      %v2448 = vcombine.low %v2395, %v2396
      %v2461 = vcombine.low %v2397, %v2398
      %v2462 = vcombine.low %v2399, %v2400
      %v2463 = vcombine.low %v2401, %v2402
      %v2464 = vcombine.low %v2403, %v2404
      %2465 = vrot.lane.b32.xlu0 %v2461, 24
      %v2466 = vpop.permute.xlu0 %2465
      %2467 = vrot.lane.b32.xlu0 %v2462, 24
      %v2468 = vpop.permute.xlu0 %2467
      %2469 = vrot.lane.b32.xlu0 %v2463, 24
      %v2470 = vpop.permute.xlu0 %2469
      %2471 = vrot.lane.b32.xlu0 %v2464, 24
      %v2472 = vpop.permute.xlu0 %2471
      %v2485 = vcombine.low %v2405, %v2406
      %v2486 = vcombine.low %v2407, %v2408
      %v2487 = vcombine.low %v2409, %v2410
      %v2488 = vcombine.low %v2411, %v2412
      %2489 = vrot.lane.b32.xlu0 %v2485, 48
      %v2490 = vpop.permute.xlu0 %2489
      %2491 = vrot.lane.b32.xlu0 %v2486, 48
      %v2492 = vpop.permute.xlu0 %2491
      %2493 = vrot.lane.b32.xlu0 %v2487, 48
      %v2494 = vpop.permute.xlu0 %2493
      %2495 = vrot.lane.b32.xlu0 %v2488, 48
      %v2496 = vpop.permute.xlu0 %2495
      %v2509 = vcombine.low %v2413, %v2414
      %v2510 = vcombine.low %v2415, %v2416
      %v2511 = vcombine.low %v2417, %v2418
      %v2512 = vcombine.low %v2419, %v2420
      %2513 = vrot.lane.b32.xlu0 %v2509, 72
      %v2514 = vpop.permute.xlu0 %2513
      %2515 = vrot.lane.b32.xlu0 %v2510, 72
      %v2516 = vpop.permute.xlu0 %2515
      %2517 = vrot.lane.b32.xlu0 %v2511, 72
      %v2518 = vpop.permute.xlu0 %2517
      %2519 = vrot.lane.b32.xlu0 %v2512, 72
      %v2520 = vpop.permute.xlu0 %2519
      %v2533 = vcombine.low %v2421, %v2422
      %v2534 = vcombine.low %v2423, %v2424
      %v2535 = vcombine.low %v2425, %v2426
      %v2536 = vcombine.low %v2427, %v2428
      %2537 = vrot.lane.b32.xlu0 %v2533, 96
      %v2538 = vpop.permute.xlu0 %2537
      %2539 = vrot.lane.b32.xlu0 %v2534, 96
      %v2540 = vpop.permute.xlu0 %2539
      %2541 = vrot.lane.b32.xlu0 %v2535, 96
      %v2542 = vpop.permute.xlu0 %2541
      %2543 = vrot.lane.b32.xlu0 %v2536, 96
      %v2544 = vpop.permute.xlu0 %2543
      %v2557 = vcombine.low %v2429, %v2430
      %v2558 = vcombine.low %v2431, %v2432
      %v2559 = vcombine.low %v2433, %v2434
      %v2560 = vcombine.low %v2435, %v2436
      %2561 = vrot.lane.b32.xlu0 %v2557, 120
      %v2562 = vpop.permute.xlu0 %2561
      %2563 = vrot.lane.b32.xlu0 %v2558, 120
      %v2564 = vpop.permute.xlu0 %2563
      %2565 = vrot.lane.b32.xlu0 %v2559, 120
      %v2566 = vpop.permute.xlu0 %2565
      %2567 = vrot.lane.b32.xlu0 %v2560, 120
      %v2568 = vpop.permute.xlu0 %2567
      %v2573 = vsel %vm1721, %v2445, %v2466
      %v2574 = vsel %vm1721, %v2446, %v2468
      %v2575 = vsel %vm1721, %v2447, %v2470
      %v2576 = vsel %vm1721, %v2448, %v2472
      %v2577 = vsel %vm1769, %v2573, %v2490
      %v2578 = vsel %vm1769, %v2574, %v2492
      %v2579 = vsel %vm1769, %v2575, %v2494
      %v2580 = vsel %vm1769, %v2576, %v2496
      %vm2581 = vcmask 588800
      %v2582 = vsel %vm2581, %v2577, %v2514
      %v2583 = vsel %vm2581, %v2578, %v2516
      %v2584 = vsel %vm2581, %v2579, %v2518
      %v2585 = vsel %vm2581, %v2580, %v2520
      %v2586 = vsel %vm2211, %v2582, %v2538
      %v2587 = vsel %vm2211, %v2583, %v2540
      %v2588 = vsel %vm2211, %v2584, %v2542
      %v2589 = vsel %vm2211, %v2585, %v2544
      %vm2590 = vcmask 982016
      %v2591 = vsel %vm2590, %v2586, %v2562
      %v2592 = vsel %vm2590, %v2587, %v2564
      %v2593 = vsel %vm2590, %v2588, %v2566
      %v2594 = vsel %vm2590, %v2589, %v2568
      %v2595 = vpack.c.bf16 %v2592, %v2591
      %v2596 = vpack.c.bf16 %v2564, %v2562
      %v2597 = vpack.c.bf16 %v2594, %v2593
      %v2598 = vpack.c.bf16 %v2568, %v2566
      %v2599 = vld [vmem:[%s23] sm:$0xf]
      %v2600 = vld [vmem:[%s23 + $0x4] sm:$0xf]
      %v2601 = vld [vmem:[%s23 + $0x8] sm:$0xf]
      %v2602 = vld [vmem:[%s23 + $0xc] sm:$0xf]
      %v2603 = vld [vmem:[%s23 + $0x10] sm:$0xf]
      %v2604 = vld [vmem:[%s23 + $0x14] sm:$0xf]
      %v2605 = vld [vmem:[%s23 + $0x18] sm:$0xf]
      %v2606 = vld [vmem:[%s23 + $0x1c] sm:$0xf]
      %v2607 = vld [vmem:[%s23 + $0x20] sm:$0xf]
      %v2608 = vld [vmem:[%s23 + $0x24] sm:$0xf]
      %v2609 = vld [vmem:[%s23 + $0x28] sm:$0xf]
      %v2610 = vld [vmem:[%s23 + $0x2c] sm:$0xf]
      %v2611 = vld [vmem:[%s23 + $0x30] sm:$0xf]
      %v2612 = vld [vmem:[%s23 + $0x34] sm:$0xf]
      %v2613 = vld [vmem:[%s23 + $0x38] sm:$0xf]
      %v2614 = vld [vmem:[%s23 + $0x3c] sm:$0xf]
      %v2615 = vld [vmem:[%s23 + $0x40] sm:$0xf]
      %v2616 = vld [vmem:[%s23 + $0x44] sm:$0xf]
      %v2617 = vld [vmem:[%s25] sm:$0x1]
      %v2619 = vlaneseq
      %v2620 = vshrl.u32 %v2619, 7
      %v2621 = vsub.s32 0, %v2620
      %v2622 = vrot.slane %v2617, %v2621
      %v2642 = vunpack.c.l.b16 %v2599
      %v2643 = vunpack.c.l.b16 %v2600
      %v2644 = vunpack.c.l.b16 %v2601
      %v2645 = vunpack.c.l.b16 %v2602
      %v2646 = vunpack.c.l.b16 %v2603
      %v2647 = vunpack.c.l.b16 %v2604
      %v2648 = vunpack.c.l.b16 %v2605
      %v2649 = vunpack.c.l.b16 %v2606
      %v2650 = vunpack.c.l.b16 %v2607
      %v2651 = vunpack.c.l.b16 %v2608
      %v2652 = vunpack.c.l.b16 %v2609
      %v2653 = vunpack.c.l.b16 %v2610
      %v2654 = vunpack.c.l.b16 %v2611
      %v2655 = vunpack.c.l.b16 %v2612
      %v2656 = vunpack.c.l.b16 %v2613
      %v2657 = vunpack.c.l.b16 %v2614
      %v2658 = vunpack.c.l.b16 %v2615
      %v2659 = vunpack.c.l.b16 %v2616
      %v2660 = vpack.c.b16 %v2643, %v2642
      %v2661 = vpack.c.b16 %v2645, %v2644
      %v2662 = vpack.c.b16 %v2647, %v2646
      %v2663 = vpack.c.b16 %v2649, %v2648
      %v2664 = vpack.c.b16 %v2651, %v2650
      %v2665 = vpack.c.b16 %v2653, %v2652
      %v2666 = vpack.c.b16 %v2655, %v2654
      %v2667 = vpack.c.b16 %v2657, %v2656
      %v2668 = vpack.c.b16 %v2659, %v2658
      %v2679 = vsel %vm1716, %v2596, 0
      %v2682 = vsel %vm1716, %v2598, 0
      %2684 = vmatprep.subr.bf16.mxu0 0
      %2685 = vmatpush1.bf16.msra.mxu0 %v2660
      %2686 = vmatprep.subr.bf16.mxu0 0
      %2687 = vmatpush1.bf16.msra.mxu0 %v2661
      %2688 = vmatprep.subr.bf16.mxu0 0
      %2689 = vmatpush1.bf16.msra.mxu0 %v2662
      %2690 = vmatprep.subr.bf16.mxu0 0
      %2691 = vmatpush1.bf16.msra.mxu0 %v2663
      %2692 = vmatprep.subr.bf16.mxu0 0
      %2693 = vmatpush1.bf16.msra.mxu0 %v2664
      %2694 = vmatprep.subr.bf16.mxu0 0
      %2695 = vmatpush1.bf16.msra.mxu0 %v2665
      %2696 = vmatprep.subr.bf16.mxu0 0
      %2697 = vmatpush1.bf16.msra.mxu0 %v2666
      %2698 = vmatprep.subr.bf16.mxu0 0
      %2699 = vmatpush1.bf16.msra.mxu0 %v2667
      %2700 = vmatprep.subr.bf16.mxu0 0
      %2701 = vmatpush1.bf16.msra.mxu0 %v2668
      %2702 = vmatprep.subr.bf16.mxu0 0
      %2703 = vmatpush1.bf16.msra.mxu0 0
      %2704 = vmatprep.subr.bf16.mxu0 0
      %2705 = vmatpush1.bf16.msra.mxu0 0
      %2706 = vmatprep.subr.bf16.mxu0 0
      %2707 = vmatpush1.bf16.msra.mxu0 0
      %2708 = vmatprep.subr.bf16.mxu0 0
      %2709 = vmatpush1.bf16.msra.mxu0 0
      %2710 = vmatprep.subr.bf16.mxu0 0
      %2711 = vmatpush1.bf16.msra.mxu0 0
      %2712 = vmatprep.subr.bf16.mxu0 0
      %2713 = vmatpush1.bf16.msra.mxu0 0
      %2714 = vmatprep.subr.bf16.mxu0 0
      %2715 = vmatpush1.bf16.msra.mxu0 0
      %2716 = vmatprep.mubr.bf16.mxu0 %v2679
      %2717 = vmatmul.mubr.bf16.gmra.mrb[0].mxu0 %v2595
      %v2718 = vpop.f32.mrb[0].mxu0
      %v2719 = vadd.f32 %v2622, %v2718
      %v2720 = vpop.f32.mrb[0].mxu0
      %v2721 = vpop.f32.mrb[0].mxu0
      %v2722 = vadd.f32 %v2622, %v2721
      %v2723 = vpop.f32.mrb[0].mxu0
      %2724 = vmatprep.mubr.bf16.mxu0 %v2682
      %2725 = vmatmul.mubr.bf16.gmra.mrb[0].mxu0 %v2597
      %v2726 = vpop.f32.mrb[0].mxu0
      %v2727 = vadd.f32 %v2622, %v2726
      %v2728 = vpop.f32.mrb[0].mxu0
      %v2729 = vpop.f32.mrb[0].mxu0
      %v2730 = vadd.f32 %v2622, %v2729
      %v2731 = vpop.f32.mrb[0].mxu0
      %2732 = vdwg.mxu0
      %v2733 = vsel %vm1711, %v2719, 0.0
      %v2734 = vsel %vm1711, %v2722, 0.0
      %v2735 = vadd.f32 %v2733, %v2734
      %v2736 = vsel %vm1711, %v2727, 0.0
      %v2737 = vadd.f32 %v2735, %v2736
      %v2738 = vsel %vm1711, %v2730, 0.0
      %v2739 = vadd.f32 %v2737, %v2738
      %v2740 = vrot.slane %v2739, 4
      %v2741 = vadd.f32 %v2739, %v2740
      %v2742 = vrot.slane %v2741, 2
      %v2743 = vadd.f32 %v2741, %v2742
      %v2744 = vrot.slane %v2743, 1
      %v2745 = vadd.f32 %v2743, %v2744
      %v2746 = vmul.f32 %v2745, %v1838
      %v2747 = vsub.f32 %v2719, %v2746
      %v2748 = vsub.f32 %v2722, %v2746
      %v2749 = vsub.f32 %v2727, %v2746
      %v2750 = vsub.f32 %v2730, %v2746
      %v2751 = vmul.f32 %v2747, %v2747
      %v2752 = vmul.f32 %v2748, %v2748
      %v2753 = vmul.f32 %v2749, %v2749
      %v2754 = vmul.f32 %v2750, %v2750
      %v2755 = vsel %vm1711, %v2751, 0.0
      %v2756 = vsel %vm1711, %v2752, 0.0
      %v2757 = vadd.f32 %v2755, %v2756
      %v2758 = vsel %vm1711, %v2753, 0.0
      %v2759 = vadd.f32 %v2757, %v2758
      %v2760 = vsel %vm1711, %v2754, 0.0
      %v2761 = vadd.f32 %v2759, %v2760
      %v2762 = vrot.slane %v2761, 4
      %v2763 = vadd.f32 %v2761, %v2762
      %v2764 = vrot.slane %v2763, 2
      %v2765 = vadd.f32 %v2763, %v2764
      %v2766 = vrot.slane %v2765, 1
      %v2767 = vadd.f32 %v2765, %v2766
      %v2768 = vmul.f32 %v2767, %v1838
      %v2769 = vld [vmem:[%s27] sm:$0x1]
      %v2770 = vld [vmem:[%s29] sm:$0x1]
      %v2771 = vadd.f32 %v2768, 1e-05
      %v2772 = vrsqrt.pop %v2771
      %v2773 = vmul.f32 %v2772, %v2769
      %v2774 = vmul.f32 %v2746, %v2773
      %v2775 = vsub.f32 %v2770, %v2774
      %v2776 = vlaneseq
      %v2777 = vshrl.u32 %v2776, 7
      %v2778 = vsub.s32 0, %v2777
      %v2779 = vrot.slane %v2773, %v2778
      %v2780 = vmul.f32 %v2719, %v2779
      %v2781 = vmul.f32 %v2722, %v2779
      %v2782 = vmul.f32 %v2727, %v2779
      %v2783 = vmul.f32 %v2730, %v2779
      %v2785 = vlaneseq
      %v2786 = vshrl.u32 %v2785, 7
      %v2787 = vsub.s32 0, %v2786
      %v2788 = vrot.slane %v2775, %v2787
      %v2790 = vadd.f32 %v2780, %v2788
      %v2791 = vadd.f32 %v2781, %v2788
      %v2792 = vadd.f32 %v2782, %v2788
      %v2793 = vadd.f32 %v2783, %v2788
      %vm2794 = vcmp.ge.f32.partialorder %v2790, 0.0
      %vm2795 = vcmp.ge.f32.partialorder %v2791, 0.0
      %vm2796 = vcmp.ge.f32.partialorder %v2792, 0.0
      %vm2797 = vcmp.ge.f32.partialorder %v2793, 0.0
      %v2798 = vld [vmem:[%s31] sm:$0x1]
      %v2800 = vlaneseq
      %v2801 = vshrl.u32 %v2800, 7
      %v2802 = vsub.s32 0, %v2801
      %v2803 = vrot.slane %v2798, %v2802
      %v2805 = vmul.f32 %v2803, %v2790
      %v2806 = vmul.f32 %v2803, %v2791
      %v2807 = vmul.f32 %v2803, %v2792
      %v2808 = vmul.f32 %v2803, %v2793
      %v2809 = vsel %vm2794, %v2790, %v2805
      %v2810 = vsel %vm2795, %v2791, %v2806
      %v2811 = vsel %vm2796, %v2792, %v2807
      %v2812 = vsel %vm2797, %v2793, %v2808
      %v2817 = vcombine.high %v2809, %v2809
      %v2818 = vcombine.high %v2810, %v2810
      %v2819 = vcombine.high %v2811, %v2811
      %v2820 = vcombine.high %v2812, %v2812
      %2821 = vrot.lane.b32.xlu0 %v2809, 24
      %v2822 = vpop.permute.xlu0 %2821
      %2823 = vrot.lane.b32.xlu0 %v2817, 24
      %v2824 = vpop.permute.xlu0 %2823
      %2825 = vrot.lane.b32.xlu0 %v2810, 24
      %v2826 = vpop.permute.xlu0 %2825
      %2827 = vrot.lane.b32.xlu0 %v2818, 24
      %v2828 = vpop.permute.xlu0 %2827
      %2829 = vrot.lane.b32.xlu0 %v2811, 24
      %v2830 = vpop.permute.xlu0 %2829
      %2831 = vrot.lane.b32.xlu0 %v2819, 24
      %v2832 = vpop.permute.xlu0 %2831
      %2833 = vrot.lane.b32.xlu0 %v2812, 24
      %v2834 = vpop.permute.xlu0 %2833
      %2835 = vrot.lane.b32.xlu0 %v2820, 24
      %v2836 = vpop.permute.xlu0 %2835
      %vm2845 = vcmask 257216
      %2846 = vst.msk [vmem:[%s1516 + $0x1] sm:$0xf] %vm2845, %v2822
      %2847 = vst.msk [vmem:[%s1516 + $0x9] sm:$0xf] %vm2845, %v2824
      %2848 = vst.msk [vmem:[%s1516 + $0x11] sm:$0xf] %vm2845, %v2826
      %2849 = vst.msk [vmem:[%s1516 + $0x19] sm:$0xf] %vm2845, %v2828
      %2850 = vst.msk [vmem:[%s1516 + $0x21] sm:$0xf] %vm2845, %v2830
      %2851 = vst.msk [vmem:[%s1516 + $0x29] sm:$0xf] %vm2845, %v2832
      %2852 = vst.msk [vmem:[%s1516 + $0x31] sm:$0xf] %vm2845, %v2834
      %2853 = vst.msk [vmem:[%s1516 + $0x39] sm:$0xf] %vm2845, %v2836
      %v2854 = vld [vmem:[#allocation2] sm:$0xf]
      %v2855 = vld [vmem:[#allocation2 + $0x8] sm:$0xf]
      %v2856 = vld [vmem:[#allocation2 + $0x10] sm:$0xf]
      %v2857 = vld [vmem:[#allocation2 + $0x18] sm:$0xf]
      %v2858 = vld [vmem:[#allocation2 + $0x20] sm:$0xf]
      %v2859 = vld [vmem:[#allocation2 + $0x28] sm:$0xf]
      %v2860 = vld [vmem:[#allocation2 + $0x30] sm:$0xf]
      %v2861 = vld [vmem:[#allocation2 + $0x38] sm:$0xf]
      %v2862 = vld [vmem:[#allocation2 + $0x1] sm:$0xf]
      %v2863 = vld [vmem:[#allocation2 + $0x9] sm:$0xf]
      %v2864 = vld [vmem:[#allocation2 + $0x11] sm:$0xf]
      %v2865 = vld [vmem:[#allocation2 + $0x19] sm:$0xf]
      %v2866 = vld [vmem:[#allocation2 + $0x21] sm:$0xf]
      %v2867 = vld [vmem:[#allocation2 + $0x29] sm:$0xf]
      %v2868 = vld [vmem:[#allocation2 + $0x31] sm:$0xf]
      %v2869 = vld [vmem:[#allocation2 + $0x39] sm:$0xf]
      %v2870 = vld [vmem:[#allocation2 + $0x2] sm:$0xf]
      %v2871 = vld [vmem:[#allocation2 + $0xa] sm:$0xf]
      %v2872 = vld [vmem:[#allocation2 + $0x12] sm:$0xf]
      %v2873 = vld [vmem:[#allocation2 + $0x1a] sm:$0xf]
      %v2874 = vld [vmem:[#allocation2 + $0x22] sm:$0xf]
      %v2875 = vld [vmem:[#allocation2 + $0x2a] sm:$0xf]
      %v2876 = vld [vmem:[#allocation2 + $0x32] sm:$0xf]
      %v2877 = vld [vmem:[#allocation2 + $0x3a] sm:$0xf]
      %v2878 = vld [vmem:[%s1516] sm:$0xf]
      %v2879 = vld [vmem:[%s1516 + $0x8] sm:$0xf]
      %v2880 = vld [vmem:[%s1516 + $0x10] sm:$0xf]
      %v2881 = vld [vmem:[%s1516 + $0x18] sm:$0xf]
      %v2882 = vld [vmem:[%s1516 + $0x20] sm:$0xf]
      %v2883 = vld [vmem:[%s1516 + $0x28] sm:$0xf]
      %v2884 = vld [vmem:[%s1516 + $0x30] sm:$0xf]
      %v2885 = vld [vmem:[%s1516 + $0x38] sm:$0xf]
      %v2886 = vld [vmem:[%s1516 + $0x1] sm:$0xf]
      %v2887 = vld [vmem:[%s1516 + $0x9] sm:$0xf]
      %v2888 = vld [vmem:[%s1516 + $0x11] sm:$0xf]
      %v2889 = vld [vmem:[%s1516 + $0x19] sm:$0xf]
      %v2890 = vld [vmem:[%s1516 + $0x21] sm:$0xf]
      %v2891 = vld [vmem:[%s1516 + $0x29] sm:$0xf]
      %v2892 = vld [vmem:[%s1516 + $0x31] sm:$0xf]
      %v2893 = vld [vmem:[%s1516 + $0x39] sm:$0xf]
      %v2894 = vld [vmem:[%s1516 + $0x2] sm:$0xf]
      %v2895 = vld [vmem:[%s1516 + $0xa] sm:$0xf]
      %v2896 = vld [vmem:[%s1516 + $0x12] sm:$0xf]
      %v2897 = vld [vmem:[%s1516 + $0x1a] sm:$0xf]
      %v2898 = vld [vmem:[%s1516 + $0x22] sm:$0xf]
      %v2899 = vld [vmem:[%s1516 + $0x2a] sm:$0xf]
      %v2900 = vld [vmem:[%s1516 + $0x32] sm:$0xf]
      %v2901 = vld [vmem:[%s1516 + $0x3a] sm:$0xf]
      %v2910 = vcombine.low %v2854, %v2855
      %v2911 = vcombine.low %v2856, %v2857
      %v2912 = vcombine.low %v2858, %v2859
      %v2913 = vcombine.low %v2860, %v2861
      %v2926 = vcombine.low %v2862, %v2863
      %v2927 = vcombine.low %v2864, %v2865
      %v2928 = vcombine.low %v2866, %v2867
      %v2929 = vcombine.low %v2868, %v2869
      %2930 = vrot.lane.b32.xlu0 %v2926, 32
      %v2931 = vpop.permute.xlu0 %2930
      %2932 = vrot.lane.b32.xlu0 %v2927, 32
      %v2933 = vpop.permute.xlu0 %2932
      %2934 = vrot.lane.b32.xlu0 %v2928, 32
      %v2935 = vpop.permute.xlu0 %2934
      %2936 = vrot.lane.b32.xlu0 %v2929, 32
      %v2937 = vpop.permute.xlu0 %2936
      %v2950 = vcombine.low %v2870, %v2871
      %v2951 = vcombine.low %v2872, %v2873
      %v2952 = vcombine.low %v2874, %v2875
      %v2953 = vcombine.low %v2876, %v2877
      %2954 = vrot.lane.b32.xlu0 %v2950, 64
      %v2955 = vpop.permute.xlu0 %2954
      %2956 = vrot.lane.b32.xlu0 %v2951, 64
      %v2957 = vpop.permute.xlu0 %2956
      %2958 = vrot.lane.b32.xlu0 %v2952, 64
      %v2959 = vpop.permute.xlu0 %2958
      %2960 = vrot.lane.b32.xlu0 %v2953, 64
      %v2961 = vpop.permute.xlu0 %2960
      %v2974 = vcombine.low %v2878, %v2879
      %v2975 = vcombine.low %v2880, %v2881
      %v2976 = vcombine.low %v2882, %v2883
      %v2977 = vcombine.low %v2884, %v2885
      %2978 = vrot.lane.b32.xlu0 %v2974, 96
      %v2979 = vpop.permute.xlu0 %2978
      %2980 = vrot.lane.b32.xlu0 %v2975, 96
      %v2981 = vpop.permute.xlu0 %2980
      %2982 = vrot.lane.b32.xlu0 %v2976, 96
      %v2983 = vpop.permute.xlu0 %2982
      %2984 = vrot.lane.b32.xlu0 %v2977, 96
      %v2985 = vpop.permute.xlu0 %2984
      %v2998 = vcombine.low %v2886, %v2887
      %v2999 = vcombine.low %v2888, %v2889
      %v3000 = vcombine.low %v2890, %v2891
      %v3001 = vcombine.low %v2892, %v2893
      %v3014 = vcombine.low %v2894, %v2895
      %v3015 = vcombine.low %v2896, %v2897
      %v3016 = vcombine.low %v2898, %v2899
      %v3017 = vcombine.low %v2900, %v2901
      %3018 = vrot.lane.b32.xlu0 %v3014, 32
      %v3019 = vpop.permute.xlu0 %3018
      %3020 = vrot.lane.b32.xlu0 %v3015, 32
      %v3021 = vpop.permute.xlu0 %3020
      %3022 = vrot.lane.b32.xlu0 %v3016, 32
      %v3023 = vpop.permute.xlu0 %3022
      %3024 = vrot.lane.b32.xlu0 %v3017, 32
      %v3025 = vpop.permute.xlu0 %3024
      %v3030 = vsel %vm1726, %v2910, %v2931
      %v3031 = vsel %vm1726, %v2911, %v2933
      %v3032 = vsel %vm1726, %v2912, %v2935
      %v3033 = vsel %vm1726, %v2913, %v2937
      %v3034 = vsel %vm2144, %v3030, %v2955
      %v3035 = vsel %vm2144, %v3031, %v2957
      %v3036 = vsel %vm2144, %v3032, %v2959
      %v3037 = vsel %vm2144, %v3033, %v2961
      %v3038 = vsel %vm2211, %v3034, %v2979
      %v3039 = vsel %vm2211, %v3035, %v2981
      %v3040 = vsel %vm2211, %v3036, %v2983
      %v3041 = vsel %vm2211, %v3037, %v2985
      %v3042 = vsel %vm1726, %v2998, %v3019
      %v3043 = vsel %vm1726, %v2999, %v3021
      %v3044 = vsel %vm1726, %v3000, %v3023
      %v3045 = vsel %vm1726, %v3001, %v3025
      %v3046 = vpack.c.bf16 %v3039, %v3038
      %v3047 = vpack.c.bf16 %v3043, %v3042
      %v3048 = vpack.c.bf16 %v3041, %v3040
      %v3049 = vpack.c.bf16 %v3045, %v3044
      %v3050 = vld [vmem:[%s33] sm:$0xf]
      %v3051 = vld [vmem:[%s33 + $0x4] sm:$0xf]
      %v3052 = vld [vmem:[%s33 + $0x8] sm:$0xf]
      %v3053 = vld [vmem:[%s33 + $0xc] sm:$0xf]
      %v3054 = vld [vmem:[%s33 + $0x10] sm:$0xf]
      %v3055 = vld [vmem:[%s33 + $0x14] sm:$0xf]
      %v3056 = vld [vmem:[%s33 + $0x18] sm:$0xf]
      %v3057 = vld [vmem:[%s33 + $0x1c] sm:$0xf]
      %v3058 = vld [vmem:[%s33 + $0x20] sm:$0xf]
      %v3059 = vld [vmem:[%s33 + $0x24] sm:$0xf]
      %v3060 = vld [vmem:[%s33 + $0x28] sm:$0xf]
      %v3061 = vld [vmem:[%s33 + $0x2c] sm:$0xf]
      %v3062 = vld [vmem:[%s33 + $0x30] sm:$0xf]
      %v3063 = vld [vmem:[%s33 + $0x34] sm:$0xf]
      %v3064 = vld [vmem:[%s33 + $0x38] sm:$0xf]
      %v3065 = vld [vmem:[%s33 + $0x3c] sm:$0xf]
      %v3066 = vld [vmem:[%s33 + $0x40] sm:$0xf]
      %v3067 = vld [vmem:[%s33 + $0x44] sm:$0xf]
      %v3068 = vld [vmem:[%s33 + $0x48] sm:$0xf]
      %v3069 = vld [vmem:[%s33 + $0x4c] sm:$0xf]
      %v3070 = vld [vmem:[%s33 + $0x50] sm:$0xf]
      %v3071 = vld [vmem:[%s33 + $0x54] sm:$0xf]
      %v3072 = vld [vmem:[%s33 + $0x58] sm:$0xf]
      %v3073 = vld [vmem:[%s33 + $0x5c] sm:$0xf]
      %v3074 = vld [vmem:[%s35] sm:$0x1]
      %v3076 = vlaneseq
      %v3077 = vshrl.u32 %v3076, 7
      %v3078 = vsub.s32 0, %v3077
      %v3079 = vrot.slane %v3074, %v3078
      %v3105 = vunpack.c.l.b16 %v3050
      %v3106 = vunpack.c.l.b16 %v3051
      %v3107 = vunpack.c.l.b16 %v3052
      %v3108 = vunpack.c.l.b16 %v3053
      %v3109 = vunpack.c.l.b16 %v3054
      %v3110 = vunpack.c.l.b16 %v3055
      %v3111 = vunpack.c.l.b16 %v3056
      %v3112 = vunpack.c.l.b16 %v3057
      %v3113 = vunpack.c.l.b16 %v3058
      %v3114 = vunpack.c.l.b16 %v3059
      %v3115 = vunpack.c.l.b16 %v3060
      %v3116 = vunpack.c.l.b16 %v3061
      %v3117 = vunpack.c.l.b16 %v3062
      %v3118 = vunpack.c.l.b16 %v3063
      %v3119 = vunpack.c.l.b16 %v3064
      %v3120 = vunpack.c.l.b16 %v3065
      %v3121 = vunpack.c.l.b16 %v3066
      %v3122 = vunpack.c.l.b16 %v3067
      %v3123 = vunpack.c.l.b16 %v3068
      %v3124 = vunpack.c.l.b16 %v3069
      %v3125 = vunpack.c.l.b16 %v3070
      %v3126 = vunpack.c.l.b16 %v3071
      %v3127 = vunpack.c.l.b16 %v3072
      %v3128 = vunpack.c.l.b16 %v3073
      %v3129 = vpack.c.b16 %v3106, %v3105
      %v3130 = vpack.c.b16 %v3108, %v3107
      %v3131 = vpack.c.b16 %v3110, %v3109
      %v3132 = vpack.c.b16 %v3112, %v3111
      %v3133 = vpack.c.b16 %v3114, %v3113
      %v3134 = vpack.c.b16 %v3116, %v3115
      %v3135 = vpack.c.b16 %v3118, %v3117
      %v3136 = vpack.c.b16 %v3120, %v3119
      %v3137 = vpack.c.b16 %v3122, %v3121
      %v3138 = vpack.c.b16 %v3124, %v3123
      %v3139 = vpack.c.b16 %v3126, %v3125
      %v3140 = vpack.c.b16 %v3128, %v3127
      %v3154 = vsel %vm2144, %v3047, 0
      %v3157 = vsel %vm2144, %v3049, 0
      %3159 = vmatprep.subr.bf16.mxu0 0
      %3160 = vmatpush1.bf16.msra.mxu0 %v3129
      %3161 = vmatprep.subr.bf16.mxu0 0
      %3162 = vmatpush1.bf16.msra.mxu0 %v3130
      %3163 = vmatprep.subr.bf16.mxu0 0
      %3164 = vmatpush1.bf16.msra.mxu0 %v3131
      %3165 = vmatprep.subr.bf16.mxu0 0
      %3166 = vmatpush1.bf16.msra.mxu0 %v3132
      %3167 = vmatprep.subr.bf16.mxu0 0
      %3168 = vmatpush1.bf16.msra.mxu0 %v3133
      %3169 = vmatprep.subr.bf16.mxu0 0
      %3170 = vmatpush1.bf16.msra.mxu0 %v3134
      %3171 = vmatprep.subr.bf16.mxu0 0
      %3172 = vmatpush1.bf16.msra.mxu0 %v3135
      %3173 = vmatprep.subr.bf16.mxu0 0
      %3174 = vmatpush1.bf16.msra.mxu0 %v3136
      %3175 = vmatprep.subr.bf16.mxu0 0
      %3176 = vmatpush1.bf16.msra.mxu0 %v3137
      %3177 = vmatprep.subr.bf16.mxu0 0
      %3178 = vmatpush1.bf16.msra.mxu0 %v3138
      %3179 = vmatprep.subr.bf16.mxu0 0
      %3180 = vmatpush1.bf16.msra.mxu0 %v3139
      %3181 = vmatprep.subr.bf16.mxu0 0
      %3182 = vmatpush1.bf16.msra.mxu0 %v3140
      %3183 = vmatprep.subr.bf16.mxu0 0
      %3184 = vmatpush1.bf16.msra.mxu0 0
      %3185 = vmatprep.subr.bf16.mxu0 0
      %3186 = vmatpush1.bf16.msra.mxu0 0
      %3187 = vmatprep.subr.bf16.mxu0 0
      %3188 = vmatpush1.bf16.msra.mxu0 0
      %3189 = vmatprep.subr.bf16.mxu0 0
      %3190 = vmatpush1.bf16.msra.mxu0 0
      %3191 = vmatprep.mubr.bf16.mxu0 %v3154
      %3192 = vmatmul.mubr.bf16.gmra.mrb[0].mxu0 %v3046
      %v3193 = vpop.f32.mrb[0].mxu0
      %v3194 = vadd.f32 %v3079, %v3193
      %v3195 = vpop.f32.mrb[0].mxu0
      %v3196 = vpop.f32.mrb[0].mxu0
      %v3197 = vadd.f32 %v3079, %v3196
      %v3198 = vpop.f32.mrb[0].mxu0
      %3199 = vmatprep.mubr.bf16.mxu0 %v3157
      %3200 = vmatmul.mubr.bf16.gmra.mrb[0].mxu0 %v3048
      %v3201 = vpop.f32.mrb[0].mxu0
      %v3202 = vadd.f32 %v3079, %v3201
      %v3203 = vpop.f32.mrb[0].mxu0
      %v3204 = vpop.f32.mrb[0].mxu0
      %v3205 = vadd.f32 %v3079, %v3204
      %v3206 = vpop.f32.mrb[0].mxu0
      %3207 = vdwg.mxu0
      %v3208 = vsel %vm1711, %v3194, 0.0
      %v3209 = vsel %vm1711, %v3197, 0.0
      %v3210 = vadd.f32 %v3208, %v3209
      %v3211 = vsel %vm1711, %v3202, 0.0
      %v3212 = vadd.f32 %v3210, %v3211
      %v3213 = vsel %vm1711, %v3205, 0.0
      %v3214 = vadd.f32 %v3212, %v3213
      %v3215 = vrot.slane %v3214, 4
      %v3216 = vadd.f32 %v3214, %v3215
      %v3217 = vrot.slane %v3216, 2
      %v3218 = vadd.f32 %v3216, %v3217
      %v3219 = vrot.slane %v3218, 1
      %v3220 = vadd.f32 %v3218, %v3219
      %v3221 = vmul.f32 %v3220, %v1838
      %v3222 = vsub.f32 %v3194, %v3221
      %v3223 = vsub.f32 %v3197, %v3221
      %v3224 = vsub.f32 %v3202, %v3221
      %v3225 = vsub.f32 %v3205, %v3221
      %v3226 = vmul.f32 %v3222, %v3222
      %v3227 = vmul.f32 %v3223, %v3223
      %v3228 = vmul.f32 %v3224, %v3224
      %v3229 = vmul.f32 %v3225, %v3225
      %v3230 = vsel %vm1711, %v3226, 0.0
      %v3231 = vsel %vm1711, %v3227, 0.0
      %v3232 = vadd.f32 %v3230, %v3231
      %v3233 = vsel %vm1711, %v3228, 0.0
      %v3234 = vadd.f32 %v3232, %v3233
      %v3235 = vsel %vm1711, %v3229, 0.0
      %v3236 = vadd.f32 %v3234, %v3235
      %v3237 = vrot.slane %v3236, 4
      %v3238 = vadd.f32 %v3236, %v3237
      %v3239 = vrot.slane %v3238, 2
      %v3240 = vadd.f32 %v3238, %v3239
      %v3241 = vrot.slane %v3240, 1
      %v3242 = vadd.f32 %v3240, %v3241
      %v3243 = vmul.f32 %v3242, %v1838
      %v3244 = vld [vmem:[%s37] sm:$0x1]
      %v3245 = vld [vmem:[%s39] sm:$0x1]
      %v3246 = vadd.f32 %v3243, 1e-05
      %v3247 = vrsqrt.pop %v3246
      %v3248 = vmul.f32 %v3247, %v3244
      %v3249 = vmul.f32 %v3221, %v3248
      %v3250 = vsub.f32 %v3245, %v3249
      %v3251 = vlaneseq
      %v3252 = vshrl.u32 %v3251, 7
      %v3253 = vsub.s32 0, %v3252
      %v3254 = vrot.slane %v3248, %v3253
      %v3255 = vmul.f32 %v3194, %v3254
      %v3256 = vmul.f32 %v3197, %v3254
      %v3257 = vmul.f32 %v3202, %v3254
      %v3258 = vmul.f32 %v3205, %v3254
      %v3260 = vlaneseq
      %v3261 = vshrl.u32 %v3260, 7
      %v3262 = vsub.s32 0, %v3261
      %v3263 = vrot.slane %v3250, %v3262
      %v3265 = vadd.f32 %v3255, %v3263
      %v3266 = vadd.f32 %v3256, %v3263
      %v3267 = vadd.f32 %v3257, %v3263
      %v3268 = vadd.f32 %v3258, %v3263
      %vm3269 = vcmp.ge.f32.partialorder %v3265, 0.0
      %vm3270 = vcmp.ge.f32.partialorder %v3266, 0.0
      %vm3271 = vcmp.ge.f32.partialorder %v3267, 0.0
      %vm3272 = vcmp.ge.f32.partialorder %v3268, 0.0
      %v3273 = vld [vmem:[%s41] sm:$0x1]
      %v3275 = vlaneseq
      %v3276 = vshrl.u32 %v3275, 7
      %v3277 = vsub.s32 0, %v3276
      %v3278 = vrot.slane %v3273, %v3277
      %v3280 = vmul.f32 %v3278, %v3265
      %v3281 = vmul.f32 %v3278, %v3266
      %v3282 = vmul.f32 %v3278, %v3267
      %v3283 = vmul.f32 %v3278, %v3268
      %v3284 = vsel %vm3269, %v3265, %v3280
      %v3285 = vsel %vm3270, %v3266, %v3281
      %v3286 = vsel %vm3271, %v3267, %v3282
      %v3287 = vsel %vm3272, %v3268, %v3283
      %v3292 = vcombine.high %v3284, %v3284
      %v3293 = vcombine.high %v3285, %v3285
      %v3294 = vcombine.high %v3286, %v3286
      %v3295 = vcombine.high %v3287, %v3287
      %3296 = vrot.lane.b32.xlu0 %v3284, 32
      %v3297 = vpop.permute.xlu0 %3296
      %3298 = vrot.lane.b32.xlu0 %v3292, 32
      %v3299 = vpop.permute.xlu0 %3298
      %3300 = vrot.lane.b32.xlu0 %v3285, 32
      %v3301 = vpop.permute.xlu0 %3300
      %3302 = vrot.lane.b32.xlu0 %v3293, 32
      %v3303 = vpop.permute.xlu0 %3302
      %3304 = vrot.lane.b32.xlu0 %v3286, 32
      %v3305 = vpop.permute.xlu0 %3304
      %3306 = vrot.lane.b32.xlu0 %v3294, 32
      %v3307 = vpop.permute.xlu0 %3306
      %3308 = vrot.lane.b32.xlu0 %v3287, 32
      %v3309 = vpop.permute.xlu0 %3308
      %3310 = vrot.lane.b32.xlu0 %v3295, 32
      %v3311 = vpop.permute.xlu0 %3310
      %vm3320 = vcmask 322816
      %3321 = vst.msk [vmem:[%s1516 + $0x1] sm:$0xf] %vm3320, %v3297
      %3322 = vst.msk [vmem:[%s1516 + $0x9] sm:$0xf] %vm3320, %v3299
      %3323 = vst.msk [vmem:[%s1516 + $0x11] sm:$0xf] %vm3320, %v3301
      %3324 = vst.msk [vmem:[%s1516 + $0x19] sm:$0xf] %vm3320, %v3303
      %3325 = vst.msk [vmem:[%s1516 + $0x21] sm:$0xf] %vm3320, %v3305
      %3326 = vst.msk [vmem:[%s1516 + $0x29] sm:$0xf] %vm3320, %v3307
      %3327 = vst.msk [vmem:[%s1516 + $0x31] sm:$0xf] %vm3320, %v3309
      %3328 = vst.msk [vmem:[%s1516 + $0x39] sm:$0xf] %vm3320, %v3311
      %v3329 = vld [vmem:[%s1516] sm:$0xf]
      %v3330 = vld [vmem:[%s1516 + $0x8] sm:$0xf]
      %v3331 = vld [vmem:[%s1516 + $0x10] sm:$0xf]
      %v3332 = vld [vmem:[%s1516 + $0x18] sm:$0xf]
      %v3333 = vld [vmem:[%s1516 + $0x20] sm:$0xf]
      %v3334 = vld [vmem:[%s1516 + $0x28] sm:$0xf]
      %v3335 = vld [vmem:[%s1516 + $0x30] sm:$0xf]
      %v3336 = vld [vmem:[%s1516 + $0x38] sm:$0xf]
      %v3337 = vld [vmem:[%s1516 + $0x1] sm:$0xf]
      %v3338 = vld [vmem:[%s1516 + $0x9] sm:$0xf]
      %v3339 = vld [vmem:[%s1516 + $0x11] sm:$0xf]
      %v3340 = vld [vmem:[%s1516 + $0x19] sm:$0xf]
      %v3341 = vld [vmem:[%s1516 + $0x21] sm:$0xf]
      %v3342 = vld [vmem:[%s1516 + $0x29] sm:$0xf]
      %v3343 = vld [vmem:[%s1516 + $0x31] sm:$0xf]
      %v3344 = vld [vmem:[%s1516 + $0x39] sm:$0xf]
      %v3345 = vld [vmem:[%s1516 + $0x2] sm:$0xf]
      %v3346 = vld [vmem:[%s1516 + $0xa] sm:$0xf]
      %v3347 = vld [vmem:[%s1516 + $0x12] sm:$0xf]
      %v3348 = vld [vmem:[%s1516 + $0x1a] sm:$0xf]
      %v3349 = vld [vmem:[%s1516 + $0x22] sm:$0xf]
      %v3350 = vld [vmem:[%s1516 + $0x2a] sm:$0xf]
      %v3351 = vld [vmem:[%s1516 + $0x32] sm:$0xf]
      %v3352 = vld [vmem:[%s1516 + $0x3a] sm:$0xf]
      %v3361 = vcombine.low %v3329, %v3330
      %v3362 = vcombine.low %v3331, %v3332
      %v3363 = vcombine.low %v3333, %v3334
      %v3364 = vcombine.low %v3335, %v3336
      %3365 = vrot.lane.b32.xlu0 %v3361, 96
      %v3366 = vpop.permute.xlu0 %3365
      %3367 = vrot.lane.b32.xlu0 %v3362, 96
      %v3368 = vpop.permute.xlu0 %3367
      %3369 = vrot.lane.b32.xlu0 %v3363, 96
      %v3370 = vpop.permute.xlu0 %3369
      %3371 = vrot.lane.b32.xlu0 %v3364, 96
      %v3372 = vpop.permute.xlu0 %3371
      %v3385 = vcombine.low %v3337, %v3338
      %v3386 = vcombine.low %v3339, %v3340
      %v3387 = vcombine.low %v3341, %v3342
      %v3388 = vcombine.low %v3343, %v3344
      %3389 = vrot.lane.b32.xlu0 %v3385, 104
      %v3390 = vpop.permute.xlu0 %3389
      %3391 = vrot.lane.b32.xlu0 %v3386, 104
      %v3392 = vpop.permute.xlu0 %3391
      %3393 = vrot.lane.b32.xlu0 %v3387, 104
      %v3394 = vpop.permute.xlu0 %3393
      %3395 = vrot.lane.b32.xlu0 %v3388, 104
      %v3396 = vpop.permute.xlu0 %3395
      %v3409 = vcombine.low %v3345, %v3346
      %v3410 = vcombine.low %v3347, %v3348
      %v3411 = vcombine.low %v3349, %v3350
      %v3412 = vcombine.low %v3351, %v3352
      %3413 = vrot.lane.b32.xlu0 %v3409, 112
      %v3414 = vpop.permute.xlu0 %3413
      %3415 = vrot.lane.b32.xlu0 %v3410, 112
      %v3416 = vpop.permute.xlu0 %3415
      %3417 = vrot.lane.b32.xlu0 %v3411, 112
      %v3418 = vpop.permute.xlu0 %3417
      %3419 = vrot.lane.b32.xlu0 %v3412, 112
      %v3420 = vpop.permute.xlu0 %3419
      %v3425 = vsel %vm1711, %v3366, %v3390
      %v3426 = vsel %vm1711, %v3368, %v3392
      %v3427 = vsel %vm1711, %v3370, %v3394
      %v3428 = vsel %vm1711, %v3372, %v3396
      %v3429 = vsel %vm1716, %v3425, %v3414
      %v3430 = vsel %vm1716, %v3426, %v3416
      %v3431 = vsel %vm1716, %v3427, %v3418
      %v3432 = vsel %vm1716, %v3428, %v3420
      %v3433 = vpack.c.bf16 %v3430, %v3429
      %v3434 = vpack.c.bf16 %v3432, %v3431
      %v3435 = vld [vmem:[%s43] sm:$0xf]
      %v3436 = vld [vmem:[%s43 + $0x4] sm:$0xf]
      %v3437 = vld [vmem:[%s43 + $0x8] sm:$0xf]
      %v3438 = vld [vmem:[%s45] sm:$0x1]
      %v3440 = vlaneseq
      %v3441 = vshrl.u32 %v3440, 7
      %v3442 = vsub.s32 0, %v3441
      %v3443 = vrot.slane %v3438, %v3442
      %v3448 = vunpack.c.l.b16 %v3435
      %v3449 = vunpack.c.l.b16 %v3436
      %v3450 = vunpack.c.l.b16 %v3437
      %v3451 = vpack.c.b16 %v3449, %v3448
      %v3452 = vpack.c.b16 %v3450, %v3450
      %v3455 = vsel %vm1721, %v3433, 0
      %v3458 = vsel %vm1721, %v3434, 0
      %vm3460 = vcmask 1043456
      %v3462 = vsel %vm3460, %v3452, 0
      %3464 = vmatprep.subr.bf16.mxu0 0
      %3465 = vmatpush1.bf16.msra.mxu0 %v3451
      %3466 = vmatprep.subr.bf16.mxu0 0
      %3467 = vmatpush1.bf16.msra.mxu0 %v3462
      %3468 = vmatprep.subr.bf16.mxu0 0
      %3469 = vmatpush1.bf16.msra.mxu0 0
      %3470 = vmatprep.subr.bf16.mxu0 0
      %3471 = vmatpush1.bf16.msra.mxu0 0
      %3472 = vmatprep.subr.bf16.mxu0 0
      %3473 = vmatpush1.bf16.msra.mxu0 0
      %3474 = vmatprep.subr.bf16.mxu0 0
      %3475 = vmatpush1.bf16.msra.mxu0 0
      %3476 = vmatprep.subr.bf16.mxu0 0
      %3477 = vmatpush1.bf16.msra.mxu0 0
      %3478 = vmatprep.subr.bf16.mxu0 0
      %3479 = vmatpush1.bf16.msra.mxu0 0
      %3480 = vmatprep.subr.bf16.mxu0 0
      %3481 = vmatpush1.bf16.msra.mxu0 0
      %3482 = vmatprep.subr.bf16.mxu0 0
      %3483 = vmatpush1.bf16.msra.mxu0 0
      %3484 = vmatprep.subr.bf16.mxu0 0
      %3485 = vmatpush1.bf16.msra.mxu0 0
      %3486 = vmatprep.subr.bf16.mxu0 0
      %3487 = vmatpush1.bf16.msra.mxu0 0
      %3488 = vmatprep.subr.bf16.mxu0 0
      %3489 = vmatpush1.bf16.msra.mxu0 0
      %3490 = vmatprep.subr.bf16.mxu0 0
      %3491 = vmatpush1.bf16.msra.mxu0 0
      %3492 = vmatprep.subr.bf16.mxu0 0
      %3493 = vmatpush1.bf16.msra.mxu0 0
      %3494 = vmatprep.subr.bf16.mxu0 0
      %3495 = vmatpush1.bf16.msra.mxu0 0
      %3496 = vmatprep.mubr.bf16.mxu0 0
      %3497 = vmatmul.mubr.bf16.gmra.mrb[0].mxu0 %v3455
      %v3498 = vpop.f32.mrb[0].mxu0
      %v3499 = vadd.f32 %v3443, %v3498
      %v3500 = vpop.f32.mrb[0].mxu0
      %v3501 = vpop.f32.mrb[0].mxu0
      %v3502 = vadd.f32 %v3443, %v3501
      %v3503 = vpop.f32.mrb[0].mxu0
      %3504 = vmatprep.mubr.bf16.mxu0 0
      %3505 = vmatmul.mubr.bf16.gmra.mrb[0].mxu0 %v3458
      %v3506 = vpop.f32.mrb[0].mxu0
      %v3507 = vadd.f32 %v3443, %v3506
      %v3508 = vpop.f32.mrb[0].mxu0
      %v3509 = vpop.f32.mrb[0].mxu0
      %v3510 = vadd.f32 %v3443, %v3509
      %v3511 = vpop.f32.mrb[0].mxu0
      %3512 = vdwg.mxu0
      %v3513 = vsel %vm1711, %v3499, 0.0
      %v3514 = vsel %vm1711, %v3502, 0.0
      %v3515 = vadd.f32 %v3513, %v3514
      %v3516 = vsel %vm1711, %v3507, 0.0
      %v3517 = vadd.f32 %v3515, %v3516
      %v3518 = vsel %vm1711, %v3510, 0.0
      %v3519 = vadd.f32 %v3517, %v3518
      %v3520 = vrot.slane %v3519, 4
      %v3521 = vadd.f32 %v3519, %v3520
      %v3522 = vrot.slane %v3521, 2
      %v3523 = vadd.f32 %v3521, %v3522
      %v3524 = vrot.slane %v3523, 1
      %v3525 = vadd.f32 %v3523, %v3524
      %v3526 = vmul.f32 %v3525, %v1838
      %vm3527 = vcmask 130112
      %v3528 = vsel %vm3527, %v3499, 0.0
      %v3529 = vsel %vm3527, %v3502, 0.0
      %v3530 = vadd.f32 %v3528, %v3529
      %v3531 = vsel %vm3527, %v3507, 0.0
      %v3532 = vadd.f32 %v3530, %v3531
      %v3533 = vsel %vm3527, %v3510, 0.0
      %v3534 = vadd.f32 %v3532, %v3533
      %v3535 = vrot.slane %v3534, 4
      %v3536 = vadd.f32 %v3534, %v3535
      %v3537 = vrot.slane %v3536, 2
      %v3538 = vadd.f32 %v3536, %v3537
      %v3539 = vrot.slane %v3538, 1
      %v3540 = vadd.f32 %v3538, %v3539
      %v3541 = vmul.f32 %v3540, %v1838
      %3543 = vrot.lane.b32.xlu0 %v3541, 120
      %v3544 = vpop.permute.xlu0 %3543
      %v3546 = vadd.f32 %v3526, %v3544
      %v3547 = vmul.f32 %v3546, 0.5
      %v3548 = vlaneseq
      %v3549 = vshrl.u32 %v3548, 7
      %v3550 = vsub.s32 0, %v3549
      %v3551 = vrot.slane %v3547, %v3550
      %v3552 = vsub.f32 %v3499, %v3551
      %v3553 = vsub.f32 %v3502, %v3551
      %v3554 = vsub.f32 %v3507, %v3551
      %v3555 = vsub.f32 %v3510, %v3551
      %v3556 = vmul.f32 %v3552, %v3552
      %v3557 = vmul.f32 %v3553, %v3553
      %v3558 = vmul.f32 %v3554, %v3554
      %v3559 = vmul.f32 %v3555, %v3555
      %v3560 = vsel %vm1711, %v3556, 0.0
      %v3561 = vsel %vm1711, %v3557, 0.0
      %v3562 = vadd.f32 %v3560, %v3561
      %v3563 = vsel %vm1711, %v3558, 0.0
      %v3564 = vadd.f32 %v3562, %v3563
      %v3565 = vsel %vm1711, %v3559, 0.0
      %v3566 = vadd.f32 %v3564, %v3565
      %v3567 = vrot.slane %v3566, 4
      %v3568 = vadd.f32 %v3566, %v3567
      %v3569 = vrot.slane %v3568, 2
      %v3570 = vadd.f32 %v3568, %v3569
      %v3571 = vrot.slane %v3570, 1
      %v3572 = vadd.f32 %v3570, %v3571
      %v3573 = vmul.f32 %v3572, %v1838
      %3575 = vrot.lane.b32.xlu0 %v3551, 8
      %v3576 = vpop.permute.xlu0 %3575
      %v3578 = vsub.f32 %v3499, %v3576
      %v3579 = vsub.f32 %v3502, %v3576
      %v3580 = vsub.f32 %v3507, %v3576
      %v3581 = vsub.f32 %v3510, %v3576
      %v3582 = vmul.f32 %v3578, %v3578
      %v3583 = vmul.f32 %v3579, %v3579
      %v3584 = vmul.f32 %v3580, %v3580
      %v3585 = vmul.f32 %v3581, %v3581
      %v3586 = vsel %vm3527, %v3582, 0.0
      %v3587 = vsel %vm3527, %v3583, 0.0
      %v3588 = vadd.f32 %v3586, %v3587
      %v3589 = vsel %vm3527, %v3584, 0.0
      %v3590 = vadd.f32 %v3588, %v3589
      %v3591 = vsel %vm3527, %v3585, 0.0
      %v3592 = vadd.f32 %v3590, %v3591
      %v3593 = vrot.slane %v3592, 4
      %v3594 = vadd.f32 %v3592, %v3593
      %v3595 = vrot.slane %v3594, 2
      %v3596 = vadd.f32 %v3594, %v3595
      %v3597 = vrot.slane %v3596, 1
      %v3598 = vadd.f32 %v3596, %v3597
      %v3599 = vmul.f32 %v3598, %v1838
      %3601 = vrot.lane.b32.xlu0 %v3599, 120
      %v3602 = vpop.permute.xlu0 %3601
      %v3604 = vadd.f32 %v3573, %v3602
      %v3605 = vmul.f32 %v3604, 0.5
      %v3606 = vld [vmem:[%s47] sm:$0x1]
      %v3607 = vld [vmem:[%s49] sm:$0x1]
      %v3608 = vadd.f32 %v3605, 1e-05
      %v3609 = vrsqrt.pop %v3608
      %v3610 = vmul.f32 %v3609, %v3606
      %v3611 = vmul.f32 %v3547, %v3610
      %v3612 = vsub.f32 %v3607, %v3611
      %3617 = vrot.lane.b32.xlu0 %v3499, 120
      %v3618 = vpop.permute.xlu0 %3617
      %3619 = vrot.lane.b32.xlu0 %v3502, 120
      %v3620 = vpop.permute.xlu0 %3619
      %3621 = vrot.lane.b32.xlu0 %v3507, 120
      %v3622 = vpop.permute.xlu0 %3621
      %3623 = vrot.lane.b32.xlu0 %v3510, 120
      %v3624 = vpop.permute.xlu0 %3623
      %v3629 = vcombine.high %v3499, 0.0
      %v3631 = vunpack.c.l.s4 1983009808
      %v3632 = vunpack.c.0.s8 %v3631
      %v3633 = vlaneseq
      %v3634 = vshrl.u32 %v3633, 7
      %v3635 = vsub.s32 %v3632, %v3634
      %v3636 = vrot.slane %v3499, %v3635
      %v3638 = vunpack.c.l.s4 1983009808
      %v3639 = vunpack.c.0.s8 %v3638
      %v3640 = vlaneseq
      %v3641 = vshrl.u32 %v3640, 7
      %v3642 = vsub.s32 %v3639, %v3641
      %v3643 = vrot.slane %v3629, %v3642
      %v3644 = vcombine.high %v3618, 0.0
      %v3646 = vunpack.c.l.s4 1983009808
      %v3647 = vunpack.c.0.s8 %v3646
      %v3648 = vlaneseq
      %v3649 = vshrl.u32 %v3648, 7
      %v3650 = vsub.s32 %v3647, %v3649
      %v3651 = vrot.slane %v3618, %v3650
      %v3653 = vunpack.c.l.s4 1983009808
      %v3654 = vunpack.c.0.s8 %v3653
      %v3655 = vlaneseq
      %v3656 = vshrl.u32 %v3655, 7
      %v3657 = vsub.s32 %v3654, %v3656
      %v3658 = vrot.slane %v3644, %v3657
      %v3659 = vcombine.low %v3636, %v3651
      %v3660 = vcombine.high %v3636, %v3651
      %v3662 = vunpack.c.l.s4 1934713408
      %v3663 = vunpack.c.0.s8 %v3662
      %v3664 = vlaneseq
      %v3665 = vshrl.u32 %v3664, 7
      %v3666 = vsub.s32 %v3663, %v3665
      %v3667 = vrot.slane %v3659, %v3666
      %v3669 = vunpack.c.l.s4 1934713408
      %v3670 = vunpack.c.0.s8 %v3669
      %v3671 = vlaneseq
      %v3672 = vshrl.u32 %v3671, 7
      %v3673 = vsub.s32 %v3670, %v3672
      %v3674 = vrot.slane %v3660, %v3673
      %v3675 = vcombine.low %v3643, %v3658
      %v3676 = vcombine.high %v3643, %v3658
      %v3678 = vunpack.c.l.s4 1934713408
      %v3679 = vunpack.c.0.s8 %v3678
      %v3680 = vlaneseq
      %v3681 = vshrl.u32 %v3680, 7
      %v3682 = vsub.s32 %v3679, %v3681
      %v3683 = vrot.slane %v3675, %v3682
      %v3685 = vunpack.c.l.s4 1934713408
      %v3686 = vunpack.c.0.s8 %v3685
      %v3687 = vlaneseq
      %v3688 = vshrl.u32 %v3687, 7
      %v3689 = vsub.s32 %v3686, %v3688
      %v3690 = vrot.slane %v3676, %v3689
      %v3691 = vcombine.high %v3667, 0.0
      %v3692 = vcombine.high %v3674, 0.0
      %v3693 = vcombine.high %v3683, 0.0
      %v3694 = vcombine.high %v3690, 0.0
      %v3695 = vcombine.high %v3502, 0.0
      %v3697 = vunpack.c.l.s4 1983009808
      %v3698 = vunpack.c.0.s8 %v3697
      %v3699 = vlaneseq
      %v3700 = vshrl.u32 %v3699, 7
      %v3701 = vsub.s32 %v3698, %v3700
      %v3702 = vrot.slane %v3502, %v3701
      %v3704 = vunpack.c.l.s4 1983009808
      %v3705 = vunpack.c.0.s8 %v3704
      %v3706 = vlaneseq
      %v3707 = vshrl.u32 %v3706, 7
      %v3708 = vsub.s32 %v3705, %v3707
      %v3709 = vrot.slane %v3695, %v3708
      %v3710 = vcombine.high %v3620, 0.0
      %v3712 = vunpack.c.l.s4 1983009808
      %v3713 = vunpack.c.0.s8 %v3712
      %v3714 = vlaneseq
      %v3715 = vshrl.u32 %v3714, 7
      %v3716 = vsub.s32 %v3713, %v3715
      %v3717 = vrot.slane %v3620, %v3716
      %v3719 = vunpack.c.l.s4 1983009808
      %v3720 = vunpack.c.0.s8 %v3719
      %v3721 = vlaneseq
      %v3722 = vshrl.u32 %v3721, 7
      %v3723 = vsub.s32 %v3720, %v3722
      %v3724 = vrot.slane %v3710, %v3723
      %v3725 = vcombine.low %v3702, %v3717
      %v3726 = vcombine.high %v3702, %v3717
      %v3728 = vunpack.c.l.s4 1934713408
      %v3729 = vunpack.c.0.s8 %v3728
      %v3730 = vlaneseq
      %v3731 = vshrl.u32 %v3730, 7
      %v3732 = vsub.s32 %v3729, %v3731
      %v3733 = vrot.slane %v3725, %v3732
      %v3735 = vunpack.c.l.s4 1934713408
      %v3736 = vunpack.c.0.s8 %v3735
      %v3737 = vlaneseq
      %v3738 = vshrl.u32 %v3737, 7
      %v3739 = vsub.s32 %v3736, %v3738
      %v3740 = vrot.slane %v3726, %v3739
      %v3741 = vcombine.low %v3709, %v3724
      %v3742 = vcombine.high %v3709, %v3724
      %v3744 = vunpack.c.l.s4 1934713408
      %v3745 = vunpack.c.0.s8 %v3744
      %v3746 = vlaneseq
      %v3747 = vshrl.u32 %v3746, 7
      %v3748 = vsub.s32 %v3745, %v3747
      %v3749 = vrot.slane %v3741, %v3748
      %v3751 = vunpack.c.l.s4 1934713408
      %v3752 = vunpack.c.0.s8 %v3751
      %v3753 = vlaneseq
      %v3754 = vshrl.u32 %v3753, 7
      %v3755 = vsub.s32 %v3752, %v3754
      %v3756 = vrot.slane %v3742, %v3755
      %v3757 = vcombine.high %v3733, 0.0
      %v3758 = vcombine.high %v3740, 0.0
      %v3759 = vcombine.high %v3749, 0.0
      %v3760 = vcombine.high %v3756, 0.0
      %v3761 = vcombine.high %v3507, 0.0
      %v3763 = vunpack.c.l.s4 1983009808
      %v3764 = vunpack.c.0.s8 %v3763
      %v3765 = vlaneseq
      %v3766 = vshrl.u32 %v3765, 7
      %v3767 = vsub.s32 %v3764, %v3766
      %v3768 = vrot.slane %v3507, %v3767
      %v3770 = vunpack.c.l.s4 1983009808
      %v3771 = vunpack.c.0.s8 %v3770
      %v3772 = vlaneseq
      %v3773 = vshrl.u32 %v3772, 7
      %v3774 = vsub.s32 %v3771, %v3773
      %v3775 = vrot.slane %v3761, %v3774
      %v3776 = vcombine.high %v3622, 0.0
      %v3778 = vunpack.c.l.s4 1983009808
      %v3779 = vunpack.c.0.s8 %v3778
      %v3780 = vlaneseq
      %v3781 = vshrl.u32 %v3780, 7
      %v3782 = vsub.s32 %v3779, %v3781
      %v3783 = vrot.slane %v3622, %v3782
      %v3785 = vunpack.c.l.s4 1983009808
      %v3786 = vunpack.c.0.s8 %v3785
      %v3787 = vlaneseq
      %v3788 = vshrl.u32 %v3787, 7
      %v3789 = vsub.s32 %v3786, %v3788
      %v3790 = vrot.slane %v3776, %v3789
      %v3791 = vcombine.low %v3768, %v3783
      %v3792 = vcombine.high %v3768, %v3783
      %v3794 = vunpack.c.l.s4 1934713408
      %v3795 = vunpack.c.0.s8 %v3794
      %v3796 = vlaneseq
      %v3797 = vshrl.u32 %v3796, 7
      %v3798 = vsub.s32 %v3795, %v3797
      %v3799 = vrot.slane %v3791, %v3798
      %v3801 = vunpack.c.l.s4 1934713408
      %v3802 = vunpack.c.0.s8 %v3801
      %v3803 = vlaneseq
      %v3804 = vshrl.u32 %v3803, 7
      %v3805 = vsub.s32 %v3802, %v3804
      %v3806 = vrot.slane %v3792, %v3805
      %v3807 = vcombine.low %v3775, %v3790
      %v3808 = vcombine.high %v3775, %v3790
      %v3810 = vunpack.c.l.s4 1934713408
      %v3811 = vunpack.c.0.s8 %v3810
      %v3812 = vlaneseq
      %v3813 = vshrl.u32 %v3812, 7
      %v3814 = vsub.s32 %v3811, %v3813
      %v3815 = vrot.slane %v3807, %v3814
      %v3817 = vunpack.c.l.s4 1934713408
      %v3818 = vunpack.c.0.s8 %v3817
      %v3819 = vlaneseq
      %v3820 = vshrl.u32 %v3819, 7
      %v3821 = vsub.s32 %v3818, %v3820
      %v3822 = vrot.slane %v3808, %v3821
      %v3823 = vcombine.high %v3799, 0.0
      %v3824 = vcombine.high %v3806, 0.0
      %v3825 = vcombine.high %v3815, 0.0
      %v3826 = vcombine.high %v3822, 0.0
      %v3827 = vcombine.high %v3510, 0.0
      %v3829 = vunpack.c.l.s4 1983009808
      %v3830 = vunpack.c.0.s8 %v3829
      %v3831 = vlaneseq
      %v3832 = vshrl.u32 %v3831, 7
      %v3833 = vsub.s32 %v3830, %v3832
      %v3834 = vrot.slane %v3510, %v3833
      %v3836 = vunpack.c.l.s4 1983009808
      %v3837 = vunpack.c.0.s8 %v3836
      %v3838 = vlaneseq
      %v3839 = vshrl.u32 %v3838, 7
      %v3840 = vsub.s32 %v3837, %v3839
      %v3841 = vrot.slane %v3827, %v3840
      %v3842 = vcombine.high %v3624, 0.0
      %v3844 = vunpack.c.l.s4 1983009808
      %v3845 = vunpack.c.0.s8 %v3844
      %v3846 = vlaneseq
      %v3847 = vshrl.u32 %v3846, 7
      %v3848 = vsub.s32 %v3845, %v3847
      %v3849 = vrot.slane %v3624, %v3848
      %v3851 = vunpack.c.l.s4 1983009808
      %v3852 = vunpack.c.0.s8 %v3851
      %v3853 = vlaneseq
      %v3854 = vshrl.u32 %v3853, 7
      %v3855 = vsub.s32 %v3852, %v3854
      %v3856 = vrot.slane %v3842, %v3855
      %v3857 = vcombine.low %v3834, %v3849
      %v3858 = vcombine.high %v3834, %v3849
      %v3860 = vunpack.c.l.s4 1934713408
      %v3861 = vunpack.c.0.s8 %v3860
      %v3862 = vlaneseq
      %v3863 = vshrl.u32 %v3862, 7
      %v3864 = vsub.s32 %v3861, %v3863
      %v3865 = vrot.slane %v3857, %v3864
      %v3867 = vunpack.c.l.s4 1934713408
      %v3868 = vunpack.c.0.s8 %v3867
      %v3869 = vlaneseq
      %v3870 = vshrl.u32 %v3869, 7
      %v3871 = vsub.s32 %v3868, %v3870
      %v3872 = vrot.slane %v3858, %v3871
      %v3873 = vcombine.low %v3841, %v3856
      %v3874 = vcombine.high %v3841, %v3856
      %v3876 = vunpack.c.l.s4 1934713408
      %v3877 = vunpack.c.0.s8 %v3876
      %v3878 = vlaneseq
      %v3879 = vshrl.u32 %v3878, 7
      %v3880 = vsub.s32 %v3877, %v3879
      %v3881 = vrot.slane %v3873, %v3880
      %v3883 = vunpack.c.l.s4 1934713408
      %v3884 = vunpack.c.0.s8 %v3883
      %v3885 = vlaneseq
      %v3886 = vshrl.u32 %v3885, 7
      %v3887 = vsub.s32 %v3884, %v3886
      %v3888 = vrot.slane %v3874, %v3887
      %v3889 = vcombine.high %v3865, 0.0
      %v3890 = vcombine.high %v3872, 0.0
      %v3891 = vcombine.high %v3881, 0.0
      %v3892 = vcombine.high %v3888, 0.0
      %v3893 = vlaneseq
      %v3894 = vshrl.u32 %v3893, 7
      %v3895 = vsub.s32 0, %v3894
      %v3896 = vrot.slane %v3610, %v3895
      %v3897 = vmul.f32 %v3667, %v3896
      %v3898 = vmul.f32 %v3691, %v3896
      %v3899 = vmul.f32 %v3674, %v3896
      %v3900 = vmul.f32 %v3692, %v3896
      %v3901 = vmul.f32 %v3683, %v3896
      %v3902 = vmul.f32 %v3693, %v3896
      %v3903 = vmul.f32 %v3690, %v3896
      %v3904 = vmul.f32 %v3694, %v3896
      %v3905 = vmul.f32 %v3733, %v3896
      %v3906 = vmul.f32 %v3757, %v3896
      %v3907 = vmul.f32 %v3740, %v3896
      %v3908 = vmul.f32 %v3758, %v3896
      %v3909 = vmul.f32 %v3749, %v3896
      %v3910 = vmul.f32 %v3759, %v3896
      %v3911 = vmul.f32 %v3756, %v3896
      %v3912 = vmul.f32 %v3760, %v3896
      %v3913 = vmul.f32 %v3799, %v3896
      %v3914 = vmul.f32 %v3823, %v3896
      %v3915 = vmul.f32 %v3806, %v3896
      %v3916 = vmul.f32 %v3824, %v3896
      %v3917 = vmul.f32 %v3815, %v3896
      %v3918 = vmul.f32 %v3825, %v3896
      %v3919 = vmul.f32 %v3822, %v3896
      %v3920 = vmul.f32 %v3826, %v3896
      %v3921 = vmul.f32 %v3865, %v3896
      %v3922 = vmul.f32 %v3889, %v3896
      %v3923 = vmul.f32 %v3872, %v3896
      %v3924 = vmul.f32 %v3890, %v3896
      %v3925 = vmul.f32 %v3881, %v3896
      %v3926 = vmul.f32 %v3891, %v3896
      %v3927 = vmul.f32 %v3888, %v3896
      %v3928 = vmul.f32 %v3892, %v3896
      %v3930 = vlaneseq
      %v3931 = vshrl.u32 %v3930, 7
      %v3932 = vsub.s32 0, %v3931
      %v3933 = vrot.slane %v3612, %v3932
      %v3935 = vadd.f32 %v3897, %v3933
      %v3936 = vadd.f32 %v3898, %v3933
      %v3937 = vadd.f32 %v3899, %v3933
      %v3938 = vadd.f32 %v3900, %v3933
      %v3939 = vadd.f32 %v3901, %v3933
      %v3940 = vadd.f32 %v3902, %v3933
      %v3941 = vadd.f32 %v3903, %v3933
      %v3942 = vadd.f32 %v3904, %v3933
      %v3943 = vadd.f32 %v3905, %v3933
      %v3944 = vadd.f32 %v3906, %v3933
      %v3945 = vadd.f32 %v3907, %v3933
      %v3946 = vadd.f32 %v3908, %v3933
      %v3947 = vadd.f32 %v3909, %v3933
      %v3948 = vadd.f32 %v3910, %v3933
      %v3949 = vadd.f32 %v3911, %v3933
      %v3950 = vadd.f32 %v3912, %v3933
      %v3951 = vadd.f32 %v3913, %v3933
      %v3952 = vadd.f32 %v3914, %v3933
      %v3953 = vadd.f32 %v3915, %v3933
      %v3954 = vadd.f32 %v3916, %v3933
      %v3955 = vadd.f32 %v3917, %v3933
      %v3956 = vadd.f32 %v3918, %v3933
      %v3957 = vadd.f32 %v3919, %v3933
      %v3958 = vadd.f32 %v3920, %v3933
      %v3959 = vadd.f32 %v3921, %v3933
      %v3960 = vadd.f32 %v3922, %v3933
      %v3961 = vadd.f32 %v3923, %v3933
      %v3962 = vadd.f32 %v3924, %v3933
      %v3963 = vadd.f32 %v3925, %v3933
      %v3964 = vadd.f32 %v3926, %v3933
      %v3965 = vadd.f32 %v3927, %v3933
      %v3966 = vadd.f32 %v3928, %v3933
      %vm3967 = vcmp.ge.f32.partialorder %v3935, 0.0
      %vm3968 = vcmp.ge.f32.partialorder %v3936, 0.0
      %vm3969 = vcmp.ge.f32.partialorder %v3937, 0.0
      %vm3970 = vcmp.ge.f32.partialorder %v3938, 0.0
      %vm3971 = vcmp.ge.f32.partialorder %v3939, 0.0
      %vm3972 = vcmp.ge.f32.partialorder %v3940, 0.0
      %vm3973 = vcmp.ge.f32.partialorder %v3941, 0.0
      %vm3974 = vcmp.ge.f32.partialorder %v3942, 0.0
      %vm3975 = vcmp.ge.f32.partialorder %v3943, 0.0
      %vm3976 = vcmp.ge.f32.partialorder %v3944, 0.0
      %vm3977 = vcmp.ge.f32.partialorder %v3945, 0.0
      %vm3978 = vcmp.ge.f32.partialorder %v3946, 0.0
      %vm3979 = vcmp.ge.f32.partialorder %v3947, 0.0
      %vm3980 = vcmp.ge.f32.partialorder %v3948, 0.0
      %vm3981 = vcmp.ge.f32.partialorder %v3949, 0.0
      %vm3982 = vcmp.ge.f32.partialorder %v3950, 0.0
      %vm3983 = vcmp.ge.f32.partialorder %v3951, 0.0
      %vm3984 = vcmp.ge.f32.partialorder %v3952, 0.0
      %vm3985 = vcmp.ge.f32.partialorder %v3953, 0.0
      %vm3986 = vcmp.ge.f32.partialorder %v3954, 0.0
      %vm3987 = vcmp.ge.f32.partialorder %v3955, 0.0
      %vm3988 = vcmp.ge.f32.partialorder %v3956, 0.0
      %vm3989 = vcmp.ge.f32.partialorder %v3957, 0.0
      %vm3990 = vcmp.ge.f32.partialorder %v3958, 0.0
      %vm3991 = vcmp.ge.f32.partialorder %v3959, 0.0
      %vm3992 = vcmp.ge.f32.partialorder %v3960, 0.0
      %vm3993 = vcmp.ge.f32.partialorder %v3961, 0.0
      %vm3994 = vcmp.ge.f32.partialorder %v3962, 0.0
      %vm3995 = vcmp.ge.f32.partialorder %v3963, 0.0
      %vm3996 = vcmp.ge.f32.partialorder %v3964, 0.0
      %vm3997 = vcmp.ge.f32.partialorder %v3965, 0.0
      %vm3998 = vcmp.ge.f32.partialorder %v3966, 0.0
      %v3999 = vld [vmem:[%s51] sm:$0x1]
      %v4001 = vlaneseq
      %v4002 = vshrl.u32 %v4001, 7
      %v4003 = vsub.s32 0, %v4002
      %v4004 = vrot.slane %v3999, %v4003
      %v4006 = vmul.f32 %v4004, %v3935
      %v4007 = vmul.f32 %v4004, %v3936
      %v4008 = vmul.f32 %v4004, %v3937
      %v4009 = vmul.f32 %v4004, %v3938
      %v4010 = vmul.f32 %v4004, %v3939
      %v4011 = vmul.f32 %v4004, %v3940
      %v4012 = vmul.f32 %v4004, %v3941
      %v4013 = vmul.f32 %v4004, %v3942
      %v4014 = vmul.f32 %v4004, %v3943
      %v4015 = vmul.f32 %v4004, %v3944
      %v4016 = vmul.f32 %v4004, %v3945
      %v4017 = vmul.f32 %v4004, %v3946
      %v4018 = vmul.f32 %v4004, %v3947
      %v4019 = vmul.f32 %v4004, %v3948
      %v4020 = vmul.f32 %v4004, %v3949
      %v4021 = vmul.f32 %v4004, %v3950
      %v4022 = vmul.f32 %v4004, %v3951
      %v4023 = vmul.f32 %v4004, %v3952
      %v4024 = vmul.f32 %v4004, %v3953
      %v4025 = vmul.f32 %v4004, %v3954
      %v4026 = vmul.f32 %v4004, %v3955
      %v4027 = vmul.f32 %v4004, %v3956
      %v4028 = vmul.f32 %v4004, %v3957
      %v4029 = vmul.f32 %v4004, %v3958
      %v4030 = vmul.f32 %v4004, %v3959
      %v4031 = vmul.f32 %v4004, %v3960
      %v4032 = vmul.f32 %v4004, %v3961
      %v4033 = vmul.f32 %v4004, %v3962
      %v4034 = vmul.f32 %v4004, %v3963
      %v4035 = vmul.f32 %v4004, %v3964
      %v4036 = vmul.f32 %v4004, %v3965
      %v4037 = vmul.f32 %v4004, %v3966
      %v4038 = vsel %vm3967, %v3935, %v4006
      %v4039 = vsel %vm3968, %v3936, %v4007
      %v4040 = vsel %vm3969, %v3937, %v4008
      %v4041 = vsel %vm3970, %v3938, %v4009
      %v4042 = vsel %vm3971, %v3939, %v4010
      %v4043 = vsel %vm3972, %v3940, %v4011
      %v4044 = vsel %vm3973, %v3941, %v4012
      %v4045 = vsel %vm3974, %v3942, %v4013
      %v4046 = vsel %vm3975, %v3943, %v4014
      %v4047 = vsel %vm3976, %v3944, %v4015
      %v4048 = vsel %vm3977, %v3945, %v4016
      %v4049 = vsel %vm3978, %v3946, %v4017
      %v4050 = vsel %vm3979, %v3947, %v4018
      %v4051 = vsel %vm3980, %v3948, %v4019
      %v4052 = vsel %vm3981, %v3949, %v4020
      %v4053 = vsel %vm3982, %v3950, %v4021
      %v4054 = vsel %vm3983, %v3951, %v4022
      %v4055 = vsel %vm3984, %v3952, %v4023
      %v4056 = vsel %vm3985, %v3953, %v4024
      %v4057 = vsel %vm3986, %v3954, %v4025
      %v4058 = vsel %vm3987, %v3955, %v4026
      %v4059 = vsel %vm3988, %v3956, %v4027
      %v4060 = vsel %vm3989, %v3957, %v4028
      %v4061 = vsel %vm3990, %v3958, %v4029
      %v4062 = vsel %vm3991, %v3959, %v4030
      %v4063 = vsel %vm3992, %v3960, %v4031
      %v4064 = vsel %vm3993, %v3961, %v4032
      %v4065 = vsel %vm3994, %v3962, %v4033
      %v4066 = vsel %vm3995, %v3963, %v4034
      %v4067 = vsel %vm3996, %v3964, %v4035
      %v4068 = vsel %vm3997, %v3965, %v4036
      %v4069 = vsel %vm3998, %v3966, %v4037
      %v4103 = vunpack.c.l.s4 1966171168
      %v4104 = vunpack.c.0.s8 %v4103
      %v4105 = vlaneseq
      %v4106 = vshrl.u32 %v4105, 7
      %v4107 = vsub.s32 %v4104, %v4106
      %v4108 = vrot.slane %v4038, %v4107
      %v4109 = vcombine.high %v4108, %v4108
      %v4111 = vunpack.c.l.s4 1966171168
      %v4112 = vunpack.c.0.s8 %v4111
      %v4113 = vlaneseq
      %v4114 = vshrl.u32 %v4113, 7
      %v4115 = vsub.s32 %v4112, %v4114
      %v4116 = vrot.slane %v4039, %v4115
      %v4117 = vcombine.high %v4116, %v4116
      %v4119 = vunpack.c.l.s4 1966171168
      %v4120 = vunpack.c.0.s8 %v4119
      %v4121 = vlaneseq
      %v4122 = vshrl.u32 %v4121, 7
      %v4123 = vsub.s32 %v4120, %v4122
      %v4124 = vrot.slane %v4040, %v4123
      %v4125 = vcombine.high %v4124, %v4124
      %v4127 = vunpack.c.l.s4 1966171168
      %v4128 = vunpack.c.0.s8 %v4127
      %v4129 = vlaneseq
      %v4130 = vshrl.u32 %v4129, 7
      %v4131 = vsub.s32 %v4128, %v4130
      %v4132 = vrot.slane %v4041, %v4131
      %v4134 = vunpack.c.l.s4 1966171168
      %v4135 = vunpack.c.0.s8 %v4134
      %v4136 = vlaneseq
      %v4137 = vshrl.u32 %v4136, 7
      %v4138 = vsub.s32 %v4135, %v4137
      %v4139 = vrot.slane %v4042, %v4138
      %v4140 = vcombine.high %v4139, %v4139
      %v4142 = vunpack.c.l.s4 1966171168
      %v4143 = vunpack.c.0.s8 %v4142
      %v4144 = vlaneseq
      %v4145 = vshrl.u32 %v4144, 7
      %v4146 = vsub.s32 %v4143, %v4145
      %v4147 = vrot.slane %v4043, %v4146
      %v4148 = vcombine.high %v4147, %v4147
      %v4150 = vunpack.c.l.s4 1966171168
      %v4151 = vunpack.c.0.s8 %v4150
      %v4152 = vlaneseq
      %v4153 = vshrl.u32 %v4152, 7
      %v4154 = vsub.s32 %v4151, %v4153
      %v4155 = vrot.slane %v4044, %v4154
      %v4156 = vcombine.high %v4155, %v4155
      %v4158 = vunpack.c.l.s4 1966171168
      %v4159 = vunpack.c.0.s8 %v4158
      %v4160 = vlaneseq
      %v4161 = vshrl.u32 %v4160, 7
      %v4162 = vsub.s32 %v4159, %v4161
      %v4163 = vrot.slane %v4045, %v4162
      %v4165 = vunpack.c.l.s4 1966171168
      %v4166 = vunpack.c.0.s8 %v4165
      %v4167 = vlaneseq
      %v4168 = vshrl.u32 %v4167, 7
      %v4169 = vsub.s32 %v4166, %v4168
      %v4170 = vrot.slane %v4046, %v4169
      %v4171 = vcombine.high %v4170, %v4170
      %v4173 = vunpack.c.l.s4 1966171168
      %v4174 = vunpack.c.0.s8 %v4173
      %v4175 = vlaneseq
      %v4176 = vshrl.u32 %v4175, 7
      %v4177 = vsub.s32 %v4174, %v4176
      %v4178 = vrot.slane %v4047, %v4177
      %v4179 = vcombine.high %v4178, %v4178
      %v4181 = vunpack.c.l.s4 1966171168
      %v4182 = vunpack.c.0.s8 %v4181
      %v4183 = vlaneseq
      %v4184 = vshrl.u32 %v4183, 7
      %v4185 = vsub.s32 %v4182, %v4184
      %v4186 = vrot.slane %v4048, %v4185
      %v4187 = vcombine.high %v4186, %v4186
      %v4189 = vunpack.c.l.s4 1966171168
      %v4190 = vunpack.c.0.s8 %v4189
      %v4191 = vlaneseq
      %v4192 = vshrl.u32 %v4191, 7
      %v4193 = vsub.s32 %v4190, %v4192
      %v4194 = vrot.slane %v4049, %v4193
      %v4196 = vunpack.c.l.s4 1966171168
      %v4197 = vunpack.c.0.s8 %v4196
      %v4198 = vlaneseq
      %v4199 = vshrl.u32 %v4198, 7
      %v4200 = vsub.s32 %v4197, %v4199
      %v4201 = vrot.slane %v4050, %v4200
      %v4202 = vcombine.high %v4201, %v4201
      %v4204 = vunpack.c.l.s4 1966171168
      %v4205 = vunpack.c.0.s8 %v4204
      %v4206 = vlaneseq
      %v4207 = vshrl.u32 %v4206, 7
      %v4208 = vsub.s32 %v4205, %v4207
      %v4209 = vrot.slane %v4051, %v4208
      %v4210 = vcombine.high %v4209, %v4209
      %v4212 = vunpack.c.l.s4 1966171168
      %v4213 = vunpack.c.0.s8 %v4212
      %v4214 = vlaneseq
      %v4215 = vshrl.u32 %v4214, 7
      %v4216 = vsub.s32 %v4213, %v4215
      %v4217 = vrot.slane %v4052, %v4216
      %v4218 = vcombine.high %v4217, %v4217
      %v4220 = vunpack.c.l.s4 1966171168
      %v4221 = vunpack.c.0.s8 %v4220
      %v4222 = vlaneseq
      %v4223 = vshrl.u32 %v4222, 7
      %v4224 = vsub.s32 %v4221, %v4223
      %v4225 = vrot.slane %v4053, %v4224
      %v4227 = vunpack.c.l.s4 1966171168
      %v4228 = vunpack.c.0.s8 %v4227
      %v4229 = vlaneseq
      %v4230 = vshrl.u32 %v4229, 7
      %v4231 = vsub.s32 %v4228, %v4230
      %v4232 = vrot.slane %v4054, %v4231
      %v4233 = vcombine.high %v4232, %v4232
      %v4235 = vunpack.c.l.s4 1966171168
      %v4236 = vunpack.c.0.s8 %v4235
      %v4237 = vlaneseq
      %v4238 = vshrl.u32 %v4237, 7
      %v4239 = vsub.s32 %v4236, %v4238
      %v4240 = vrot.slane %v4055, %v4239
      %v4241 = vcombine.high %v4240, %v4240
      %v4243 = vunpack.c.l.s4 1966171168
      %v4244 = vunpack.c.0.s8 %v4243
      %v4245 = vlaneseq
      %v4246 = vshrl.u32 %v4245, 7
      %v4247 = vsub.s32 %v4244, %v4246
      %v4248 = vrot.slane %v4056, %v4247
      %v4249 = vcombine.high %v4248, %v4248
      %v4251 = vunpack.c.l.s4 1966171168
      %v4252 = vunpack.c.0.s8 %v4251
      %v4253 = vlaneseq
      %v4254 = vshrl.u32 %v4253, 7
      %v4255 = vsub.s32 %v4252, %v4254
      %v4256 = vrot.slane %v4057, %v4255
      %v4258 = vunpack.c.l.s4 1966171168
      %v4259 = vunpack.c.0.s8 %v4258
      %v4260 = vlaneseq
      %v4261 = vshrl.u32 %v4260, 7
      %v4262 = vsub.s32 %v4259, %v4261
      %v4263 = vrot.slane %v4058, %v4262
      %v4264 = vcombine.high %v4263, %v4263
      %v4266 = vunpack.c.l.s4 1966171168
      %v4267 = vunpack.c.0.s8 %v4266
      %v4268 = vlaneseq
      %v4269 = vshrl.u32 %v4268, 7
      %v4270 = vsub.s32 %v4267, %v4269
      %v4271 = vrot.slane %v4059, %v4270
      %v4272 = vcombine.high %v4271, %v4271
      %v4274 = vunpack.c.l.s4 1966171168
      %v4275 = vunpack.c.0.s8 %v4274
      %v4276 = vlaneseq
      %v4277 = vshrl.u32 %v4276, 7
      %v4278 = vsub.s32 %v4275, %v4277
      %v4279 = vrot.slane %v4060, %v4278
      %v4280 = vcombine.high %v4279, %v4279
      %v4282 = vunpack.c.l.s4 1966171168
      %v4283 = vunpack.c.0.s8 %v4282
      %v4284 = vlaneseq
      %v4285 = vshrl.u32 %v4284, 7
      %v4286 = vsub.s32 %v4283, %v4285
      %v4287 = vrot.slane %v4061, %v4286
      %v4289 = vunpack.c.l.s4 1966171168
      %v4290 = vunpack.c.0.s8 %v4289
      %v4291 = vlaneseq
      %v4292 = vshrl.u32 %v4291, 7
      %v4293 = vsub.s32 %v4290, %v4292
      %v4294 = vrot.slane %v4062, %v4293
      %v4295 = vcombine.high %v4294, %v4294
      %v4297 = vunpack.c.l.s4 1966171168
      %v4298 = vunpack.c.0.s8 %v4297
      %v4299 = vlaneseq
      %v4300 = vshrl.u32 %v4299, 7
      %v4301 = vsub.s32 %v4298, %v4300
      %v4302 = vrot.slane %v4063, %v4301
      %v4303 = vcombine.high %v4302, %v4302
      %v4305 = vunpack.c.l.s4 1966171168
      %v4306 = vunpack.c.0.s8 %v4305
      %v4307 = vlaneseq
      %v4308 = vshrl.u32 %v4307, 7
      %v4309 = vsub.s32 %v4306, %v4308
      %v4310 = vrot.slane %v4064, %v4309
      %v4311 = vcombine.high %v4310, %v4310
      %v4313 = vunpack.c.l.s4 1966171168
      %v4314 = vunpack.c.0.s8 %v4313
      %v4315 = vlaneseq
      %v4316 = vshrl.u32 %v4315, 7
      %v4317 = vsub.s32 %v4314, %v4316
      %v4318 = vrot.slane %v4065, %v4317
      %v4320 = vunpack.c.l.s4 1966171168
      %v4321 = vunpack.c.0.s8 %v4320
      %v4322 = vlaneseq
      %v4323 = vshrl.u32 %v4322, 7
      %v4324 = vsub.s32 %v4321, %v4323
      %v4325 = vrot.slane %v4066, %v4324
      %v4326 = vcombine.high %v4325, %v4325
      %v4328 = vunpack.c.l.s4 1966171168
      %v4329 = vunpack.c.0.s8 %v4328
      %v4330 = vlaneseq
      %v4331 = vshrl.u32 %v4330, 7
      %v4332 = vsub.s32 %v4329, %v4331
      %v4333 = vrot.slane %v4067, %v4332
      %v4334 = vcombine.high %v4333, %v4333
      %v4336 = vunpack.c.l.s4 1966171168
      %v4337 = vunpack.c.0.s8 %v4336
      %v4338 = vlaneseq
      %v4339 = vshrl.u32 %v4338, 7
      %v4340 = vsub.s32 %v4337, %v4339
      %v4341 = vrot.slane %v4068, %v4340
      %v4342 = vcombine.high %v4341, %v4341
      %v4344 = vunpack.c.l.s4 1966171168
      %v4345 = vunpack.c.0.s8 %v4344
      %v4346 = vlaneseq
      %v4347 = vshrl.u32 %v4346, 7
      %v4348 = vsub.s32 %v4345, %v4347
      %v4349 = vrot.slane %v4069, %v4348
      %v4350 = vcombine.high %v4132, %v4132
      %v4351 = vcombine.high %v4163, %v4163
      %v4352 = vcombine.high %v4194, %v4194
      %v4353 = vcombine.high %v4225, %v4225
      %v4354 = vcombine.high %v4256, %v4256
      %v4355 = vcombine.high %v4287, %v4287
      %v4356 = vcombine.high %v4318, %v4318
      %v4357 = vcombine.high %v4349, %v4349
      %v4358 = vcombine.low %v4108, %v4109
      %v4359 = vcombine.low %v4116, %v4117
      %v4360 = vcombine.low %v4124, %v4125
      %v4361 = vcombine.low %v4132, %v4139
      %v4363 = vunpack.c.l.s4 1966171168
      %v4364 = vunpack.c.0.s8 %v4363
      %v4365 = vlaneseq
      %v4366 = vshrl.u32 %v4365, 7
      %v4367 = vsub.s32 %v4364, %v4366
      %v4368 = vrot.slane %v4358, %v4367
      %v4370 = vunpack.c.l.s4 1966171168
      %v4371 = vunpack.c.0.s8 %v4370
      %v4372 = vlaneseq
      %v4373 = vshrl.u32 %v4372, 7
      %v4374 = vsub.s32 %v4371, %v4373
      %v4375 = vrot.slane %v4359, %v4374
      %v4377 = vunpack.c.l.s4 1966171168
      %v4378 = vunpack.c.0.s8 %v4377
      %v4379 = vlaneseq
      %v4380 = vshrl.u32 %v4379, 7
      %v4381 = vsub.s32 %v4378, %v4380
      %v4382 = vrot.slane %v4360, %v4381
      %v4384 = vunpack.c.l.s4 1966171168
      %v4385 = vunpack.c.0.s8 %v4384
      %v4386 = vlaneseq
      %v4387 = vshrl.u32 %v4386, 7
      %v4388 = vsub.s32 %v4385, %v4387
      %v4389 = vrot.slane %v4361, %v4388
      %v4390 = vcombine.low %v4368, %v4375
      %v4391 = vcombine.low %v4382, %v4389
      %v4393 = vunpack.c.l.s4 1966171168
      %v4394 = vunpack.c.0.s8 %v4393
      %v4395 = vlaneseq
      %v4396 = vshrl.u32 %v4395, 7
      %v4397 = vsub.s32 %v4394, %v4396
      %v4398 = vrot.slane %v4390, %v4397
      %v4400 = vunpack.c.l.s4 1966171168
      %v4401 = vunpack.c.0.s8 %v4400
      %v4402 = vlaneseq
      %v4403 = vshrl.u32 %v4402, 7
      %v4404 = vsub.s32 %v4401, %v4403
      %v4405 = vrot.slane %v4391, %v4404
      %v4406 = vcombine.low %v4398, %v4405
      %v4407 = vcombine.low %v4140, %v4147
      %v4408 = vcombine.low %v4148, %v4155
      %v4409 = vcombine.low %v4156, %v4163
      %v4410 = vcombine.low %v4170, %v4171
      %v4412 = vunpack.c.l.s4 1966171168
      %v4413 = vunpack.c.0.s8 %v4412
      %v4414 = vlaneseq
      %v4415 = vshrl.u32 %v4414, 7
      %v4416 = vsub.s32 %v4413, %v4415
      %v4417 = vrot.slane %v4407, %v4416
      %v4419 = vunpack.c.l.s4 1966171168
      %v4420 = vunpack.c.0.s8 %v4419
      %v4421 = vlaneseq
      %v4422 = vshrl.u32 %v4421, 7
      %v4423 = vsub.s32 %v4420, %v4422
      %v4424 = vrot.slane %v4408, %v4423
      %v4426 = vunpack.c.l.s4 1966171168
      %v4427 = vunpack.c.0.s8 %v4426
      %v4428 = vlaneseq
      %v4429 = vshrl.u32 %v4428, 7
      %v4430 = vsub.s32 %v4427, %v4429
      %v4431 = vrot.slane %v4409, %v4430
      %v4433 = vunpack.c.l.s4 1966171168
      %v4434 = vunpack.c.0.s8 %v4433
      %v4435 = vlaneseq
      %v4436 = vshrl.u32 %v4435, 7
      %v4437 = vsub.s32 %v4434, %v4436
      %v4438 = vrot.slane %v4410, %v4437
      %v4439 = vcombine.low %v4417, %v4424
      %v4440 = vcombine.low %v4431, %v4438
      %v4442 = vunpack.c.l.s4 1966171168
      %v4443 = vunpack.c.0.s8 %v4442
      %v4444 = vlaneseq
      %v4445 = vshrl.u32 %v4444, 7
      %v4446 = vsub.s32 %v4443, %v4445
      %v4447 = vrot.slane %v4439, %v4446
      %v4449 = vunpack.c.l.s4 1966171168
      %v4450 = vunpack.c.0.s8 %v4449
      %v4451 = vlaneseq
      %v4452 = vshrl.u32 %v4451, 7
      %v4453 = vsub.s32 %v4450, %v4452
      %v4454 = vrot.slane %v4440, %v4453
      %v4455 = vcombine.low %v4447, %v4454
      %v4456 = vcombine.low %v4178, %v4179
      %v4457 = vcombine.low %v4186, %v4187
      %v4458 = vcombine.low %v4194, %v4201
      %v4459 = vcombine.low %v4202, %v4209
      %v4461 = vunpack.c.l.s4 1966171168
      %v4462 = vunpack.c.0.s8 %v4461
      %v4463 = vlaneseq
      %v4464 = vshrl.u32 %v4463, 7
      %v4465 = vsub.s32 %v4462, %v4464
      %v4466 = vrot.slane %v4456, %v4465
      %v4468 = vunpack.c.l.s4 1966171168
      %v4469 = vunpack.c.0.s8 %v4468
      %v4470 = vlaneseq
      %v4471 = vshrl.u32 %v4470, 7
      %v4472 = vsub.s32 %v4469, %v4471
      %v4473 = vrot.slane %v4457, %v4472
      %v4475 = vunpack.c.l.s4 1966171168
      %v4476 = vunpack.c.0.s8 %v4475
      %v4477 = vlaneseq
      %v4478 = vshrl.u32 %v4477, 7
      %v4479 = vsub.s32 %v4476, %v4478
      %v4480 = vrot.slane %v4458, %v4479
      %v4482 = vunpack.c.l.s4 1966171168
      %v4483 = vunpack.c.0.s8 %v4482
      %v4484 = vlaneseq
      %v4485 = vshrl.u32 %v4484, 7
      %v4486 = vsub.s32 %v4483, %v4485
      %v4487 = vrot.slane %v4459, %v4486
      %v4488 = vcombine.low %v4466, %v4473
      %v4489 = vcombine.low %v4480, %v4487
      %v4491 = vunpack.c.l.s4 1966171168
      %v4492 = vunpack.c.0.s8 %v4491
      %v4493 = vlaneseq
      %v4494 = vshrl.u32 %v4493, 7
      %v4495 = vsub.s32 %v4492, %v4494
      %v4496 = vrot.slane %v4488, %v4495
      %v4498 = vunpack.c.l.s4 1966171168
      %v4499 = vunpack.c.0.s8 %v4498
      %v4500 = vlaneseq
      %v4501 = vshrl.u32 %v4500, 7
      %v4502 = vsub.s32 %v4499, %v4501
      %v4503 = vrot.slane %v4489, %v4502
      %v4504 = vcombine.low %v4496, %v4503
      %v4505 = vcombine.low %v4210, %v4217
      %v4506 = vcombine.low %v4218, %v4225
      %v4507 = vcombine.low %v4232, %v4233
      %v4508 = vcombine.low %v4240, %v4241
      %v4510 = vunpack.c.l.s4 1966171168
      %v4511 = vunpack.c.0.s8 %v4510
      %v4512 = vlaneseq
      %v4513 = vshrl.u32 %v4512, 7
      %v4514 = vsub.s32 %v4511, %v4513
      %v4515 = vrot.slane %v4505, %v4514
      %v4517 = vunpack.c.l.s4 1966171168
      %v4518 = vunpack.c.0.s8 %v4517
      %v4519 = vlaneseq
      %v4520 = vshrl.u32 %v4519, 7
      %v4521 = vsub.s32 %v4518, %v4520
      %v4522 = vrot.slane %v4506, %v4521
      %v4524 = vunpack.c.l.s4 1966171168
      %v4525 = vunpack.c.0.s8 %v4524
      %v4526 = vlaneseq
      %v4527 = vshrl.u32 %v4526, 7
      %v4528 = vsub.s32 %v4525, %v4527
      %v4529 = vrot.slane %v4507, %v4528
      %v4531 = vunpack.c.l.s4 1966171168
      %v4532 = vunpack.c.0.s8 %v4531
      %v4533 = vlaneseq
      %v4534 = vshrl.u32 %v4533, 7
      %v4535 = vsub.s32 %v4532, %v4534
      %v4536 = vrot.slane %v4508, %v4535
      %v4537 = vcombine.low %v4515, %v4522
      %v4538 = vcombine.low %v4529, %v4536
      %v4540 = vunpack.c.l.s4 1966171168
      %v4541 = vunpack.c.0.s8 %v4540
      %v4542 = vlaneseq
      %v4543 = vshrl.u32 %v4542, 7
      %v4544 = vsub.s32 %v4541, %v4543
      %v4545 = vrot.slane %v4537, %v4544
      %v4547 = vunpack.c.l.s4 1966171168
      %v4548 = vunpack.c.0.s8 %v4547
      %v4549 = vlaneseq
      %v4550 = vshrl.u32 %v4549, 7
      %v4551 = vsub.s32 %v4548, %v4550
      %v4552 = vrot.slane %v4538, %v4551
      %v4553 = vcombine.low %v4545, %v4552
      %v4554 = vcombine.low %v4248, %v4249
      %v4555 = vcombine.low %v4256, %v4263
      %v4556 = vcombine.low %v4264, %v4271
      %v4557 = vcombine.low %v4272, %v4279
      %v4559 = vunpack.c.l.s4 1966171168
      %v4560 = vunpack.c.0.s8 %v4559
      %v4561 = vlaneseq
      %v4562 = vshrl.u32 %v4561, 7
      %v4563 = vsub.s32 %v4560, %v4562
      %v4564 = vrot.slane %v4554, %v4563
      %v4566 = vunpack.c.l.s4 1966171168
      %v4567 = vunpack.c.0.s8 %v4566
      %v4568 = vlaneseq
      %v4569 = vshrl.u32 %v4568, 7
      %v4570 = vsub.s32 %v4567, %v4569
      %v4571 = vrot.slane %v4555, %v4570
      %v4573 = vunpack.c.l.s4 1966171168
      %v4574 = vunpack.c.0.s8 %v4573
      %v4575 = vlaneseq
      %v4576 = vshrl.u32 %v4575, 7
      %v4577 = vsub.s32 %v4574, %v4576
      %v4578 = vrot.slane %v4556, %v4577
      %v4580 = vunpack.c.l.s4 1966171168
      %v4581 = vunpack.c.0.s8 %v4580
      %v4582 = vlaneseq
      %v4583 = vshrl.u32 %v4582, 7
      %v4584 = vsub.s32 %v4581, %v4583
      %v4585 = vrot.slane %v4557, %v4584
      %v4586 = vcombine.low %v4564, %v4571
      %v4587 = vcombine.low %v4578, %v4585
      %v4589 = vunpack.c.l.s4 1966171168
      %v4590 = vunpack.c.0.s8 %v4589
      %v4591 = vlaneseq
      %v4592 = vshrl.u32 %v4591, 7
      %v4593 = vsub.s32 %v4590, %v4592
      %v4594 = vrot.slane %v4586, %v4593
      %v4596 = vunpack.c.l.s4 1966171168
      %v4597 = vunpack.c.0.s8 %v4596
      %v4598 = vlaneseq
      %v4599 = vshrl.u32 %v4598, 7
      %v4600 = vsub.s32 %v4597, %v4599
      %v4601 = vrot.slane %v4587, %v4600
      %v4602 = vcombine.low %v4594, %v4601
      %v4603 = vcombine.low %v4280, %v4287
      %v4604 = vcombine.low %v4294, %v4295
      %v4605 = vcombine.low %v4302, %v4303
      %v4606 = vcombine.low %v4310, %v4311
      %v4608 = vunpack.c.l.s4 1966171168
      %v4609 = vunpack.c.0.s8 %v4608
      %v4610 = vlaneseq
      %v4611 = vshrl.u32 %v4610, 7
      %v4612 = vsub.s32 %v4609, %v4611
      %v4613 = vrot.slane %v4603, %v4612
      %v4615 = vunpack.c.l.s4 1966171168
      %v4616 = vunpack.c.0.s8 %v4615
      %v4617 = vlaneseq
      %v4618 = vshrl.u32 %v4617, 7
      %v4619 = vsub.s32 %v4616, %v4618
      %v4620 = vrot.slane %v4604, %v4619
      %v4622 = vunpack.c.l.s4 1966171168
      %v4623 = vunpack.c.0.s8 %v4622
      %v4624 = vlaneseq
      %v4625 = vshrl.u32 %v4624, 7
      %v4626 = vsub.s32 %v4623, %v4625
      %v4627 = vrot.slane %v4605, %v4626
      %v4629 = vunpack.c.l.s4 1966171168
      %v4630 = vunpack.c.0.s8 %v4629
      %v4631 = vlaneseq
      %v4632 = vshrl.u32 %v4631, 7
      %v4633 = vsub.s32 %v4630, %v4632
      %v4634 = vrot.slane %v4606, %v4633
      %v4635 = vcombine.low %v4613, %v4620
      %v4636 = vcombine.low %v4627, %v4634
      %v4638 = vunpack.c.l.s4 1966171168
      %v4639 = vunpack.c.0.s8 %v4638
      %v4640 = vlaneseq
      %v4641 = vshrl.u32 %v4640, 7
      %v4642 = vsub.s32 %v4639, %v4641
      %v4643 = vrot.slane %v4635, %v4642
      %v4645 = vunpack.c.l.s4 1966171168
      %v4646 = vunpack.c.0.s8 %v4645
      %v4647 = vlaneseq
      %v4648 = vshrl.u32 %v4647, 7
      %v4649 = vsub.s32 %v4646, %v4648
      %v4650 = vrot.slane %v4636, %v4649
      %v4651 = vcombine.low %v4643, %v4650
      %v4652 = vcombine.low %v4318, %v4325
      %v4653 = vcombine.low %v4326, %v4333
      %v4654 = vcombine.low %v4334, %v4341
      %v4655 = vcombine.low %v4342, %v4349
      %v4657 = vunpack.c.l.s4 1966171168
      %v4658 = vunpack.c.0.s8 %v4657
      %v4659 = vlaneseq
      %v4660 = vshrl.u32 %v4659, 7
      %v4661 = vsub.s32 %v4658, %v4660
      %v4662 = vrot.slane %v4652, %v4661
      %v4664 = vunpack.c.l.s4 1966171168
      %v4665 = vunpack.c.0.s8 %v4664
      %v4666 = vlaneseq
      %v4667 = vshrl.u32 %v4666, 7
      %v4668 = vsub.s32 %v4665, %v4667
      %v4669 = vrot.slane %v4653, %v4668
      %v4671 = vunpack.c.l.s4 1966171168
      %v4672 = vunpack.c.0.s8 %v4671
      %v4673 = vlaneseq
      %v4674 = vshrl.u32 %v4673, 7
      %v4675 = vsub.s32 %v4672, %v4674
      %v4676 = vrot.slane %v4654, %v4675
      %v4678 = vunpack.c.l.s4 1966171168
      %v4679 = vunpack.c.0.s8 %v4678
      %v4680 = vlaneseq
      %v4681 = vshrl.u32 %v4680, 7
      %v4682 = vsub.s32 %v4679, %v4681
      %v4683 = vrot.slane %v4655, %v4682
      %v4684 = vcombine.low %v4662, %v4669
      %v4685 = vcombine.low %v4676, %v4683
      %v4687 = vunpack.c.l.s4 1966171168
      %v4688 = vunpack.c.0.s8 %v4687
      %v4689 = vlaneseq
      %v4690 = vshrl.u32 %v4689, 7
      %v4691 = vsub.s32 %v4688, %v4690
      %v4692 = vrot.slane %v4684, %v4691
      %v4694 = vunpack.c.l.s4 1966171168
      %v4695 = vunpack.c.0.s8 %v4694
      %v4696 = vlaneseq
      %v4697 = vshrl.u32 %v4696, 7
      %v4698 = vsub.s32 %v4695, %v4697
      %v4699 = vrot.slane %v4685, %v4698
      %v4700 = vcombine.low %v4692, %v4699
      %v4708 = vcombine.low %v4109, %v4116
      %v4709 = vcombine.low %v4117, %v4124
      %v4710 = vcombine.low %v4125, %v4132
      %v4711 = vcombine.low %v4350, %v4140
      %v4713 = vunpack.c.l.s4 1966171168
      %v4714 = vunpack.c.0.s8 %v4713
      %v4715 = vlaneseq
      %v4716 = vshrl.u32 %v4715, 7
      %v4717 = vsub.s32 %v4714, %v4716
      %v4718 = vrot.slane %v4708, %v4717
      %v4720 = vunpack.c.l.s4 1966171168
      %v4721 = vunpack.c.0.s8 %v4720
      %v4722 = vlaneseq
      %v4723 = vshrl.u32 %v4722, 7
      %v4724 = vsub.s32 %v4721, %v4723
      %v4725 = vrot.slane %v4709, %v4724
      %v4727 = vunpack.c.l.s4 1966171168
      %v4728 = vunpack.c.0.s8 %v4727
      %v4729 = vlaneseq
      %v4730 = vshrl.u32 %v4729, 7
      %v4731 = vsub.s32 %v4728, %v4730
      %v4732 = vrot.slane %v4710, %v4731
      %v4734 = vunpack.c.l.s4 1966171168
      %v4735 = vunpack.c.0.s8 %v4734
      %v4736 = vlaneseq
      %v4737 = vshrl.u32 %v4736, 7
      %v4738 = vsub.s32 %v4735, %v4737
      %v4739 = vrot.slane %v4711, %v4738
      %v4740 = vcombine.low %v4718, %v4725
      %v4741 = vcombine.low %v4732, %v4739
      %v4743 = vunpack.c.l.s4 1966171168
      %v4744 = vunpack.c.0.s8 %v4743
      %v4745 = vlaneseq
      %v4746 = vshrl.u32 %v4745, 7
      %v4747 = vsub.s32 %v4744, %v4746
      %v4748 = vrot.slane %v4740, %v4747
      %v4750 = vunpack.c.l.s4 1966171168
      %v4751 = vunpack.c.0.s8 %v4750
      %v4752 = vlaneseq
      %v4753 = vshrl.u32 %v4752, 7
      %v4754 = vsub.s32 %v4751, %v4753
      %v4755 = vrot.slane %v4741, %v4754
      %v4756 = vcombine.low %v4748, %v4755
      %v4757 = vcombine.low %v4147, %v4148
      %v4758 = vcombine.low %v4155, %v4156
      %v4759 = vcombine.low %v4163, %v4351
      %v4760 = vcombine.low %v4171, %v4178
      %v4762 = vunpack.c.l.s4 1966171168
      %v4763 = vunpack.c.0.s8 %v4762
      %v4764 = vlaneseq
      %v4765 = vshrl.u32 %v4764, 7
      %v4766 = vsub.s32 %v4763, %v4765
      %v4767 = vrot.slane %v4757, %v4766
      %v4769 = vunpack.c.l.s4 1966171168
      %v4770 = vunpack.c.0.s8 %v4769
      %v4771 = vlaneseq
      %v4772 = vshrl.u32 %v4771, 7
      %v4773 = vsub.s32 %v4770, %v4772
      %v4774 = vrot.slane %v4758, %v4773
      %v4776 = vunpack.c.l.s4 1966171168
      %v4777 = vunpack.c.0.s8 %v4776
      %v4778 = vlaneseq
      %v4779 = vshrl.u32 %v4778, 7
      %v4780 = vsub.s32 %v4777, %v4779
      %v4781 = vrot.slane %v4759, %v4780
      %v4783 = vunpack.c.l.s4 1966171168
      %v4784 = vunpack.c.0.s8 %v4783
      %v4785 = vlaneseq
      %v4786 = vshrl.u32 %v4785, 7
      %v4787 = vsub.s32 %v4784, %v4786
      %v4788 = vrot.slane %v4760, %v4787
      %v4789 = vcombine.low %v4767, %v4774
      %v4790 = vcombine.low %v4781, %v4788
      %v4792 = vunpack.c.l.s4 1966171168
      %v4793 = vunpack.c.0.s8 %v4792
      %v4794 = vlaneseq
      %v4795 = vshrl.u32 %v4794, 7
      %v4796 = vsub.s32 %v4793, %v4795
      %v4797 = vrot.slane %v4789, %v4796
      %v4799 = vunpack.c.l.s4 1966171168
      %v4800 = vunpack.c.0.s8 %v4799
      %v4801 = vlaneseq
      %v4802 = vshrl.u32 %v4801, 7
      %v4803 = vsub.s32 %v4800, %v4802
      %v4804 = vrot.slane %v4790, %v4803
      %v4805 = vcombine.low %v4797, %v4804
      %v4806 = vcombine.low %v4179, %v4186
      %v4807 = vcombine.low %v4187, %v4194
      %v4808 = vcombine.low %v4352, %v4202
      %v4809 = vcombine.low %v4209, %v4210
      %v4811 = vunpack.c.l.s4 1966171168
      %v4812 = vunpack.c.0.s8 %v4811
      %v4813 = vlaneseq
      %v4814 = vshrl.u32 %v4813, 7
      %v4815 = vsub.s32 %v4812, %v4814
      %v4816 = vrot.slane %v4806, %v4815
      %v4818 = vunpack.c.l.s4 1966171168
      %v4819 = vunpack.c.0.s8 %v4818
      %v4820 = vlaneseq
      %v4821 = vshrl.u32 %v4820, 7
      %v4822 = vsub.s32 %v4819, %v4821
      %v4823 = vrot.slane %v4807, %v4822
      %v4825 = vunpack.c.l.s4 1966171168
      %v4826 = vunpack.c.0.s8 %v4825
      %v4827 = vlaneseq
      %v4828 = vshrl.u32 %v4827, 7
      %v4829 = vsub.s32 %v4826, %v4828
      %v4830 = vrot.slane %v4808, %v4829
      %v4832 = vunpack.c.l.s4 1966171168
      %v4833 = vunpack.c.0.s8 %v4832
      %v4834 = vlaneseq
      %v4835 = vshrl.u32 %v4834, 7
      %v4836 = vsub.s32 %v4833, %v4835
      %v4837 = vrot.slane %v4809, %v4836
      %v4838 = vcombine.low %v4816, %v4823
      %v4839 = vcombine.low %v4830, %v4837
      %v4841 = vunpack.c.l.s4 1966171168
      %v4842 = vunpack.c.0.s8 %v4841
      %v4843 = vlaneseq
      %v4844 = vshrl.u32 %v4843, 7
      %v4845 = vsub.s32 %v4842, %v4844
      %v4846 = vrot.slane %v4838, %v4845
      %v4848 = vunpack.c.l.s4 1966171168
      %v4849 = vunpack.c.0.s8 %v4848
      %v4850 = vlaneseq
      %v4851 = vshrl.u32 %v4850, 7
      %v4852 = vsub.s32 %v4849, %v4851
      %v4853 = vrot.slane %v4839, %v4852
      %v4854 = vcombine.low %v4846, %v4853
      %v4855 = vcombine.low %v4217, %v4218
      %v4856 = vcombine.low %v4225, %v4353
      %v4857 = vcombine.low %v4233, %v4240
      %v4858 = vcombine.low %v4241, %v4248
      %v4860 = vunpack.c.l.s4 1966171168
      %v4861 = vunpack.c.0.s8 %v4860
      %v4862 = vlaneseq
      %v4863 = vshrl.u32 %v4862, 7
      %v4864 = vsub.s32 %v4861, %v4863
      %v4865 = vrot.slane %v4855, %v4864
      %v4867 = vunpack.c.l.s4 1966171168
      %v4868 = vunpack.c.0.s8 %v4867
      %v4869 = vlaneseq
      %v4870 = vshrl.u32 %v4869, 7
      %v4871 = vsub.s32 %v4868, %v4870
      %v4872 = vrot.slane %v4856, %v4871
      %v4874 = vunpack.c.l.s4 1966171168
      %v4875 = vunpack.c.0.s8 %v4874
      %v4876 = vlaneseq
      %v4877 = vshrl.u32 %v4876, 7
      %v4878 = vsub.s32 %v4875, %v4877
      %v4879 = vrot.slane %v4857, %v4878
      %v4881 = vunpack.c.l.s4 1966171168
      %v4882 = vunpack.c.0.s8 %v4881
      %v4883 = vlaneseq
      %v4884 = vshrl.u32 %v4883, 7
      %v4885 = vsub.s32 %v4882, %v4884
      %v4886 = vrot.slane %v4858, %v4885
      %v4887 = vcombine.low %v4865, %v4872
      %v4888 = vcombine.low %v4879, %v4886
      %v4890 = vunpack.c.l.s4 1966171168
      %v4891 = vunpack.c.0.s8 %v4890
      %v4892 = vlaneseq
      %v4893 = vshrl.u32 %v4892, 7
      %v4894 = vsub.s32 %v4891, %v4893
      %v4895 = vrot.slane %v4887, %v4894
      %v4897 = vunpack.c.l.s4 1966171168
      %v4898 = vunpack.c.0.s8 %v4897
      %v4899 = vlaneseq
      %v4900 = vshrl.u32 %v4899, 7
      %v4901 = vsub.s32 %v4898, %v4900
      %v4902 = vrot.slane %v4888, %v4901
      %v4903 = vcombine.low %v4895, %v4902
      %v4904 = vcombine.low %v4249, %v4256
      %v4905 = vcombine.low %v4354, %v4264
      %v4906 = vcombine.low %v4271, %v4272
      %v4907 = vcombine.low %v4279, %v4280
      %v4909 = vunpack.c.l.s4 1966171168
      %v4910 = vunpack.c.0.s8 %v4909
      %v4911 = vlaneseq
      %v4912 = vshrl.u32 %v4911, 7
      %v4913 = vsub.s32 %v4910, %v4912
      %v4914 = vrot.slane %v4904, %v4913
      %v4916 = vunpack.c.l.s4 1966171168
      %v4917 = vunpack.c.0.s8 %v4916
      %v4918 = vlaneseq
      %v4919 = vshrl.u32 %v4918, 7
      %v4920 = vsub.s32 %v4917, %v4919
      %v4921 = vrot.slane %v4905, %v4920
      %v4923 = vunpack.c.l.s4 1966171168
      %v4924 = vunpack.c.0.s8 %v4923
      %v4925 = vlaneseq
      %v4926 = vshrl.u32 %v4925, 7
      %v4927 = vsub.s32 %v4924, %v4926
      %v4928 = vrot.slane %v4906, %v4927
      %v4930 = vunpack.c.l.s4 1966171168
      %v4931 = vunpack.c.0.s8 %v4930
      %v4932 = vlaneseq
      %v4933 = vshrl.u32 %v4932, 7
      %v4934 = vsub.s32 %v4931, %v4933
      %v4935 = vrot.slane %v4907, %v4934
      %v4936 = vcombine.low %v4914, %v4921
      %v4937 = vcombine.low %v4928, %v4935
      %v4939 = vunpack.c.l.s4 1966171168
      %v4940 = vunpack.c.0.s8 %v4939
      %v4941 = vlaneseq
      %v4942 = vshrl.u32 %v4941, 7
      %v4943 = vsub.s32 %v4940, %v4942
      %v4944 = vrot.slane %v4936, %v4943
      %v4946 = vunpack.c.l.s4 1966171168
      %v4947 = vunpack.c.0.s8 %v4946
      %v4948 = vlaneseq
      %v4949 = vshrl.u32 %v4948, 7
      %v4950 = vsub.s32 %v4947, %v4949
      %v4951 = vrot.slane %v4937, %v4950
      %v4952 = vcombine.low %v4944, %v4951
      %v4953 = vcombine.low %v4287, %v4355
      %v4954 = vcombine.low %v4295, %v4302
      %v4955 = vcombine.low %v4303, %v4310
      %v4956 = vcombine.low %v4311, %v4318
      %v4958 = vunpack.c.l.s4 1966171168
      %v4959 = vunpack.c.0.s8 %v4958
      %v4960 = vlaneseq
      %v4961 = vshrl.u32 %v4960, 7
      %v4962 = vsub.s32 %v4959, %v4961
      %v4963 = vrot.slane %v4953, %v4962
      %v4965 = vunpack.c.l.s4 1966171168
      %v4966 = vunpack.c.0.s8 %v4965
      %v4967 = vlaneseq
      %v4968 = vshrl.u32 %v4967, 7
      %v4969 = vsub.s32 %v4966, %v4968
      %v4970 = vrot.slane %v4954, %v4969
      %v4972 = vunpack.c.l.s4 1966171168
      %v4973 = vunpack.c.0.s8 %v4972
      %v4974 = vlaneseq
      %v4975 = vshrl.u32 %v4974, 7
      %v4976 = vsub.s32 %v4973, %v4975
      %v4977 = vrot.slane %v4955, %v4976
      %v4979 = vunpack.c.l.s4 1966171168
      %v4980 = vunpack.c.0.s8 %v4979
      %v4981 = vlaneseq
      %v4982 = vshrl.u32 %v4981, 7
      %v4983 = vsub.s32 %v4980, %v4982
      %v4984 = vrot.slane %v4956, %v4983
      %v4985 = vcombine.low %v4963, %v4970
      %v4986 = vcombine.low %v4977, %v4984
      %v4988 = vunpack.c.l.s4 1966171168
      %v4989 = vunpack.c.0.s8 %v4988
      %v4990 = vlaneseq
      %v4991 = vshrl.u32 %v4990, 7
      %v4992 = vsub.s32 %v4989, %v4991
      %v4993 = vrot.slane %v4985, %v4992
      %v4995 = vunpack.c.l.s4 1966171168
      %v4996 = vunpack.c.0.s8 %v4995
      %v4997 = vlaneseq
      %v4998 = vshrl.u32 %v4997, 7
      %v4999 = vsub.s32 %v4996, %v4998
      %v5000 = vrot.slane %v4986, %v4999
      %v5001 = vcombine.low %v4993, %v5000
      %v5002 = vcombine.low %v4356, %v4326
      %v5003 = vcombine.low %v4333, %v4334
      %v5004 = vcombine.low %v4341, %v4342
      %v5005 = vcombine.low %v4349, %v4357
      %v5007 = vunpack.c.l.s4 1966171168
      %v5008 = vunpack.c.0.s8 %v5007
      %v5009 = vlaneseq
      %v5010 = vshrl.u32 %v5009, 7
      %v5011 = vsub.s32 %v5008, %v5010
      %v5012 = vrot.slane %v5002, %v5011
      %v5014 = vunpack.c.l.s4 1966171168
      %v5015 = vunpack.c.0.s8 %v5014
      %v5016 = vlaneseq
      %v5017 = vshrl.u32 %v5016, 7
      %v5018 = vsub.s32 %v5015, %v5017
      %v5019 = vrot.slane %v5003, %v5018
      %v5021 = vunpack.c.l.s4 1966171168
      %v5022 = vunpack.c.0.s8 %v5021
      %v5023 = vlaneseq
      %v5024 = vshrl.u32 %v5023, 7
      %v5025 = vsub.s32 %v5022, %v5024
      %v5026 = vrot.slane %v5004, %v5025
      %v5028 = vunpack.c.l.s4 1966171168
      %v5029 = vunpack.c.0.s8 %v5028
      %v5030 = vlaneseq
      %v5031 = vshrl.u32 %v5030, 7
      %v5032 = vsub.s32 %v5029, %v5031
      %v5033 = vrot.slane %v5005, %v5032
      %v5034 = vcombine.low %v5012, %v5019
      %v5035 = vcombine.low %v5026, %v5033
      %v5037 = vunpack.c.l.s4 1966171168
      %v5038 = vunpack.c.0.s8 %v5037
      %v5039 = vlaneseq
      %v5040 = vshrl.u32 %v5039, 7
      %v5041 = vsub.s32 %v5038, %v5040
      %v5042 = vrot.slane %v5034, %v5041
      %v5044 = vunpack.c.l.s4 1966171168
      %v5045 = vunpack.c.0.s8 %v5044
      %v5046 = vlaneseq
      %v5047 = vshrl.u32 %v5046, 7
      %v5048 = vsub.s32 %v5045, %v5047
      %v5049 = vrot.slane %v5035, %v5048
      %v5050 = vcombine.low %v5042, %v5049
      %5051 = vrot.lane.b32.xlu0 %v4756, 8
      %v5052 = vpop.permute.xlu0 %5051
      %5053 = vrot.lane.b32.xlu0 %v4805, 8
      %v5054 = vpop.permute.xlu0 %5053
      %5055 = vrot.lane.b32.xlu0 %v4854, 8
      %v5056 = vpop.permute.xlu0 %5055
      %5057 = vrot.lane.b32.xlu0 %v4903, 8
      %v5058 = vpop.permute.xlu0 %5057
      %5059 = vrot.lane.b32.xlu0 %v4952, 8
      %v5060 = vpop.permute.xlu0 %5059
      %5061 = vrot.lane.b32.xlu0 %v5001, 8
      %v5062 = vpop.permute.xlu0 %5061
      %5063 = vrot.lane.b32.xlu0 %v5050, 8
      %v5064 = vpop.permute.xlu0 %5063
      %v5072 = vsel %vm1711, %v4406, %v5052
      %v5073 = vsel %vm1711, %v4455, %v5054
      %v5074 = vsel %vm1711, %v4504, %v5056
      %v5075 = vsel %vm1711, %v4553, %v5058
      %v5076 = vsel %vm1711, %v4602, %v5060
      %v5077 = vsel %vm1711, %v4651, %v5062
      %v5078 = vsel %vm1711, %v4700, %v5064
      %v5079 = vld [vmem:[%s53] sm:$0xff]
      %v5080 = vld [vmem:[%s53 + $0x8] sm:$0xff]
      %v5081 = vld [vmem:[%s55] sm:$0x1]
      %v5083 = vlaneseq
      %v5084 = vshrl.u32 %v5083, 7
      %v5085 = vsub.s32 0, %v5084
      %v5086 = vrot.slane %v5081, %v5085
      %v5089 = vsel %vm1716, %v5072, 0
      %v5092 = vsel %vm1716, %v5073, 0
      %v5095 = vsel %vm1716, %v5074, 0
      %v5098 = vsel %vm1716, %v5075, 0
      %v5101 = vsel %vm1716, %v5076, 0
      %v5104 = vsel %vm1716, %v5077, 0
      %v5107 = vsel %vm1716, %v5078, 0
      %5109 = vmatprep.subr.mxu0 0.0
      %5110 = vmatpush1.msra.mxu0 %v5079
      %5111 = vmatprep.subr.mxu0 0.0
      %5112 = vmatpush1.msra.mxu0 %v5080
      %5113 = vmatprep.subr.mxu0 0.0
      %5114 = vmatpush1.msra.mxu0 0.0
      %5115 = vmatprep.subr.mxu0 0.0
      %5116 = vmatpush1.msra.mxu0 0.0
      %5117 = vmatprep.subr.mxu0 0.0
      %5118 = vmatpush1.msra.mxu0 0.0
      %5119 = vmatprep.subr.mxu0 0.0
      %5120 = vmatpush1.msra.mxu0 0.0
      %5121 = vmatprep.subr.mxu0 0.0
      %5122 = vmatpush1.msra.mxu0 0.0
      %5123 = vmatprep.subr.mxu0 0.0
      %5124 = vmatpush1.msra.mxu0 0.0
      %5125 = vmatprep.subr.mxu0 0.0
      %5126 = vmatpush1.msra.mxu0 0.0
      %5127 = vmatprep.subr.mxu0 0.0
      %5128 = vmatpush1.msra.mxu0 0.0
      %5129 = vmatprep.subr.mxu0 0.0
      %5130 = vmatpush1.msra.mxu0 0.0
      %5131 = vmatprep.subr.mxu0 0.0
      %5132 = vmatpush1.msra.mxu0 0.0
      %5133 = vmatprep.subr.mxu0 0.0
      %5134 = vmatpush1.msra.mxu0 0.0
      %5135 = vmatprep.subr.mxu0 0.0
      %5136 = vmatpush1.msra.mxu0 0.0
      %5137 = vmatprep.subr.mxu0 0.0
      %5138 = vmatpush1.msra.mxu0 0.0
      %5139 = vmatprep.subr.mxu0 0.0
      %5140 = vmatpush1.msra.mxu0 0.0
      %5141 = vmatprep.subr.mxu0 0.0
      %5142 = vmatpush1.msra.mxu0 0.0
      %5143 = vmatprep.subr.mxu0 0.0
      %5144 = vmatpush1.msra.mxu0 0.0
      %5145 = vmatprep.subr.mxu0 0.0
      %5146 = vmatpush1.msra.mxu0 0.0
      %5147 = vmatprep.subr.mxu0 0.0
      %5148 = vmatpush1.msra.mxu0 0.0
      %5149 = vmatprep.subr.mxu0 0.0
      %5150 = vmatpush1.msra.mxu0 0.0
      %5151 = vmatprep.subr.mxu0 0.0
      %5152 = vmatpush1.msra.mxu0 0.0
      %5153 = vmatprep.subr.mxu0 0.0
      %5154 = vmatpush1.msra.mxu0 0.0
      %5155 = vmatprep.subr.mxu0 0.0
      %5156 = vmatpush1.msra.mxu0 0.0
      %5157 = vmatprep.subr.mxu0 0.0
      %5158 = vmatpush1.msra.mxu0 0.0
      %5159 = vmatprep.subr.mxu0 0.0
      %5160 = vmatpush1.msra.mxu0 0.0
      %5161 = vmatprep.subr.mxu0 0.0
      %5162 = vmatpush1.msra.mxu0 0.0
      %5163 = vmatprep.subr.mxu0 0.0
      %5164 = vmatpush1.msra.mxu0 0.0
      %5165 = vmatprep.subr.mxu0 0.0
      %5166 = vmatpush1.msra.mxu0 0.0
      %5167 = vmatprep.subr.mxu0 0.0
      %5168 = vmatpush1.msra.mxu0 0.0
      %5169 = vmatprep.subr.mxu0 0.0
      %5170 = vmatpush1.msra.mxu0 0.0
      %5171 = vmatprep.subr.mxu0 0.0
      %5172 = vmatpush1.msra.mxu0 0.0
      %5173 = vmatprep.mubr.f32.mxu0 0.0
      %5174 = vmatmul.mubr.f32.gmra.mrb[0].mxu0 %v5089
      %v5175 = vpop.f32.mrb[0].mxu0
      %v5176 = vadd.f32 %v5086, %v5175
      %v5177 = vpop.f32.mrb[0].mxu0
      %5178 = vmatprep.mubr.f32.mxu0 0.0
      %5179 = vmatmul.mubr.f32.gmra.mrb[0].mxu0 %v5092
      %v5180 = vpop.f32.mrb[0].mxu0
      %v5181 = vadd.f32 %v5086, %v5180
      %v5182 = vpop.f32.mrb[0].mxu0
      %5183 = vmatprep.mubr.f32.mxu0 0.0
      %5184 = vmatmul.mubr.f32.gmra.mrb[0].mxu0 %v5095
      %v5185 = vpop.f32.mrb[0].mxu0
      %v5186 = vadd.f32 %v5086, %v5185
      %v5187 = vpop.f32.mrb[0].mxu0
      %5188 = vmatprep.mubr.f32.mxu0 0.0
      %5189 = vmatmul.mubr.f32.gmra.mrb[0].mxu0 %v5098
      %v5190 = vpop.f32.mrb[0].mxu0
      %v5191 = vadd.f32 %v5086, %v5190
      %v5192 = vpop.f32.mrb[0].mxu0
      %5193 = vmatprep.mubr.f32.mxu0 0.0
      %5194 = vmatmul.mubr.f32.gmra.mrb[0].mxu0 %v5101
      %v5195 = vpop.f32.mrb[0].mxu0
      %v5196 = vadd.f32 %v5086, %v5195
      %v5197 = vpop.f32.mrb[0].mxu0
      %5198 = vmatprep.mubr.f32.mxu0 0.0
      %5199 = vmatmul.mubr.f32.gmra.mrb[0].mxu0 %v5104
      %v5200 = vpop.f32.mrb[0].mxu0
      %v5201 = vadd.f32 %v5086, %v5200
      %v5202 = vpop.f32.mrb[0].mxu0
      %5203 = vmatprep.mubr.f32.mxu0 0.0
      %5204 = vmatmul.mubr.f32.gmra.mrb[0].mxu0 %v5107
      %v5205 = vpop.f32.mrb[0].mxu0
      %v5206 = vadd.f32 %v5086, %v5205
      %v5207 = vpop.f32.mrb[0].mxu0
      %5208 = vdwg.mxu0
      %v5216 = vcombine.high %v5176, %v5176
      %v5218 = vunpack.c.l.s4 1966171168
      %v5219 = vunpack.c.0.s8 %v5218
      %v5220 = vlaneseq
      %v5221 = vshrl.u32 %v5220, 7
      %v5222 = vsub.s32 %v5219, %v5221
      %v5223 = vrot.slane %v5176, %v5222
      %v5225 = vunpack.c.l.s4 1966171168
      %v5226 = vunpack.c.0.s8 %v5225
      %v5227 = vlaneseq
      %v5228 = vshrl.u32 %v5227, 7
      %v5229 = vsub.s32 %v5226, %v5228
      %v5230 = vrot.slane %v5216, %v5229
      %v5231 = vcombine.high %v5223, %v5223
      %v5232 = vcombine.high %v5230, %v5230
      %v5234 = vunpack.c.l.s4 1966171168
      %v5235 = vunpack.c.0.s8 %v5234
      %v5236 = vlaneseq
      %v5237 = vshrl.u32 %v5236, 7
      %v5238 = vsub.s32 %v5235, %v5237
      %v5239 = vrot.slane %v5223, %v5238
      %v5241 = vunpack.c.l.s4 1966171168
      %v5242 = vunpack.c.0.s8 %v5241
      %v5243 = vlaneseq
      %v5244 = vshrl.u32 %v5243, 7
      %v5245 = vsub.s32 %v5242, %v5244
      %v5246 = vrot.slane %v5230, %v5245
      %v5248 = vunpack.c.l.s4 1966171168
      %v5249 = vunpack.c.0.s8 %v5248
      %v5250 = vlaneseq
      %v5251 = vshrl.u32 %v5250, 7
      %v5252 = vsub.s32 %v5249, %v5251
      %v5253 = vrot.slane %v5231, %v5252
      %v5255 = vunpack.c.l.s4 1966171168
      %v5256 = vunpack.c.0.s8 %v5255
      %v5257 = vlaneseq
      %v5258 = vshrl.u32 %v5257, 7
      %v5259 = vsub.s32 %v5256, %v5258
      %v5260 = vrot.slane %v5232, %v5259
      %v5261 = vcombine.high %v5239, %v5239
      %v5262 = vcombine.high %v5246, %v5246
      %v5263 = vcombine.high %v5253, %v5253
      %v5264 = vcombine.high %v5260, %v5260
      %v5265 = vcombine.high %v5181, %v5181
      %v5267 = vunpack.c.l.s4 1966171168
      %v5268 = vunpack.c.0.s8 %v5267
      %v5269 = vlaneseq
      %v5270 = vshrl.u32 %v5269, 7
      %v5271 = vsub.s32 %v5268, %v5270
      %v5272 = vrot.slane %v5181, %v5271
      %v5274 = vunpack.c.l.s4 1966171168
      %v5275 = vunpack.c.0.s8 %v5274
      %v5276 = vlaneseq
      %v5277 = vshrl.u32 %v5276, 7
      %v5278 = vsub.s32 %v5275, %v5277
      %v5279 = vrot.slane %v5265, %v5278
      %v5280 = vcombine.high %v5272, %v5272
      %v5281 = vcombine.high %v5279, %v5279
      %v5283 = vunpack.c.l.s4 1966171168
      %v5284 = vunpack.c.0.s8 %v5283
      %v5285 = vlaneseq
      %v5286 = vshrl.u32 %v5285, 7
      %v5287 = vsub.s32 %v5284, %v5286
      %v5288 = vrot.slane %v5272, %v5287
      %v5290 = vunpack.c.l.s4 1966171168
      %v5291 = vunpack.c.0.s8 %v5290
      %v5292 = vlaneseq
      %v5293 = vshrl.u32 %v5292, 7
      %v5294 = vsub.s32 %v5291, %v5293
      %v5295 = vrot.slane %v5279, %v5294
      %v5297 = vunpack.c.l.s4 1966171168
      %v5298 = vunpack.c.0.s8 %v5297
      %v5299 = vlaneseq
      %v5300 = vshrl.u32 %v5299, 7
      %v5301 = vsub.s32 %v5298, %v5300
      %v5302 = vrot.slane %v5280, %v5301
      %v5304 = vunpack.c.l.s4 1966171168
      %v5305 = vunpack.c.0.s8 %v5304
      %v5306 = vlaneseq
      %v5307 = vshrl.u32 %v5306, 7
      %v5308 = vsub.s32 %v5305, %v5307
      %v5309 = vrot.slane %v5281, %v5308
      %v5310 = vcombine.high %v5288, %v5288
      %v5311 = vcombine.high %v5295, %v5295
      %v5312 = vcombine.high %v5302, %v5302
      %v5313 = vcombine.high %v5309, %v5309
      %v5314 = vcombine.high %v5186, %v5186
      %v5316 = vunpack.c.l.s4 1966171168
      %v5317 = vunpack.c.0.s8 %v5316
      %v5318 = vlaneseq
      %v5319 = vshrl.u32 %v5318, 7
      %v5320 = vsub.s32 %v5317, %v5319
      %v5321 = vrot.slane %v5186, %v5320
      %v5323 = vunpack.c.l.s4 1966171168
      %v5324 = vunpack.c.0.s8 %v5323
      %v5325 = vlaneseq
      %v5326 = vshrl.u32 %v5325, 7
      %v5327 = vsub.s32 %v5324, %v5326
      %v5328 = vrot.slane %v5314, %v5327
      %v5329 = vcombine.high %v5321, %v5321
      %v5330 = vcombine.high %v5328, %v5328
      %v5332 = vunpack.c.l.s4 1966171168
      %v5333 = vunpack.c.0.s8 %v5332
      %v5334 = vlaneseq
      %v5335 = vshrl.u32 %v5334, 7
      %v5336 = vsub.s32 %v5333, %v5335
      %v5337 = vrot.slane %v5321, %v5336
      %v5339 = vunpack.c.l.s4 1966171168
      %v5340 = vunpack.c.0.s8 %v5339
      %v5341 = vlaneseq
      %v5342 = vshrl.u32 %v5341, 7
      %v5343 = vsub.s32 %v5340, %v5342
      %v5344 = vrot.slane %v5328, %v5343
      %v5346 = vunpack.c.l.s4 1966171168
      %v5347 = vunpack.c.0.s8 %v5346
      %v5348 = vlaneseq
      %v5349 = vshrl.u32 %v5348, 7
      %v5350 = vsub.s32 %v5347, %v5349
      %v5351 = vrot.slane %v5329, %v5350
      %v5353 = vunpack.c.l.s4 1966171168
      %v5354 = vunpack.c.0.s8 %v5353
      %v5355 = vlaneseq
      %v5356 = vshrl.u32 %v5355, 7
      %v5357 = vsub.s32 %v5354, %v5356
      %v5358 = vrot.slane %v5330, %v5357
      %v5359 = vcombine.high %v5337, %v5337
      %v5360 = vcombine.high %v5344, %v5344
      %v5361 = vcombine.high %v5351, %v5351
      %v5362 = vcombine.high %v5358, %v5358
      %v5363 = vcombine.high %v5191, %v5191
      %v5365 = vunpack.c.l.s4 1966171168
      %v5366 = vunpack.c.0.s8 %v5365
      %v5367 = vlaneseq
      %v5368 = vshrl.u32 %v5367, 7
      %v5369 = vsub.s32 %v5366, %v5368
      %v5370 = vrot.slane %v5191, %v5369
      %v5372 = vunpack.c.l.s4 1966171168
      %v5373 = vunpack.c.0.s8 %v5372
      %v5374 = vlaneseq
      %v5375 = vshrl.u32 %v5374, 7
      %v5376 = vsub.s32 %v5373, %v5375
      %v5377 = vrot.slane %v5363, %v5376
      %v5378 = vcombine.high %v5370, %v5370
      %v5379 = vcombine.high %v5377, %v5377
      %v5381 = vunpack.c.l.s4 1966171168
      %v5382 = vunpack.c.0.s8 %v5381
      %v5383 = vlaneseq
      %v5384 = vshrl.u32 %v5383, 7
      %v5385 = vsub.s32 %v5382, %v5384
      %v5386 = vrot.slane %v5370, %v5385
      %v5388 = vunpack.c.l.s4 1966171168
      %v5389 = vunpack.c.0.s8 %v5388
      %v5390 = vlaneseq
      %v5391 = vshrl.u32 %v5390, 7
      %v5392 = vsub.s32 %v5389, %v5391
      %v5393 = vrot.slane %v5377, %v5392
      %v5395 = vunpack.c.l.s4 1966171168
      %v5396 = vunpack.c.0.s8 %v5395
      %v5397 = vlaneseq
      %v5398 = vshrl.u32 %v5397, 7
      %v5399 = vsub.s32 %v5396, %v5398
      %v5400 = vrot.slane %v5378, %v5399
      %v5402 = vunpack.c.l.s4 1966171168
      %v5403 = vunpack.c.0.s8 %v5402
      %v5404 = vlaneseq
      %v5405 = vshrl.u32 %v5404, 7
      %v5406 = vsub.s32 %v5403, %v5405
      %v5407 = vrot.slane %v5379, %v5406
      %v5408 = vcombine.high %v5386, %v5386
      %v5409 = vcombine.high %v5393, %v5393
      %v5410 = vcombine.high %v5400, %v5400
      %v5411 = vcombine.high %v5407, %v5407
      %v5412 = vcombine.high %v5196, %v5196
      %v5414 = vunpack.c.l.s4 1966171168
      %v5415 = vunpack.c.0.s8 %v5414
      %v5416 = vlaneseq
      %v5417 = vshrl.u32 %v5416, 7
      %v5418 = vsub.s32 %v5415, %v5417
      %v5419 = vrot.slane %v5196, %v5418
      %v5421 = vunpack.c.l.s4 1966171168
      %v5422 = vunpack.c.0.s8 %v5421
      %v5423 = vlaneseq
      %v5424 = vshrl.u32 %v5423, 7
      %v5425 = vsub.s32 %v5422, %v5424
      %v5426 = vrot.slane %v5412, %v5425
      %v5427 = vcombine.high %v5419, %v5419
      %v5428 = vcombine.high %v5426, %v5426
      %v5430 = vunpack.c.l.s4 1966171168
      %v5431 = vunpack.c.0.s8 %v5430
      %v5432 = vlaneseq
      %v5433 = vshrl.u32 %v5432, 7
      %v5434 = vsub.s32 %v5431, %v5433
      %v5435 = vrot.slane %v5419, %v5434
      %v5437 = vunpack.c.l.s4 1966171168
      %v5438 = vunpack.c.0.s8 %v5437
      %v5439 = vlaneseq
      %v5440 = vshrl.u32 %v5439, 7
      %v5441 = vsub.s32 %v5438, %v5440
      %v5442 = vrot.slane %v5426, %v5441
      %v5444 = vunpack.c.l.s4 1966171168
      %v5445 = vunpack.c.0.s8 %v5444
      %v5446 = vlaneseq
      %v5447 = vshrl.u32 %v5446, 7
      %v5448 = vsub.s32 %v5445, %v5447
      %v5449 = vrot.slane %v5427, %v5448
      %v5451 = vunpack.c.l.s4 1966171168
      %v5452 = vunpack.c.0.s8 %v5451
      %v5453 = vlaneseq
      %v5454 = vshrl.u32 %v5453, 7
      %v5455 = vsub.s32 %v5452, %v5454
      %v5456 = vrot.slane %v5428, %v5455
      %v5457 = vcombine.high %v5435, %v5435
      %v5458 = vcombine.high %v5442, %v5442
      %v5459 = vcombine.high %v5449, %v5449
      %v5460 = vcombine.high %v5456, %v5456
      %v5461 = vcombine.high %v5201, %v5201
      %v5463 = vunpack.c.l.s4 1966171168
      %v5464 = vunpack.c.0.s8 %v5463
      %v5465 = vlaneseq
      %v5466 = vshrl.u32 %v5465, 7
      %v5467 = vsub.s32 %v5464, %v5466
      %v5468 = vrot.slane %v5201, %v5467
      %v5470 = vunpack.c.l.s4 1966171168
      %v5471 = vunpack.c.0.s8 %v5470
      %v5472 = vlaneseq
      %v5473 = vshrl.u32 %v5472, 7
      %v5474 = vsub.s32 %v5471, %v5473
      %v5475 = vrot.slane %v5461, %v5474
      %v5476 = vcombine.high %v5468, %v5468
      %v5477 = vcombine.high %v5475, %v5475
      %v5479 = vunpack.c.l.s4 1966171168
      %v5480 = vunpack.c.0.s8 %v5479
      %v5481 = vlaneseq
      %v5482 = vshrl.u32 %v5481, 7
      %v5483 = vsub.s32 %v5480, %v5482
      %v5484 = vrot.slane %v5468, %v5483
      %v5486 = vunpack.c.l.s4 1966171168
      %v5487 = vunpack.c.0.s8 %v5486
      %v5488 = vlaneseq
      %v5489 = vshrl.u32 %v5488, 7
      %v5490 = vsub.s32 %v5487, %v5489
      %v5491 = vrot.slane %v5475, %v5490
      %v5493 = vunpack.c.l.s4 1966171168
      %v5494 = vunpack.c.0.s8 %v5493
      %v5495 = vlaneseq
      %v5496 = vshrl.u32 %v5495, 7
      %v5497 = vsub.s32 %v5494, %v5496
      %v5498 = vrot.slane %v5476, %v5497
      %v5500 = vunpack.c.l.s4 1966171168
      %v5501 = vunpack.c.0.s8 %v5500
      %v5502 = vlaneseq
      %v5503 = vshrl.u32 %v5502, 7
      %v5504 = vsub.s32 %v5501, %v5503
      %v5505 = vrot.slane %v5477, %v5504
      %v5506 = vcombine.high %v5484, %v5484
      %v5507 = vcombine.high %v5491, %v5491
      %v5508 = vcombine.high %v5498, %v5498
      %v5509 = vcombine.high %v5505, %v5505
      %v5510 = vcombine.high %v5206, %v5206
      %v5512 = vunpack.c.l.s4 1966171168
      %v5513 = vunpack.c.0.s8 %v5512
      %v5514 = vlaneseq
      %v5515 = vshrl.u32 %v5514, 7
      %v5516 = vsub.s32 %v5513, %v5515
      %v5517 = vrot.slane %v5206, %v5516
      %v5519 = vunpack.c.l.s4 1966171168
      %v5520 = vunpack.c.0.s8 %v5519
      %v5521 = vlaneseq
      %v5522 = vshrl.u32 %v5521, 7
      %v5523 = vsub.s32 %v5520, %v5522
      %v5524 = vrot.slane %v5510, %v5523
      %v5525 = vcombine.high %v5517, %v5517
      %v5526 = vcombine.high %v5524, %v5524
      %v5528 = vunpack.c.l.s4 1966171168
      %v5529 = vunpack.c.0.s8 %v5528
      %v5530 = vlaneseq
      %v5531 = vshrl.u32 %v5530, 7
      %v5532 = vsub.s32 %v5529, %v5531
      %v5533 = vrot.slane %v5517, %v5532
      %v5535 = vunpack.c.l.s4 1966171168
      %v5536 = vunpack.c.0.s8 %v5535
      %v5537 = vlaneseq
      %v5538 = vshrl.u32 %v5537, 7
      %v5539 = vsub.s32 %v5536, %v5538
      %v5540 = vrot.slane %v5524, %v5539
      %v5542 = vunpack.c.l.s4 1966171168
      %v5543 = vunpack.c.0.s8 %v5542
      %v5544 = vlaneseq
      %v5545 = vshrl.u32 %v5544, 7
      %v5546 = vsub.s32 %v5543, %v5545
      %v5547 = vrot.slane %v5525, %v5546
      %v5549 = vunpack.c.l.s4 1966171168
      %v5550 = vunpack.c.0.s8 %v5549
      %v5551 = vlaneseq
      %v5552 = vshrl.u32 %v5551, 7
      %v5553 = vsub.s32 %v5550, %v5552
      %v5554 = vrot.slane %v5526, %v5553
      %v5555 = vcombine.high %v5533, %v5533
      %v5556 = vcombine.high %v5540, %v5540
      %v5557 = vcombine.high %v5547, %v5547
      %v5558 = vcombine.high %v5554, %v5554
      %v5559 = vld [vmem:[%s57] sm:$0x3]
      %v5560 = vld [vmem:[%s59] sm:$0x3]
      %5562 = vset.pattern.permute.xlu0 0
      %5563 = vperm.xlu0 %5562, %v5560
      %v5564 = vpop.permute.xlu0 %5563
      %v5566 = vcombine.low %v5239, %v5253
      %v5567 = vcombine.low %v5261, %v5263
      %v5568 = vcombine.low %v5246, %v5260
      %v5570 = vunpack.c.l.s4 1966171168
      %v5571 = vunpack.c.0.s8 %v5570
      %v5572 = vlaneseq
      %v5573 = vshrl.u32 %v5572, 7
      %v5574 = vsub.s32 %v5571, %v5573
      %v5575 = vrot.slane %v5566, %v5574
      %v5577 = vunpack.c.l.s4 1966171168
      %v5578 = vunpack.c.0.s8 %v5577
      %v5579 = vlaneseq
      %v5580 = vshrl.u32 %v5579, 7
      %v5581 = vsub.s32 %v5578, %v5580
      %v5582 = vrot.slane %v5567, %v5581
      %v5584 = vunpack.c.l.s4 1966171168
      %v5585 = vunpack.c.0.s8 %v5584
      %v5586 = vlaneseq
      %v5587 = vshrl.u32 %v5586, 7
      %v5588 = vsub.s32 %v5585, %v5587
      %v5589 = vrot.slane %v5568, %v5588
      %v5591 = vunpack.c.l.s4 1966171168
      %v5592 = vunpack.c.0.s8 %v5591
      %v5593 = vlaneseq
      %v5594 = vshrl.u32 %v5593, 7
      %v5595 = vsub.s32 %v5592, %v5594
      %v5596 = vrot.slane %v5262, %v5595
      %v5597 = vcombine.low %v5575, %v5582
      %v5598 = vcombine.low %v5589, %v5596
      %v5600 = vunpack.c.l.s4 1966171168
      %v5601 = vunpack.c.0.s8 %v5600
      %v5602 = vlaneseq
      %v5603 = vshrl.u32 %v5602, 7
      %v5604 = vsub.s32 %v5601, %v5603
      %v5605 = vrot.slane %v5597, %v5604
      %v5607 = vunpack.c.l.s4 1966171168
      %v5608 = vunpack.c.0.s8 %v5607
      %v5609 = vlaneseq
      %v5610 = vshrl.u32 %v5609, 7
      %v5611 = vsub.s32 %v5608, %v5610
      %v5612 = vrot.slane %v5598, %v5611
      %v5613 = vcombine.low %v5605, %v5612
      %v5614 = vcombine.low %v5264, %v5288
      %v5615 = vcombine.low %v5302, %v5310
      %v5616 = vcombine.low %v5312, %v5295
      %v5618 = vunpack.c.l.s4 1966171168
      %v5619 = vunpack.c.0.s8 %v5618
      %v5620 = vlaneseq
      %v5621 = vshrl.u32 %v5620, 7
      %v5622 = vsub.s32 %v5619, %v5621
      %v5623 = vrot.slane %v5614, %v5622
      %v5625 = vunpack.c.l.s4 1966171168
      %v5626 = vunpack.c.0.s8 %v5625
      %v5627 = vlaneseq
      %v5628 = vshrl.u32 %v5627, 7
      %v5629 = vsub.s32 %v5626, %v5628
      %v5630 = vrot.slane %v5615, %v5629
      %v5632 = vunpack.c.l.s4 1966171168
      %v5633 = vunpack.c.0.s8 %v5632
      %v5634 = vlaneseq
      %v5635 = vshrl.u32 %v5634, 7
      %v5636 = vsub.s32 %v5633, %v5635
      %v5637 = vrot.slane %v5616, %v5636
      %v5639 = vunpack.c.l.s4 1966171168
      %v5640 = vunpack.c.0.s8 %v5639
      %v5641 = vlaneseq
      %v5642 = vshrl.u32 %v5641, 7
      %v5643 = vsub.s32 %v5640, %v5642
      %v5644 = vrot.slane %v5309, %v5643
      %v5645 = vcombine.low %v5623, %v5630
      %v5646 = vcombine.low %v5637, %v5644
      %v5648 = vunpack.c.l.s4 1966171168
      %v5649 = vunpack.c.0.s8 %v5648
      %v5650 = vlaneseq
      %v5651 = vshrl.u32 %v5650, 7
      %v5652 = vsub.s32 %v5649, %v5651
      %v5653 = vrot.slane %v5645, %v5652
      %v5655 = vunpack.c.l.s4 1966171168
      %v5656 = vunpack.c.0.s8 %v5655
      %v5657 = vlaneseq
      %v5658 = vshrl.u32 %v5657, 7
      %v5659 = vsub.s32 %v5656, %v5658
      %v5660 = vrot.slane %v5646, %v5659
      %v5661 = vcombine.low %v5653, %v5660
      %v5662 = vcombine.low %v5311, %v5313
      %v5663 = vcombine.low %v5337, %v5351
      %v5664 = vcombine.low %v5359, %v5361
      %v5666 = vunpack.c.l.s4 1966171168
      %v5667 = vunpack.c.0.s8 %v5666
      %v5668 = vlaneseq
      %v5669 = vshrl.u32 %v5668, 7
      %v5670 = vsub.s32 %v5667, %v5669
      %v5671 = vrot.slane %v5662, %v5670
      %v5673 = vunpack.c.l.s4 1966171168
      %v5674 = vunpack.c.0.s8 %v5673
      %v5675 = vlaneseq
      %v5676 = vshrl.u32 %v5675, 7
      %v5677 = vsub.s32 %v5674, %v5676
      %v5678 = vrot.slane %v5663, %v5677
      %v5680 = vunpack.c.l.s4 1966171168
      %v5681 = vunpack.c.0.s8 %v5680
      %v5682 = vlaneseq
      %v5683 = vshrl.u32 %v5682, 7
      %v5684 = vsub.s32 %v5681, %v5683
      %v5685 = vrot.slane %v5664, %v5684
      %v5687 = vunpack.c.l.s4 1966171168
      %v5688 = vunpack.c.0.s8 %v5687
      %v5689 = vlaneseq
      %v5690 = vshrl.u32 %v5689, 7
      %v5691 = vsub.s32 %v5688, %v5690
      %v5692 = vrot.slane %v5344, %v5691
      %v5693 = vcombine.low %v5671, %v5678
      %v5694 = vcombine.low %v5685, %v5692
      %v5696 = vunpack.c.l.s4 1966171168
      %v5697 = vunpack.c.0.s8 %v5696
      %v5698 = vlaneseq
      %v5699 = vshrl.u32 %v5698, 7
      %v5700 = vsub.s32 %v5697, %v5699
      %v5701 = vrot.slane %v5693, %v5700
      %v5703 = vunpack.c.l.s4 1966171168
      %v5704 = vunpack.c.0.s8 %v5703
      %v5705 = vlaneseq
      %v5706 = vshrl.u32 %v5705, 7
      %v5707 = vsub.s32 %v5704, %v5706
      %v5708 = vrot.slane %v5694, %v5707
      %v5709 = vcombine.low %v5701, %v5708
      %v5710 = vcombine.low %v5358, %v5360
      %v5711 = vcombine.low %v5362, %v5386
      %v5712 = vcombine.low %v5400, %v5408
      %v5714 = vunpack.c.l.s4 1966171168
      %v5715 = vunpack.c.0.s8 %v5714
      %v5716 = vlaneseq
      %v5717 = vshrl.u32 %v5716, 7
      %v5718 = vsub.s32 %v5715, %v5717
      %v5719 = vrot.slane %v5710, %v5718
      %v5721 = vunpack.c.l.s4 1966171168
      %v5722 = vunpack.c.0.s8 %v5721
      %v5723 = vlaneseq
      %v5724 = vshrl.u32 %v5723, 7
      %v5725 = vsub.s32 %v5722, %v5724
      %v5726 = vrot.slane %v5711, %v5725
      %v5728 = vunpack.c.l.s4 1966171168
      %v5729 = vunpack.c.0.s8 %v5728
      %v5730 = vlaneseq
      %v5731 = vshrl.u32 %v5730, 7
      %v5732 = vsub.s32 %v5729, %v5731
      %v5733 = vrot.slane %v5712, %v5732
      %v5735 = vunpack.c.l.s4 1966171168
      %v5736 = vunpack.c.0.s8 %v5735
      %v5737 = vlaneseq
      %v5738 = vshrl.u32 %v5737, 7
      %v5739 = vsub.s32 %v5736, %v5738
      %v5740 = vrot.slane %v5410, %v5739
      %v5741 = vcombine.low %v5719, %v5726
      %v5742 = vcombine.low %v5733, %v5740
      %v5744 = vunpack.c.l.s4 1966171168
      %v5745 = vunpack.c.0.s8 %v5744
      %v5746 = vlaneseq
      %v5747 = vshrl.u32 %v5746, 7
      %v5748 = vsub.s32 %v5745, %v5747
      %v5749 = vrot.slane %v5741, %v5748
      %v5751 = vunpack.c.l.s4 1966171168
      %v5752 = vunpack.c.0.s8 %v5751
      %v5753 = vlaneseq
      %v5754 = vshrl.u32 %v5753, 7
      %v5755 = vsub.s32 %v5752, %v5754
      %v5756 = vrot.slane %v5742, %v5755
      %v5757 = vcombine.low %v5749, %v5756
      %v5758 = vcombine.low %v5393, %v5407
      %v5759 = vcombine.low %v5409, %v5411
      %v5760 = vcombine.low %v5435, %v5449
      %v5762 = vunpack.c.l.s4 1966171168
      %v5763 = vunpack.c.0.s8 %v5762
      %v5764 = vlaneseq
      %v5765 = vshrl.u32 %v5764, 7
      %v5766 = vsub.s32 %v5763, %v5765
      %v5767 = vrot.slane %v5758, %v5766
      %v5769 = vunpack.c.l.s4 1966171168
      %v5770 = vunpack.c.0.s8 %v5769
      %v5771 = vlaneseq
      %v5772 = vshrl.u32 %v5771, 7
      %v5773 = vsub.s32 %v5770, %v5772
      %v5774 = vrot.slane %v5759, %v5773
      %v5776 = vunpack.c.l.s4 1966171168
      %v5777 = vunpack.c.0.s8 %v5776
      %v5778 = vlaneseq
      %v5779 = vshrl.u32 %v5778, 7
      %v5780 = vsub.s32 %v5777, %v5779
      %v5781 = vrot.slane %v5760, %v5780
      %v5783 = vunpack.c.l.s4 1966171168
      %v5784 = vunpack.c.0.s8 %v5783
      %v5785 = vlaneseq
      %v5786 = vshrl.u32 %v5785, 7
      %v5787 = vsub.s32 %v5784, %v5786
      %v5788 = vrot.slane %v5457, %v5787
      %v5789 = vcombine.low %v5767, %v5774
      %v5790 = vcombine.low %v5781, %v5788
      %v5792 = vunpack.c.l.s4 1966171168
      %v5793 = vunpack.c.0.s8 %v5792
      %v5794 = vlaneseq
      %v5795 = vshrl.u32 %v5794, 7
      %v5796 = vsub.s32 %v5793, %v5795
      %v5797 = vrot.slane %v5789, %v5796
      %v5799 = vunpack.c.l.s4 1966171168
      %v5800 = vunpack.c.0.s8 %v5799
      %v5801 = vlaneseq
      %v5802 = vshrl.u32 %v5801, 7
      %v5803 = vsub.s32 %v5800, %v5802
      %v5804 = vrot.slane %v5790, %v5803
      %v5805 = vcombine.low %v5797, %v5804
      %v5806 = vcombine.low %v5459, %v5442
      %v5807 = vcombine.low %v5456, %v5458
      %v5808 = vcombine.low %v5460, %v5484
      %v5810 = vunpack.c.l.s4 1966171168
      %v5811 = vunpack.c.0.s8 %v5810
      %v5812 = vlaneseq
      %v5813 = vshrl.u32 %v5812, 7
      %v5814 = vsub.s32 %v5811, %v5813
      %v5815 = vrot.slane %v5806, %v5814
      %v5817 = vunpack.c.l.s4 1966171168
      %v5818 = vunpack.c.0.s8 %v5817
      %v5819 = vlaneseq
      %v5820 = vshrl.u32 %v5819, 7
      %v5821 = vsub.s32 %v5818, %v5820
      %v5822 = vrot.slane %v5807, %v5821
      %v5824 = vunpack.c.l.s4 1966171168
      %v5825 = vunpack.c.0.s8 %v5824
      %v5826 = vlaneseq
      %v5827 = vshrl.u32 %v5826, 7
      %v5828 = vsub.s32 %v5825, %v5827
      %v5829 = vrot.slane %v5808, %v5828
      %v5831 = vunpack.c.l.s4 1966171168
      %v5832 = vunpack.c.0.s8 %v5831
      %v5833 = vlaneseq
      %v5834 = vshrl.u32 %v5833, 7
      %v5835 = vsub.s32 %v5832, %v5834
      %v5836 = vrot.slane %v5498, %v5835
      %v5837 = vcombine.low %v5815, %v5822
      %v5838 = vcombine.low %v5829, %v5836
      %v5840 = vunpack.c.l.s4 1966171168
      %v5841 = vunpack.c.0.s8 %v5840
      %v5842 = vlaneseq
      %v5843 = vshrl.u32 %v5842, 7
      %v5844 = vsub.s32 %v5841, %v5843
      %v5845 = vrot.slane %v5837, %v5844
      %v5847 = vunpack.c.l.s4 1966171168
      %v5848 = vunpack.c.0.s8 %v5847
      %v5849 = vlaneseq
      %v5850 = vshrl.u32 %v5849, 7
      %v5851 = vsub.s32 %v5848, %v5850
      %v5852 = vrot.slane %v5838, %v5851
      %v5853 = vcombine.low %v5845, %v5852
      %v5854 = vcombine.low %v5506, %v5508
      %v5855 = vcombine.low %v5491, %v5505
      %v5856 = vcombine.low %v5507, %v5509
      %v5858 = vunpack.c.l.s4 1966171168
      %v5859 = vunpack.c.0.s8 %v5858
      %v5860 = vlaneseq
      %v5861 = vshrl.u32 %v5860, 7
      %v5862 = vsub.s32 %v5859, %v5861
      %v5863 = vrot.slane %v5854, %v5862
      %v5865 = vunpack.c.l.s4 1966171168
      %v5866 = vunpack.c.0.s8 %v5865
      %v5867 = vlaneseq
      %v5868 = vshrl.u32 %v5867, 7
      %v5869 = vsub.s32 %v5866, %v5868
      %v5870 = vrot.slane %v5855, %v5869
      %v5872 = vunpack.c.l.s4 1966171168
      %v5873 = vunpack.c.0.s8 %v5872
      %v5874 = vlaneseq
      %v5875 = vshrl.u32 %v5874, 7
      %v5876 = vsub.s32 %v5873, %v5875
      %v5877 = vrot.slane %v5856, %v5876
      %v5879 = vunpack.c.l.s4 1966171168
      %v5880 = vunpack.c.0.s8 %v5879
      %v5881 = vlaneseq
      %v5882 = vshrl.u32 %v5881, 7
      %v5883 = vsub.s32 %v5880, %v5882
      %v5884 = vrot.slane %v5533, %v5883
      %v5885 = vcombine.low %v5863, %v5870
      %v5886 = vcombine.low %v5877, %v5884
      %v5888 = vunpack.c.l.s4 1966171168
      %v5889 = vunpack.c.0.s8 %v5888
      %v5890 = vlaneseq
      %v5891 = vshrl.u32 %v5890, 7
      %v5892 = vsub.s32 %v5889, %v5891
      %v5893 = vrot.slane %v5885, %v5892
      %v5895 = vunpack.c.l.s4 1966171168
      %v5896 = vunpack.c.0.s8 %v5895
      %v5897 = vlaneseq
      %v5898 = vshrl.u32 %v5897, 7
      %v5899 = vsub.s32 %v5896, %v5898
      %v5900 = vrot.slane %v5886, %v5899
      %v5901 = vcombine.low %v5893, %v5900
      %v5902 = vcombine.low %v5547, %v5555
      %v5903 = vcombine.low %v5557, %v5540
      %v5904 = vcombine.low %v5554, %v5556
      %v5906 = vunpack.c.l.s4 1966171168
      %v5907 = vunpack.c.0.s8 %v5906
      %v5908 = vlaneseq
      %v5909 = vshrl.u32 %v5908, 7
      %v5910 = vsub.s32 %v5907, %v5909
      %v5911 = vrot.slane %v5902, %v5910
      %v5913 = vunpack.c.l.s4 1966171168
      %v5914 = vunpack.c.0.s8 %v5913
      %v5915 = vlaneseq
      %v5916 = vshrl.u32 %v5915, 7
      %v5917 = vsub.s32 %v5914, %v5916
      %v5918 = vrot.slane %v5903, %v5917
      %v5920 = vunpack.c.l.s4 1966171168
      %v5921 = vunpack.c.0.s8 %v5920
      %v5922 = vlaneseq
      %v5923 = vshrl.u32 %v5922, 7
      %v5924 = vsub.s32 %v5921, %v5923
      %v5925 = vrot.slane %v5904, %v5924
      %v5927 = vunpack.c.l.s4 1966171168
      %v5928 = vunpack.c.0.s8 %v5927
      %v5929 = vlaneseq
      %v5930 = vshrl.u32 %v5929, 7
      %v5931 = vsub.s32 %v5928, %v5930
      %v5932 = vrot.slane %v5558, %v5931
      %v5933 = vcombine.low %v5911, %v5918
      %v5934 = vcombine.low %v5925, %v5932
      %v5936 = vunpack.c.l.s4 1966171168
      %v5937 = vunpack.c.0.s8 %v5936
      %v5938 = vlaneseq
      %v5939 = vshrl.u32 %v5938, 7
      %v5940 = vsub.s32 %v5937, %v5939
      %v5941 = vrot.slane %v5933, %v5940
      %v5943 = vunpack.c.l.s4 1966171168
      %v5944 = vunpack.c.0.s8 %v5943
      %v5945 = vlaneseq
      %v5946 = vshrl.u32 %v5945, 7
      %v5947 = vsub.s32 %v5944, %v5946
      %v5948 = vrot.slane %v5934, %v5947
      %v5949 = vcombine.low %v5941, %v5948
      %5950 = vset.pattern.permute.xlu0 0
      %5951 = vperm.xlu0 %5950, %v5613
      %v5952 = vpop.permute.xlu0 %5951
      %5953 = vset.pattern.permute.xlu0 0
      %5954 = vperm.xlu0 %5953, %v5661
      %v5955 = vpop.permute.xlu0 %5954
      %5956 = vset.pattern.permute.xlu0 0
      %5957 = vperm.xlu0 %5956, %v5709
      %v5958 = vpop.permute.xlu0 %5957
      %5959 = vset.pattern.permute.xlu0 0
      %5960 = vperm.xlu0 %5959, %v5757
      %v5961 = vpop.permute.xlu0 %5960
      %5962 = vset.pattern.permute.xlu0 0
      %5963 = vperm.xlu0 %5962, %v5805
      %v5964 = vpop.permute.xlu0 %5963
      %5965 = vset.pattern.permute.xlu0 0
      %5966 = vperm.xlu0 %5965, %v5853
      %v5967 = vpop.permute.xlu0 %5966
      %5968 = vset.pattern.permute.xlu0 0
      %5969 = vperm.xlu0 %5968, %v5901
      %v5970 = vpop.permute.xlu0 %5969
      %5971 = vset.pattern.permute.xlu0 0
      %5972 = vperm.xlu0 %5971, %v5949
      %v5973 = vpop.permute.xlu0 %5972
      %v5974 = vlaneseq
      %v5975 = vand.u32 %v5974, 127
      %v5976 = vlaneseq
      %v5977 = vshrl.u32 %v5976, 7
      %v5978 = vsub.s32 %v5975, %v5977
      %v5979 = vrot.slane %v5952, %v5978
      %v5980 = vlaneseq
      %v5981 = vshrl.u32 %v5980, 7
      %v5982 = vsub.s32 %v5975, %v5981
      %v5983 = vrot.slane %v5955, %v5982
      %v5984 = vlaneseq
      %v5985 = vshrl.u32 %v5984, 7
      %v5986 = vsub.s32 %v5975, %v5985
      %v5987 = vrot.slane %v5958, %v5986
      %v5988 = vlaneseq
      %v5989 = vshrl.u32 %v5988, 7
      %v5990 = vsub.s32 %v5975, %v5989
      %v5991 = vrot.slane %v5961, %v5990
      %v5992 = vlaneseq
      %v5993 = vshrl.u32 %v5992, 7
      %v5994 = vsub.s32 %v5975, %v5993
      %v5995 = vrot.slane %v5964, %v5994
      %v5996 = vlaneseq
      %v5997 = vshrl.u32 %v5996, 7
      %v5998 = vsub.s32 %v5975, %v5997
      %v5999 = vrot.slane %v5967, %v5998
      %v6000 = vlaneseq
      %v6001 = vshrl.u32 %v6000, 7
      %v6002 = vsub.s32 %v5975, %v6001
      %v6003 = vrot.slane %v5970, %v6002
      %v6004 = vlaneseq
      %v6005 = vshrl.u32 %v6004, 7
      %v6006 = vsub.s32 %v5975, %v6005
      %v6007 = vrot.slane %v5973, %v6006
      %vm6008 = vcmask 1041409
      %v6009 = vsel %vm6008, %v5983, %v5979
      %vm6010 = vcmask 1042434
      %v6011 = vsel %vm6010, %v5987, %v6009
      %vm6012 = vcmask 1043459
      %v6013 = vsel %vm6012, %v5991, %v6011
      %vm6014 = vcmask 1044484
      %v6015 = vsel %vm6014, %v5995, %v6013
      %vm6016 = vcmask 1045509
      %v6017 = vsel %vm6016, %v5999, %v6015
      %vm6018 = vcmask 1046534
      %v6019 = vsel %vm6018, %v6003, %v6017
      %vm6020 = vcmask 1047559
      %v6021 = vsel %vm6020, %v6007, %v6019
      %v6024 = vsel %vm1711, %v5559, 0
      %6026 = vmatprep.subr.mxu0 0.0
      %6027 = vmatpush1.msra.mxu0 %v6021
      %6028 = vmatprep.subr.mxu0 0.0
      %6029 = vmatpush1.msra.mxu0 0.0
      %6030 = vmatprep.subr.mxu0 0.0
      %6031 = vmatpush1.msra.mxu0 0.0
      %6032 = vmatprep.subr.mxu0 0.0
      %6033 = vmatpush1.msra.mxu0 0.0
      %6034 = vmatprep.subr.mxu0 0.0
      %6035 = vmatpush1.msra.mxu0 0.0
      %6036 = vmatprep.subr.mxu0 0.0
      %6037 = vmatpush1.msra.mxu0 0.0
      %6038 = vmatprep.subr.mxu0 0.0
      %6039 = vmatpush1.msra.mxu0 0.0
      %6040 = vmatprep.subr.mxu0 0.0
      %6041 = vmatpush1.msra.mxu0 0.0
      %6042 = vmatprep.subr.mxu0 0.0
      %6043 = vmatpush1.msra.mxu0 0.0
      %6044 = vmatprep.subr.mxu0 0.0
      %6045 = vmatpush1.msra.mxu0 0.0
      %6046 = vmatprep.subr.mxu0 0.0
      %6047 = vmatpush1.msra.mxu0 0.0
      %6048 = vmatprep.subr.mxu0 0.0
      %6049 = vmatpush1.msra.mxu0 0.0
      %6050 = vmatprep.subr.mxu0 0.0
      %6051 = vmatpush1.msra.mxu0 0.0
      %6052 = vmatprep.subr.mxu0 0.0
      %6053 = vmatpush1.msra.mxu0 0.0
      %6054 = vmatprep.subr.mxu0 0.0
      %6055 = vmatpush1.msra.mxu0 0.0
      %6056 = vmatprep.subr.mxu0 0.0
      %6057 = vmatpush1.msra.mxu0 0.0
      %6058 = vmatprep.subr.mxu0 0.0
      %6059 = vmatpush1.msra.mxu0 0.0
      %6060 = vmatprep.subr.mxu0 0.0
      %6061 = vmatpush1.msra.mxu0 0.0
      %6062 = vmatprep.subr.mxu0 0.0
      %6063 = vmatpush1.msra.mxu0 0.0
      %6064 = vmatprep.subr.mxu0 0.0
      %6065 = vmatpush1.msra.mxu0 0.0
      %6066 = vmatprep.subr.mxu0 0.0
      %6067 = vmatpush1.msra.mxu0 0.0
      %6068 = vmatprep.subr.mxu0 0.0
      %6069 = vmatpush1.msra.mxu0 0.0
      %6070 = vmatprep.subr.mxu0 0.0
      %6071 = vmatpush1.msra.mxu0 0.0
      %6072 = vmatprep.subr.mxu0 0.0
      %6073 = vmatpush1.msra.mxu0 0.0
      %6074 = vmatprep.subr.mxu0 0.0
      %6075 = vmatpush1.msra.mxu0 0.0
      %6076 = vmatprep.subr.mxu0 0.0
      %6077 = vmatpush1.msra.mxu0 0.0
      %6078 = vmatprep.subr.mxu0 0.0
      %6079 = vmatpush1.msra.mxu0 0.0
      %6080 = vmatprep.subr.mxu0 0.0
      %6081 = vmatpush1.msra.mxu0 0.0
      %6082 = vmatprep.subr.mxu0 0.0
      %6083 = vmatpush1.msra.mxu0 0.0
      %6084 = vmatprep.subr.mxu0 0.0
      %6085 = vmatpush1.msra.mxu0 0.0
      %6086 = vmatprep.subr.mxu0 0.0
      %6087 = vmatpush1.msra.mxu0 0.0
      %6088 = vmatprep.subr.mxu0 0.0
      %6089 = vmatpush1.msra.mxu0 0.0
      %6090 = vmatprep.mubr.f32.mxu0 0.0
      %6091 = vmatmul.mubr.f32.gmra.mrb[0].mxu0 %v6024
      %v6092 = vpop.f32.mrb[0].mxu0
      %v6093 = vadd.f32 %v5564, %v6092
      %v6094 = vpop.f32.mrb[0].mxu0
      %6095 = vdwg.mxu0
      %v6096 = vlaneseq
      %v6097 = vshrl.u32 %v6096, 7
      %v6098 = vsub.s32 0, %v6097
      %v6099 = vrot.slane %v6093, %v6098
      %6101 = vbcast.lane.b32.xlu0 %v6099, 256
      %v6102 = vpop.permute.xlu0 %6101
      %vm6103 = vcmask 6144
      %6104 = vst.msk [vmem:[%s966] sm:$0x7f] %vm6103, %v6102
      %v6105 = vlaneseq
      %v6106 = vshrl.u32 %v6105, 7
      %v6107 = vsub.s32 1, %v6106
      %v6108 = vrot.slane %v6093, %v6107
      %6110 = vbcast.lane.b32.xlu0 %v6108, 256
      %v6111 = vpop.permute.xlu0 %6110
      %6112 = vst.msk [vmem:[%s971] sm:$0x7f] %vm6103, %v6111
      %6113 = vset.pattern.permute.xlu0 1
      %6114 = vperm.xlu0 %6113, %v5613
      %v6115 = vpop.permute.xlu0 %6114
      %6116 = vset.pattern.permute.xlu0 1
      %6117 = vperm.xlu0 %6116, %v5661
      %v6118 = vpop.permute.xlu0 %6117
      %6119 = vset.pattern.permute.xlu0 1
      %6120 = vperm.xlu0 %6119, %v5709
      %v6121 = vpop.permute.xlu0 %6120
      %6122 = vset.pattern.permute.xlu0 1
      %6123 = vperm.xlu0 %6122, %v5757
      %v6124 = vpop.permute.xlu0 %6123
      %6125 = vset.pattern.permute.xlu0 1
      %6126 = vperm.xlu0 %6125, %v5805
      %v6127 = vpop.permute.xlu0 %6126
      %6128 = vset.pattern.permute.xlu0 1
      %6129 = vperm.xlu0 %6128, %v5853
      %v6130 = vpop.permute.xlu0 %6129
      %6131 = vset.pattern.permute.xlu0 1
      %6132 = vperm.xlu0 %6131, %v5901
      %v6133 = vpop.permute.xlu0 %6132
      %6134 = vset.pattern.permute.xlu0 1
      %6135 = vperm.xlu0 %6134, %v5949
      %v6136 = vpop.permute.xlu0 %6135
      %v6137 = vlaneseq
      %v6138 = vshrl.u32 %v6137, 7
      %v6139 = vsub.s32 %v5975, %v6138
      %v6140 = vrot.slane %v6115, %v6139
      %v6141 = vlaneseq
      %v6142 = vshrl.u32 %v6141, 7
      %v6143 = vsub.s32 %v5975, %v6142
      %v6144 = vrot.slane %v6118, %v6143
      %v6145 = vlaneseq
      %v6146 = vshrl.u32 %v6145, 7
      %v6147 = vsub.s32 %v5975, %v6146
      %v6148 = vrot.slane %v6121, %v6147
      %v6149 = vlaneseq
      %v6150 = vshrl.u32 %v6149, 7
      %v6151 = vsub.s32 %v5975, %v6150
      %v6152 = vrot.slane %v6124, %v6151
      %v6153 = vlaneseq
      %v6154 = vshrl.u32 %v6153, 7
      %v6155 = vsub.s32 %v5975, %v6154
      %v6156 = vrot.slane %v6127, %v6155
      %v6157 = vlaneseq
      %v6158 = vshrl.u32 %v6157, 7
      %v6159 = vsub.s32 %v5975, %v6158
      %v6160 = vrot.slane %v6130, %v6159
      %v6161 = vlaneseq
      %v6162 = vshrl.u32 %v6161, 7
      %v6163 = vsub.s32 %v5975, %v6162
      %v6164 = vrot.slane %v6133, %v6163
      %v6165 = vlaneseq
      %v6166 = vshrl.u32 %v6165, 7
      %v6167 = vsub.s32 %v5975, %v6166
      %v6168 = vrot.slane %v6136, %v6167
      %v6169 = vsel %vm6008, %v6144, %v6140
      %v6170 = vsel %vm6010, %v6148, %v6169
      %v6171 = vsel %vm6012, %v6152, %v6170
      %v6172 = vsel %vm6014, %v6156, %v6171
      %v6173 = vsel %vm6016, %v6160, %v6172
      %v6174 = vsel %vm6018, %v6164, %v6173
      %v6175 = vsel %vm6020, %v6168, %v6174
      %6177 = vmatprep.subr.mxu0 0.0
      %6178 = vmatpush1.msra.mxu0 %v6175
      %6179 = vmatprep.subr.mxu0 0.0
      %6180 = vmatpush1.msra.mxu0 0.0
      %6181 = vmatprep.subr.mxu0 0.0
      %6182 = vmatpush1.msra.mxu0 0.0
      %6183 = vmatprep.subr.mxu0 0.0
      %6184 = vmatpush1.msra.mxu0 0.0
      %6185 = vmatprep.subr.mxu0 0.0
      %6186 = vmatpush1.msra.mxu0 0.0
      %6187 = vmatprep.subr.mxu0 0.0
      %6188 = vmatpush1.msra.mxu0 0.0
      %6189 = vmatprep.subr.mxu0 0.0
      %6190 = vmatpush1.msra.mxu0 0.0
      %6191 = vmatprep.subr.mxu0 0.0
      %6192 = vmatpush1.msra.mxu0 0.0
      %6193 = vmatprep.subr.mxu0 0.0
      %6194 = vmatpush1.msra.mxu0 0.0
      %6195 = vmatprep.subr.mxu0 0.0
      %6196 = vmatpush1.msra.mxu0 0.0
      %6197 = vmatprep.subr.mxu0 0.0
      %6198 = vmatpush1.msra.mxu0 0.0
      %6199 = vmatprep.subr.mxu0 0.0
      %6200 = vmatpush1.msra.mxu0 0.0
      %6201 = vmatprep.subr.mxu0 0.0
      %6202 = vmatpush1.msra.mxu0 0.0
      %6203 = vmatprep.subr.mxu0 0.0
      %6204 = vmatpush1.msra.mxu0 0.0
      %6205 = vmatprep.subr.mxu0 0.0
      %6206 = vmatpush1.msra.mxu0 0.0
      %6207 = vmatprep.subr.mxu0 0.0
      %6208 = vmatpush1.msra.mxu0 0.0
      %6209 = vmatprep.subr.mxu0 0.0
      %6210 = vmatpush1.msra.mxu0 0.0
      %6211 = vmatprep.subr.mxu0 0.0
      %6212 = vmatpush1.msra.mxu0 0.0
      %6213 = vmatprep.subr.mxu0 0.0
      %6214 = vmatpush1.msra.mxu0 0.0
      %6215 = vmatprep.subr.mxu0 0.0
      %6216 = vmatpush1.msra.mxu0 0.0
      %6217 = vmatprep.subr.mxu0 0.0
      %6218 = vmatpush1.msra.mxu0 0.0
      %6219 = vmatprep.subr.mxu0 0.0
      %6220 = vmatpush1.msra.mxu0 0.0
      %6221 = vmatprep.subr.mxu0 0.0
      %6222 = vmatpush1.msra.mxu0 0.0
      %6223 = vmatprep.subr.mxu0 0.0
      %6224 = vmatpush1.msra.mxu0 0.0
      %6225 = vmatprep.subr.mxu0 0.0
      %6226 = vmatpush1.msra.mxu0 0.0
      %6227 = vmatprep.subr.mxu0 0.0
      %6228 = vmatpush1.msra.mxu0 0.0
      %6229 = vmatprep.subr.mxu0 0.0
      %6230 = vmatpush1.msra.mxu0 0.0
      %6231 = vmatprep.subr.mxu0 0.0
      %6232 = vmatpush1.msra.mxu0 0.0
      %6233 = vmatprep.subr.mxu0 0.0
      %6234 = vmatpush1.msra.mxu0 0.0
      %6235 = vmatprep.subr.mxu0 0.0
      %6236 = vmatpush1.msra.mxu0 0.0
      %6237 = vmatprep.subr.mxu0 0.0
      %6238 = vmatpush1.msra.mxu0 0.0
      %6239 = vmatprep.subr.mxu0 0.0
      %6240 = vmatpush1.msra.mxu0 0.0
      %6241 = vmatprep.mubr.f32.mxu0 0.0
      %6242 = vmatmul.mubr.f32.gmra.mrb[0].mxu0 %v6024
      %v6243 = vpop.f32.mrb[0].mxu0
      %v6244 = vadd.f32 %v5564, %v6243
      %v6245 = vpop.f32.mrb[0].mxu0
      %6246 = vdwg.mxu0
      %v6247 = vlaneseq
      %v6248 = vshrl.u32 %v6247, 7
      %v6249 = vsub.s32 0, %v6248
      %v6250 = vrot.slane %v6244, %v6249
      %6252 = vbcast.lane.b32.xlu0 %v6250, 256
      %v6253 = vpop.permute.xlu0 %6252
      %s6254 = scalar_lea.vmem %s966, 8
      %6255 = vst.msk [vmem:[%s6254] sm:$0x7f] %vm6103, %v6253
      %v6256 = vlaneseq
      %v6257 = vshrl.u32 %v6256, 7
      %v6258 = vsub.s32 1, %v6257
      %v6259 = vrot.slane %v6244, %v6258
      %6261 = vbcast.lane.b32.xlu0 %v6259, 256
      %v6262 = vpop.permute.xlu0 %6261
      %s6263 = scalar_lea.vmem %s971, 8
      %6264 = vst.msk [vmem:[%s6263] sm:$0x7f] %vm6103, %v6262
      %p6265 = scmp.lt.s32.totalorder %s75, 1
      %s6266 = scalar_select %p6265, %s75, 1
      %s6267 = smul.addr %s6266, 2
      %s6268 = smul.addr %s6267, 8
      %s6269 = scalar_lea.vmem %s61, %s6268
      %p6270 = scmp.lt.s32.totalorder %s75, 1
      %s6271 = scalar_select %p6270, %s75, 1
      %s6272 = smul.addr %s6271, 2
      %s6273 = smul.addr %s6272, 8
      %s6274 = scalar_lea.vmem %s63, %s6273
      // Predicated region
      $region141: #{complex_decoder_forward.1} parent=139 // pred_check
        %p6275 = pneg %p728
      $region142: #{complex_decoder_forward.1} parent=139 // pred_check_branch
        %6277 = sbr.rel (%p6275) target = $region144
      $region143: #{complex_decoder_forward.1} parent=139 // pred_region
        _
      $region144: #{complex_decoder_forward.1} parent=139 // pred_fallthru
        _
      // Predicated region
      $region145: #{complex_decoder_forward.1} parent=139 // pred_check
        %p6278 = pneg %p754
      $region146: #{complex_decoder_forward.1} parent=139 // pred_check_branch
        %6280 = sbr.rel (%p6278) target = $region148
      $region147: #{complex_decoder_forward.1} parent=139 // pred_region
        _
      $region148: #{complex_decoder_forward.1} parent=139 // pred_fallthru
        _
    $region140: #{complex_decoder_forward.1} parent=5 // pred_fallthru
      _
    %p6281 = scmp.le.s32.totalorder 2, %s70
    // Predicated region
    $region149: #{complex_decoder_forward.1} parent=5 // pred_check
      %p6282 = pneg %p6281
    $region150: #{complex_decoder_forward.1} parent=5 // pred_check_branch
      %6284 = sbr.rel (%p6282) target = $region152
    $region151: #{complex_decoder_forward.1} parent=5 // pred_region
      %s6285 = ssub.s32 %s70, 2
      // Predicated region
      $region153: #{complex_decoder_forward.1} parent=151 // pred_check
        %p6286 = pneg %p734
      $region154: #{complex_decoder_forward.1} parent=151 // pred_check_branch
        %6288 = sbr.rel (%p6286) target = $region156
      $region155: #{complex_decoder_forward.1} parent=151 // pred_region
        %p6289 = scmp.lt.s32.totalorder %s76, 1
        %s6290 = scalar_select %p6289, %s76, 1
        %s6291 = smul.addr %s6290, 2
        %s6292 = smul.addr %s6291, 8
        %s6293 = scalar_lea.vmem %s61, %s6292
      $region156: #{complex_decoder_forward.1} parent=151 // pred_fallthru
        _
      // Predicated region
      $region157: #{complex_decoder_forward.1} parent=151 // pred_check
        %p6294 = pneg %p760
      $region158: #{complex_decoder_forward.1} parent=151 // pred_check_branch
        %6296 = sbr.rel (%p6294) target = $region160
      $region159: #{complex_decoder_forward.1} parent=151 // pred_region
        %p6297 = scmp.lt.s32.totalorder %s76, 1
        %s6298 = scalar_select %p6297, %s76, 1
        %s6299 = smul.addr %s6298, 2
        %s6300 = smul.addr %s6299, 8
        %s6301 = scalar_lea.vmem %s63, %s6300
      $region160: #{complex_decoder_forward.1} parent=151 // pred_fallthru
        _
    $region152: #{complex_decoder_forward.1} parent=5 // pred_fallthru
      _
  $region6: #{complex_decoder_forward.1} parent=0 // loop_footer
    %s74 = sadd.s32 1, %s70
  $region7: #{complex_decoder_forward.1} parent=0 // loop_footer_branch
    %69 = sbr.rel target = $region3
  $region8: #{complex_decoder_forward.1} parent=0 // loop_exit
    _

</llo_original>
